<compile_context>
chip_gen: v7x
topology: tpu7x:2x2x1
jax: 0.10.0
libtpu: 0.0.40
codegen_flags: <defaults>
</compile_context>

<pallas_src>
import functools

import jax
import jax.numpy as jnp
from jax.experimental import pallas as pl
from jax.experimental.pallas import tpu as pltpu

NEG_SLOPE = 0.01          # nn.LeakyReLU default
BN_EPS = 1e-5             # nn.BatchNorm1d default

N_TOKENS = 100
N_SPEAKERS = 199
EMB = 32
HIDDEN = 128
N_STACK = 8               # cnn11..cnn17 (+BN) and cnn2 (no BN)


def pitch_predictor_kernel(x_ref,
                           w1_ref, b1_ref,
                           ws_ref, bs_ref,
                           wbr_ref, bbr_ref,
                           w2_ref, b2_ref,
                           out_ref,
                           *, seq_len):
    x = x_ref[0]                                   # (M, 2*EMB) bf16, M = Bb*T
    m_rows = x.shape[0]

    # Per-sequence conv boundary masks, built ONCE per grid step.
    row = jax.lax.broadcasted_iota(jnp.int32, (m_rows, 1), 0)
    tpos = row % seq_len
    has_prev = tpos > 0
    has_next = tpos < (seq_len - 1)

    def conv3(h, w_flat, b_row):
        """k=3, pad=1 conv: three K=C matmuls, roll/mask the f32 OUTPUTS.

        h: (M, C) bf16; w_flat: (3*C, Cout) bf16 (BN pre-folded, taps stacked
        along rows: [prev; mid; next]); b_row: (1, Cout) f32.
        y[t] = w_mid.h[t] + w_prev.h[t-1] + w_next.h[t+1], zero-padded per
        sequence -- the rolls of the matmul outputs never leak across
        sequences because of the masks.
        """
        c = h.shape[1]
        y = jnp.dot(h, w_flat[c:2 * c], preferred_element_type=jnp.float32)
        yp = jnp.dot(h, w_flat[:c], preferred_element_type=jnp.float32)
        yn = jnp.dot(h, w_flat[2 * c:], preferred_element_type=jnp.float32)
        y = y + b_row
        # shift=m_rows-1 is the static equivalent of shift=-1 (mod M).
        y = y + jnp.where(has_prev, pltpu.roll(yp, shift=1, axis=0), 0.0)
        y = y + jnp.where(has_next,
                          pltpu.roll(yn, shift=m_rows - 1, axis=0), 0.0)
        return y

    def leaky_bf16(acc):
        # max-form leaky ReLU (mul+max instead of cmp+select+mul), f32 math
        # (safe on v5e), then cast once to bf16 for the next layer's matmuls.
        return jnp.maximum(acc, NEG_SLOPE * acc).astype(jnp.bfloat16)

    # cnn1 + bn1 + leaky
    h = leaky_bf16(conv3(x, w1_ref[...], b1_ref[...]))

    # cnn11..cnn17 (+bn, leaky) and cnn2 (identity scale/shift, leaky)
    for i in range(N_STACK):
        h = leaky_bf16(conv3(h, ws_ref[i], bs_ref[i]))

    # Fused class/reg branch: one 128 -> 256 conv (+folded BN, leaky); the
    # result is directly hcat = [class_branch | reg_branch].
    hcat = leaky_bf16(conv3(h, wbr_ref[...], bbr_ref[...]))      # (M, 256)

    # k=1 head convs (128 -> 1) packed block-diagonally into one matmul that
    # directly yields the lane-dense (2, M) output: row 0 = class, row 1 = reg.
    heads = jax.lax.dot_general(
        w2_ref[...], hcat, (((1,), (1,)), ((), ())),
        preferred_element_type=jnp.float32)                      # (2, M)
    out_ref[0] = heads + b2_ref[...]


def _const_spec(a):
    return pl.BlockSpec(a.shape, lambda g, nd=a.ndim: (0,) * nd)


def _tpu_budget():
    """(max rows per grid step, vmem_limit_bytes), generation-aware."""
    try:
        cap = pltpu.get_tpu_info().vmem_capacity_bytes
    except Exception:
        cap = 64 << 20
    if cap >= (100 << 20):           # v5e / v6e: 128 MiB physical VMEM
        return 4096, 64 << 20
    return 2048, 32 << 20            # v7x (64 MiB physical) / unknown


def _choose_block_batch(batch, seq_len, max_rows, target_rows=256):
    """How many sequences to flatten into one grid step's matmul M dim."""
    divisors = [d for d in range(1, batch + 1) if batch % d == 0]
    fitting = [d for d in divisors if d * seq_len <= max_rows] or [divisors[0]]

    def pick(pred):
        for d in reversed(fitting):
            if pred(d):
                return d
        return None

    # Prefer an even number of grid steps (v7x dual-TC / megacore), then any
    # G >= 2, as long as each block keeps a healthy number of MXU rows.
    d = pick(lambda d: (batch // d) >= 2 and (batch // d) % 2 == 0
             and d * seq_len >= target_rows)
    if d is None:
        d = pick(lambda d: (batch // d) >= 2 and d * seq_len >= target_rows)
    if d is None:
        d = fitting[-1]
    return d


def pitch_predictor_forward(x, params):
    """x: (B, T, 2*EMB) bfloat16 concatenated token+speaker embeddings."""
    B, T, Cin = x.shape
    max_rows, vmem_limit = _tpu_budget()
    Bb = _choose_block_batch(B, T, max_rows)
    G = B // Bb
    M = Bb * T

    xg = x.reshape(G, M, Cin)   # flatten Bb sequences into the M dimension

    ordered = [params[k] for k in
               ("w1", "b1", "ws", "bs", "wbr", "bbr", "w2", "b2")]
    in_specs = [pl.BlockSpec((1, M, Cin), lambda g: (g, 0, 0))]
    # Weights are small (~1 MiB bf16); constant index maps keep them resident.
    in_specs += [_const_spec(a) for a in ordered]

    out = pl.pallas_call(
        functools.partial(pitch_predictor_kernel, seq_len=T),
        out_shape=jax.ShapeDtypeStruct((G, 2, M), jnp.float32),
        grid=(G,),
        in_specs=in_specs,
        out_specs=pl.BlockSpec((1, 2, M), lambda g: (g, 0, 0)),
        compiler_params=pltpu.CompilerParams(
            dimension_semantics=("parallel",),
            vmem_limit_bytes=vmem_limit),
    )(xg, *ordered)

    out = out.reshape(G, 2, Bb, T)
    class_preds = out[:, 0].reshape(B, T)
    reg_preds = out[:, 1].reshape(B, T)
    return class_preds, reg_preds


# ---------------------------------------------------------------------------
# Parameter construction: BN folding + tap stacking + branch fusion + bf16.
# ---------------------------------------------------------------------------

def _rand(key, shape, scale=0.05):
    return scale * jax.random.normal(key, shape, jnp.float32)


def _bn_params(key, c):
    k1, k2, k3, k4 = jax.random.split(key, 4)
    gamma = 1.0 + 0.1 * jax.random.normal(k1, (c,), jnp.float32)
    beta = 0.1 * jax.random.normal(k2, (c,), jnp.float32)
    mean = 0.1 * jax.random.normal(k3, (c,), jnp.float32)
    var = jax.random.uniform(k4, (c,), jnp.float32, 0.5, 1.5)
    return gamma, beta, mean, var


def _fold(w, b, bn):
    """Fold eval-mode BatchNorm into a k=3 conv and stack taps along rows.

    w: (3, cin, cout) with w[k][ci, co] == torch_weight[co, ci, k]; b: (cout,).
    Returns ((3*cin, cout) bf16 weight [prev; mid; next], (1, cout) f32 bias).
    """
    cout = w.shape[-1]
    if bn is None:
        scale = jnp.ones((cout,), jnp.float32)
        shift = jnp.zeros((cout,), jnp.float32)
    else:
        gamma, beta, mean, var = bn
        scale = gamma / jnp.sqrt(var + BN_EPS)
        shift = beta - mean * scale
    w_f = (w * scale[None, None, :]).reshape(-1, cout).astype(jnp.bfloat16)
    b_f = (b * scale + shift)[None, :].astype(jnp.float32)
    return w_f, b_f


def init_params(key):
    keys = jax.random.split(key, 64)
    it = iter(keys)
    p = {}

    # cnn1 (64 -> 128, k=3) + bn1, folded.
    w1 = _rand(next(it), (3, 2 * EMB, HIDDEN))
    b1 = _rand(next(it), (HIDDEN,))
    p["w1"], p["b1"] = _fold(w1, b1, _bn_params(next(it), HIDDEN))

    # cnn11..cnn17 (+bn11..bn17) and cnn2 (no BN), folded and stacked.
    ws, bs = [], []
    for i in range(N_STACK):
        w = _rand(next(it), (3, HIDDEN, HIDDEN))
        b = _rand(next(it), (HIDDEN,))
        bn = _bn_params(next(it), HIDDEN) if i < N_STACK - 1 else None
        wf, bf = _fold(w, b, bn)
        ws.append(wf)
        bs.append(bf)
    p["ws"] = jnp.stack(ws)          # (8, 3*128, 128) bf16
    p["bs"] = jnp.stack(bs)          # (8, 1, 128) f32

    # cnn_class1 + bn_c1 and cnn_reg1 + bn_r1, folded and FUSED along Cout
    # into one 128 -> 256 conv (class = cols 0:128, reg = cols 128:256).
    wc1 = _rand(next(it), (3, HIDDEN, HIDDEN))
    bc1 = _rand(next(it), (HIDDEN,))
    wc1_f, bc1_f = _fold(wc1, bc1, _bn_params(next(it), HIDDEN))
    wr1 = _rand(next(it), (3, HIDDEN, HIDDEN))
    br1 = _rand(next(it), (HIDDEN,))
    wr1_f, br1_f = _fold(wr1, br1, _bn_params(next(it), HIDDEN))
    p["wbr"] = jnp.concatenate([wc1_f, wr1_f], axis=-1)   # (3*128, 256) bf16
    p["bbr"] = jnp.concatenate([bc1_f, br1_f], axis=-1)   # (1, 256) f32

    # cnn_class2 / cnn_reg2: Conv1d(128 -> 1, k=1) packed block-diagonally so
    # one (2, 256) x (M, 256)^T matmul yields both heads lane-dense.
    wc2 = _rand(next(it), (HIDDEN,))
    bc2 = _rand(next(it), (1,))
    wr2 = _rand(next(it), (HIDDEN,))
    br2 = _rand(next(it), (1,))
    w2 = jnp.zeros((2, 2 * HIDDEN), jnp.float32)
    w2 = w2.at[0, :HIDDEN].set(wc2).at[1, HIDDEN:].set(wr2)
    p["w2"] = w2.astype(jnp.bfloat16)
    p["b2"] = jnp.stack([bc2, br2]).reshape(2, 1)   # (2, 1) f32

    # Embedding tables (gather done in plain-JAX glue).
    tok = 0.1 * jax.random.normal(next(it), (N_TOKENS + 1, EMB), jnp.float32)
    p["token_emb"] = tok.at[N_TOKENS].set(0.0)      # padding_idx
    spk = 0.1 * jax.random.normal(next(it), (N_SPEAKERS + 1, EMB), jnp.float32)
    p["spk_emb"] = spk.at[N_SPEAKERS].set(0.0)      # padding_idx
    return p


@jax.jit
def pitch_predictor(seq, spk_id, params):
    """seq: (B, T) int32, spk_id: (B, 1) int32 -> ((B, T), (B, T)) float32."""
    B, T = seq.shape
    emb_seq = jnp.take(params["token_emb"], seq, axis=0)          # (B, T, EMB)
    emb_spk = jnp.take(params["spk_emb"], spk_id, axis=0)         # (B, 1, EMB)
    emb_spk = jnp.broadcast_to(emb_spk, (B, T, EMB))              # repeat_interleave dim=1
    x = jnp.concatenate([emb_seq, emb_spk], axis=-1)              # (B, T, 2*EMB)
    x = x.astype(jnp.bfloat16)                                    # halve input DMA
    return pitch_predictor_forward(x, params)


if __name__ == "__main__":
    key = jax.random.PRNGKey(0)
    k_param, k_seq, k_spk = jax.random.split(key, 3)

    B, T = 2, 16
    params = init_params(k_param)
    seq = jax.random.randint(k_seq, (B, T), 0, N_TOKENS, dtype=jnp.int32)
    spk_id = jax.random.randint(k_spk, (B, 1), 0, N_SPEAKERS, dtype=jnp.int32)

    class_preds, reg_preds = pitch_predictor(seq, spk_id, params)
    jax.block_until_ready((class_preds, reg_preds))

    assert class_preds.shape == (B, T) and reg_preds.shape == (B, T)
    assert class_preds.dtype == jnp.float32 and reg_preds.dtype == jnp.float32
    assert bool(jnp.all(jnp.isfinite(class_preds))) and bool(jnp.all(jnp.isfinite(reg_preds)))
    print("KERNEL_OK")
</pallas_src>

<mosaic_0001>
module attributes {stable_mosaic.version = 11 : i64} {
  func.func @pitch_predictor_kernel(%arg0: i32, %arg1: memref<1x32x64xbf16, #tpu.memory_space<vmem>>, %arg2: memref<192x128xbf16, #tpu.memory_space<vmem>>, %arg3: memref<1x128xf32, #tpu.memory_space<vmem>>, %arg4: memref<8x384x128xbf16, #tpu.memory_space<vmem>>, %arg5: memref<8x1x128xf32, #tpu.memory_space<vmem>>, %arg6: memref<384x256xbf16, #tpu.memory_space<vmem>>, %arg7: memref<1x256xf32, #tpu.memory_space<vmem>>, %arg8: memref<2x256xbf16, #tpu.memory_space<vmem>>, %arg9: memref<2x1xf32, #tpu.memory_space<vmem>>, %arg10: memref<1x2x32xf32, #tpu.memory_space<vmem>>) attributes {dimension_semantics = [#tpu.dimension_semantics<parallel>], iteration_bounds = array<i64: 1>, scalar_prefetch = 0 : i64, scratch_operands = 0 : i64, tpu.core_type = #tpu.core_type<tc>, window_params = [{transform_indices = @transform_0, window_bounds = array<i64: 1, 32, 64>}, {pipeline_mode = #tpu.pipeline_mode<synchronous>, transform_indices = @transform_1, window_bounds = array<i64: 192, 128>}, {pipeline_mode = #tpu.pipeline_mode<synchronous>, transform_indices = @transform_2, window_bounds = array<i64: 1, 128>}, {pipeline_mode = #tpu.pipeline_mode<synchronous>, transform_indices = @transform_3, window_bounds = array<i64: 8, 384, 128>}, {pipeline_mode = #tpu.pipeline_mode<synchronous>, transform_indices = @transform_4, window_bounds = array<i64: 8, 1, 128>}, {pipeline_mode = #tpu.pipeline_mode<synchronous>, transform_indices = @transform_5, window_bounds = array<i64: 384, 256>}, {pipeline_mode = #tpu.pipeline_mode<synchronous>, transform_indices = @transform_6, window_bounds = array<i64: 1, 256>}, {pipeline_mode = #tpu.pipeline_mode<synchronous>, transform_indices = @transform_7, window_bounds = array<i64: 2, 256>}, {pipeline_mode = #tpu.pipeline_mode<synchronous>, transform_indices = @transform_8, window_bounds = array<i64: 2, 1>}, {transform_indices = @transform_9, window_bounds = array<i64: 1, 2, 32>}]} {
    %c0 = arith.constant 0 : index
    %c0_0 = arith.constant 0 : index
    %c0_1 = arith.constant 0 : index
    %0 = vector.load %arg1[%c0, %c0_0, %c0_1] : memref<1x32x64xbf16, #tpu.memory_space<vmem>>, vector<1x32x64xbf16>
    %1 = vector.shape_cast %0 : vector<1x32x64xbf16> to vector<32x64xbf16>
    %2 = tpu.iota {dimensions = array<i32: 0>} : vector<32x1xi32>
    %c16_i32 = arith.constant 16 : i32
    %c0_i32 = arith.constant 0 : i32
    %3 = arith.cmpi eq, %c16_i32, %c0_i32 : i32
    %c1_i32 = arith.constant 1 : i32
    %4 = arith.select %3, %c1_i32, %c16_i32 : i32
    %5 = vector.broadcast %4 : i32 to vector<32x1xi32>
    %6 = arith.remsi %2, %5 : vector<32x1xi32>
    %c0_i32_2 = arith.constant 0 : i32
    %7 = vector.broadcast %c0_i32_2 : i32 to vector<32x1xi32>
    %8 = arith.cmpi ne, %6, %7 : vector<32x1xi32>
    %c0_i32_3 = arith.constant 0 : i32
    %9 = vector.broadcast %c0_i32_3 : i32 to vector<32x1xi32>
    %10 = arith.cmpi slt, %6, %9 : vector<32x1xi32>
    %c0_i32_4 = arith.constant 0 : i32
    %11 = arith.cmpi slt, %4, %c0_i32_4 : i32
    %12 = vector.broadcast %11 : i1 to vector<32x1xi1>
    %13 = vector.broadcast %12 : vector<32x1xi1> to vector<32x1xi1>
    %14 = arith.xori %10, %13 : vector<32x1xi1>
    %15 = arith.andi %14, %8 : vector<32x1xi1>
    %16 = vector.broadcast %4 : i32 to vector<32x1xi32>
    %17 = arith.addi %6, %16 : vector<32x1xi32>
    %18 = arith.select %15, %17, %6 : vector<32x1xi1>, vector<32x1xi32>
    %c0_i32_5 = arith.constant 0 : i32
    %19 = vector.broadcast %c0_i32_5 : i32 to vector<32x1xi32>
    %20 = arith.cmpi sgt, %18, %19 : vector<32x1xi32>
    %c15_i32 = arith.constant 15 : i32
    %21 = vector.broadcast %c15_i32 : i32 to vector<32x1xi32>
    %22 = arith.cmpi slt, %18, %21 : vector<32x1xi32>
    %c0_6 = arith.constant 0 : index
    %c0_7 = arith.constant 0 : index
    %23 = vector.load %arg2[%c0_6, %c0_7] : memref<192x128xbf16, #tpu.memory_space<vmem>>, vector<192x128xbf16>
    %c0_8 = arith.constant 0 : index
    %c0_9 = arith.constant 0 : index
    %24 = vector.load %arg3[%c0_8, %c0_9] : memref<1x128xf32, #tpu.memory_space<vmem>>, vector<1x128xf32>
    %25 = vector.extract_strided_slice %23 {offsets = [64, 0], sizes = [64, 128], strides = [1, 1]} : vector<192x128xbf16> to vector<64x128xbf16>
    %cst = arith.constant dense<0.000000e+00> : vector<32x128xf32>
    %26 = tpu.matmul %1, %25, %cst {dimension_numbers = #tpu.dot_dimension_numbers<[1], [0], [0], [1], [0, 0, 1, 1], [], []>} : vector<32x64xbf16>, vector<64x128xbf16>, vector<32x128xf32> -> vector<32x128xf32>
    %27 = vector.extract_strided_slice %23 {offsets = [0, 0], sizes = [64, 128], strides = [1, 1]} : vector<192x128xbf16> to vector<64x128xbf16>
    %cst_10 = arith.constant dense<0.000000e+00> : vector<32x128xf32>
    %28 = tpu.matmul %1, %27, %cst_10 {dimension_numbers = #tpu.dot_dimension_numbers<[1], [0], [0], [1], [0, 0, 1, 1], [], []>} : vector<32x64xbf16>, vector<64x128xbf16>, vector<32x128xf32> -> vector<32x128xf32>
    %29 = vector.extract_strided_slice %23 {offsets = [128, 0], sizes = [64, 128], strides = [1, 1]} : vector<192x128xbf16> to vector<64x128xbf16>
    %cst_11 = arith.constant dense<0.000000e+00> : vector<32x128xf32>
    %30 = tpu.matmul %1, %29, %cst_11 {dimension_numbers = #tpu.dot_dimension_numbers<[1], [0], [0], [1], [0, 0, 1, 1], [], []>} : vector<32x64xbf16>, vector<64x128xbf16>, vector<32x128xf32> -> vector<32x128xf32>
    %31 = vector.broadcast %24 : vector<1x128xf32> to vector<32x128xf32>
    %32 = arith.addf %26, %31 : vector<32x128xf32>
    %c1_i32_12 = arith.constant 1 : i32
    %33 = tpu.dynamic_rotate %28 by %c1_i32_12 dim 0 : vector<32x128xf32>, i32 -> vector<32x128xf32>
    %cst_13 = arith.constant 0.000000e+00 : f32
    %34 = vector.shape_cast %20 : vector<32x1xi1> to vector<32x1xi1>
    %35 = vector.broadcast %34 : vector<32x1xi1> to vector<32x128xi1>
    %36 = vector.broadcast %cst_13 : f32 to vector<32x128xf32>
    %37 = arith.select %35, %33, %36 : vector<32x128xi1>, vector<32x128xf32>
    %38 = arith.addf %32, %37 : vector<32x128xf32>
    %c31_i32 = arith.constant 31 : i32
    %39 = tpu.dynamic_rotate %30 by %c31_i32 dim 0 : vector<32x128xf32>, i32 -> vector<32x128xf32>
    %cst_14 = arith.constant 0.000000e+00 : f32
    %40 = vector.shape_cast %22 : vector<32x1xi1> to vector<32x1xi1>
    %41 = vector.broadcast %40 : vector<32x1xi1> to vector<32x128xi1>
    %42 = vector.broadcast %cst_14 : f32 to vector<32x128xf32>
    %43 = arith.select %41, %39, %42 : vector<32x128xi1>, vector<32x128xf32>
    %44 = arith.addf %38, %43 : vector<32x128xf32>
    %cst_15 = arith.constant 0.00999999977 : f32
    %45 = vector.broadcast %cst_15 : f32 to vector<32x128xf32>
    %46 = arith.mulf %45, %44 : vector<32x128xf32>
    %47 = arith.maximumf %44, %46 : vector<32x128xf32>
    %48 = arith.truncf %47 : vector<32x128xf32> to vector<32x128xbf16>
    %c0_16 = arith.constant 0 : index
    %c0_17 = arith.constant 0 : index
    %c0_18 = arith.constant 0 : index
    %49 = vector.load %arg4[%c0_16, %c0_17, %c0_18] : memref<8x384x128xbf16, #tpu.memory_space<vmem>>, vector<1x384x128xbf16>
    %50 = vector.shape_cast %49 : vector<1x384x128xbf16> to vector<384x128xbf16>
    %c0_19 = arith.constant 0 : index
    %c0_20 = arith.constant 0 : index
    %c0_21 = arith.constant 0 : index
    %51 = vector.load %arg5[%c0_19, %c0_20, %c0_21] : memref<8x1x128xf32, #tpu.memory_space<vmem>>, vector<1x1x128xf32>
    %52 = vector.shape_cast %51 : vector<1x1x128xf32> to vector<1x128xf32>
    %53 = vector.extract_strided_slice %50 {offsets = [128, 0], sizes = [128, 128], strides = [1, 1]} : vector<384x128xbf16> to vector<128x128xbf16>
    %cst_22 = arith.constant dense<0.000000e+00> : vector<32x128xf32>
    %54 = tpu.matmul %48, %53, %cst_22 {dimension_numbers = #tpu.dot_dimension_numbers<[1], [0], [0], [1], [0, 0, 1, 1], [], []>} : vector<32x128xbf16>, vector<128x128xbf16>, vector<32x128xf32> -> vector<32x128xf32>
    %55 = vector.extract_strided_slice %50 {offsets = [0, 0], sizes = [128, 128], strides = [1, 1]} : vector<384x128xbf16> to vector<128x128xbf16>
    %cst_23 = arith.constant dense<0.000000e+00> : vector<32x128xf32>
    %56 = tpu.matmul %48, %55, %cst_23 {dimension_numbers = #tpu.dot_dimension_numbers<[1], [0], [0], [1], [0, 0, 1, 1], [], []>} : vector<32x128xbf16>, vector<128x128xbf16>, vector<32x128xf32> -> vector<32x128xf32>
    %57 = vector.extract_strided_slice %50 {offsets = [256, 0], sizes = [128, 128], strides = [1, 1]} : vector<384x128xbf16> to vector<128x128xbf16>
    %cst_24 = arith.constant dense<0.000000e+00> : vector<32x128xf32>
    %58 = tpu.matmul %48, %57, %cst_24 {dimension_numbers = #tpu.dot_dimension_numbers<[1], [0], [0], [1], [0, 0, 1, 1], [], []>} : vector<32x128xbf16>, vector<128x128xbf16>, vector<32x128xf32> -> vector<32x128xf32>
    %59 = vector.broadcast %52 : vector<1x128xf32> to vector<32x128xf32>
    %60 = arith.addf %54, %59 : vector<32x128xf32>
    %c1_i32_25 = arith.constant 1 : i32
    %61 = tpu.dynamic_rotate %56 by %c1_i32_25 dim 0 : vector<32x128xf32>, i32 -> vector<32x128xf32>
    %cst_26 = arith.constant 0.000000e+00 : f32
    %62 = vector.shape_cast %20 : vector<32x1xi1> to vector<32x1xi1>
    %63 = vector.broadcast %62 : vector<32x1xi1> to vector<32x128xi1>
    %64 = vector.broadcast %cst_26 : f32 to vector<32x128xf32>
    %65 = arith.select %63, %61, %64 : vector<32x128xi1>, vector<32x128xf32>
    %66 = arith.addf %60, %65 : vector<32x128xf32>
    %c31_i32_27 = arith.constant 31 : i32
    %67 = tpu.dynamic_rotate %58 by %c31_i32_27 dim 0 : vector<32x128xf32>, i32 -> vector<32x128xf32>
    %cst_28 = arith.constant 0.000000e+00 : f32
    %68 = vector.shape_cast %22 : vector<32x1xi1> to vector<32x1xi1>
    %69 = vector.broadcast %68 : vector<32x1xi1> to vector<32x128xi1>
    %70 = vector.broadcast %cst_28 : f32 to vector<32x128xf32>
    %71 = arith.select %69, %67, %70 : vector<32x128xi1>, vector<32x128xf32>
    %72 = arith.addf %66, %71 : vector<32x128xf32>
    %cst_29 = arith.constant 0.00999999977 : f32
    %73 = vector.broadcast %cst_29 : f32 to vector<32x128xf32>
    %74 = arith.mulf %73, %72 : vector<32x128xf32>
    %75 = arith.maximumf %72, %74 : vector<32x128xf32>
    %76 = arith.truncf %75 : vector<32x128xf32> to vector<32x128xbf16>
    %c1 = arith.constant 1 : index
    %c0_30 = arith.constant 0 : index
    %c0_31 = arith.constant 0 : index
    %77 = vector.load %arg4[%c1, %c0_30, %c0_31] : memref<8x384x128xbf16, #tpu.memory_space<vmem>>, vector<1x384x128xbf16>
    %78 = vector.shape_cast %77 : vector<1x384x128xbf16> to vector<384x128xbf16>
    %c1_32 = arith.constant 1 : index
    %c0_33 = arith.constant 0 : index
    %c0_34 = arith.constant 0 : index
    %79 = vector.load %arg5[%c1_32, %c0_33, %c0_34] : memref<8x1x128xf32, #tpu.memory_space<vmem>>, vector<1x1x128xf32>
    %80 = vector.shape_cast %79 : vector<1x1x128xf32> to vector<1x128xf32>
    %81 = vector.extract_strided_slice %78 {offsets = [128, 0], sizes = [128, 128], strides = [1, 1]} : vector<384x128xbf16> to vector<128x128xbf16>
    %cst_35 = arith.constant dense<0.000000e+00> : vector<32x128xf32>
    %82 = tpu.matmul %76, %81, %cst_35 {dimension_numbers = #tpu.dot_dimension_numbers<[1], [0], [0], [1], [0, 0, 1, 1], [], []>} : vector<32x128xbf16>, vector<128x128xbf16>, vector<32x128xf32> -> vector<32x128xf32>
    %83 = vector.extract_strided_slice %78 {offsets = [0, 0], sizes = [128, 128], strides = [1, 1]} : vector<384x128xbf16> to vector<128x128xbf16>
    %cst_36 = arith.constant dense<0.000000e+00> : vector<32x128xf32>
    %84 = tpu.matmul %76, %83, %cst_36 {dimension_numbers = #tpu.dot_dimension_numbers<[1], [0], [0], [1], [0, 0, 1, 1], [], []>} : vector<32x128xbf16>, vector<128x128xbf16>, vector<32x128xf32> -> vector<32x128xf32>
    %85 = vector.extract_strided_slice %78 {offsets = [256, 0], sizes = [128, 128], strides = [1, 1]} : vector<384x128xbf16> to vector<128x128xbf16>
    %cst_37 = arith.constant dense<0.000000e+00> : vector<32x128xf32>
    %86 = tpu.matmul %76, %85, %cst_37 {dimension_numbers = #tpu.dot_dimension_numbers<[1], [0], [0], [1], [0, 0, 1, 1], [], []>} : vector<32x128xbf16>, vector<128x128xbf16>, vector<32x128xf32> -> vector<32x128xf32>
    %87 = vector.broadcast %80 : vector<1x128xf32> to vector<32x128xf32>
    %88 = arith.addf %82, %87 : vector<32x128xf32>
    %c1_i32_38 = arith.constant 1 : i32
    %89 = tpu.dynamic_rotate %84 by %c1_i32_38 dim 0 : vector<32x128xf32>, i32 -> vector<32x128xf32>
    %cst_39 = arith.constant 0.000000e+00 : f32
    %90 = vector.shape_cast %20 : vector<32x1xi1> to vector<32x1xi1>
    %91 = vector.broadcast %90 : vector<32x1xi1> to vector<32x128xi1>
    %92 = vector.broadcast %cst_39 : f32 to vector<32x128xf32>
    %93 = arith.select %91, %89, %92 : vector<32x128xi1>, vector<32x128xf32>
    %94 = arith.addf %88, %93 : vector<32x128xf32>
    %c31_i32_40 = arith.constant 31 : i32
    %95 = tpu.dynamic_rotate %86 by %c31_i32_40 dim 0 : vector<32x128xf32>, i32 -> vector<32x128xf32>
    %cst_41 = arith.constant 0.000000e+00 : f32
    %96 = vector.shape_cast %22 : vector<32x1xi1> to vector<32x1xi1>
    %97 = vector.broadcast %96 : vector<32x1xi1> to vector<32x128xi1>
    %98 = vector.broadcast %cst_41 : f32 to vector<32x128xf32>
    %99 = arith.select %97, %95, %98 : vector<32x128xi1>, vector<32x128xf32>
    %100 = arith.addf %94, %99 : vector<32x128xf32>
    %cst_42 = arith.constant 0.00999999977 : f32
    %101 = vector.broadcast %cst_42 : f32 to vector<32x128xf32>
    %102 = arith.mulf %101, %100 : vector<32x128xf32>
    %103 = arith.maximumf %100, %102 : vector<32x128xf32>
    %104 = arith.truncf %103 : vector<32x128xf32> to vector<32x128xbf16>
    %c2 = arith.constant 2 : index
    %c0_43 = arith.constant 0 : index
    %c0_44 = arith.constant 0 : index
    %105 = vector.load %arg4[%c2, %c0_43, %c0_44] : memref<8x384x128xbf16, #tpu.memory_space<vmem>>, vector<1x384x128xbf16>
    %106 = vector.shape_cast %105 : vector<1x384x128xbf16> to vector<384x128xbf16>
    %c2_45 = arith.constant 2 : index
    %c0_46 = arith.constant 0 : index
    %c0_47 = arith.constant 0 : index
    %107 = vector.load %arg5[%c2_45, %c0_46, %c0_47] : memref<8x1x128xf32, #tpu.memory_space<vmem>>, vector<1x1x128xf32>
    %108 = vector.shape_cast %107 : vector<1x1x128xf32> to vector<1x128xf32>
    %109 = vector.extract_strided_slice %106 {offsets = [128, 0], sizes = [128, 128], strides = [1, 1]} : vector<384x128xbf16> to vector<128x128xbf16>
    %cst_48 = arith.constant dense<0.000000e+00> : vector<32x128xf32>
    %110 = tpu.matmul %104, %109, %cst_48 {dimension_numbers = #tpu.dot_dimension_numbers<[1], [0], [0], [1], [0, 0, 1, 1], [], []>} : vector<32x128xbf16>, vector<128x128xbf16>, vector<32x128xf32> -> vector<32x128xf32>
    %111 = vector.extract_strided_slice %106 {offsets = [0, 0], sizes = [128, 128], strides = [1, 1]} : vector<384x128xbf16> to vector<128x128xbf16>
    %cst_49 = arith.constant dense<0.000000e+00> : vector<32x128xf32>
    %112 = tpu.matmul %104, %111, %cst_49 {dimension_numbers = #tpu.dot_dimension_numbers<[1], [0], [0], [1], [0, 0, 1, 1], [], []>} : vector<32x128xbf16>, vector<128x128xbf16>, vector<32x128xf32> -> vector<32x128xf32>
    %113 = vector.extract_strided_slice %106 {offsets = [256, 0], sizes = [128, 128], strides = [1, 1]} : vector<384x128xbf16> to vector<128x128xbf16>
    %cst_50 = arith.constant dense<0.000000e+00> : vector<32x128xf32>
    %114 = tpu.matmul %104, %113, %cst_50 {dimension_numbers = #tpu.dot_dimension_numbers<[1], [0], [0], [1], [0, 0, 1, 1], [], []>} : vector<32x128xbf16>, vector<128x128xbf16>, vector<32x128xf32> -> vector<32x128xf32>
    %115 = vector.broadcast %108 : vector<1x128xf32> to vector<32x128xf32>
    %116 = arith.addf %110, %115 : vector<32x128xf32>
    %c1_i32_51 = arith.constant 1 : i32
    %117 = tpu.dynamic_rotate %112 by %c1_i32_51 dim 0 : vector<32x128xf32>, i32 -> vector<32x128xf32>
    %cst_52 = arith.constant 0.000000e+00 : f32
    %118 = vector.shape_cast %20 : vector<32x1xi1> to vector<32x1xi1>
    %119 = vector.broadcast %118 : vector<32x1xi1> to vector<32x128xi1>
    %120 = vector.broadcast %cst_52 : f32 to vector<32x128xf32>
    %121 = arith.select %119, %117, %120 : vector<32x128xi1>, vector<32x128xf32>
    %122 = arith.addf %116, %121 : vector<32x128xf32>
    %c31_i32_53 = arith.constant 31 : i32
    %123 = tpu.dynamic_rotate %114 by %c31_i32_53 dim 0 : vector<32x128xf32>, i32 -> vector<32x128xf32>
    %cst_54 = arith.constant 0.000000e+00 : f32
    %124 = vector.shape_cast %22 : vector<32x1xi1> to vector<32x1xi1>
    %125 = vector.broadcast %124 : vector<32x1xi1> to vector<32x128xi1>
    %126 = vector.broadcast %cst_54 : f32 to vector<32x128xf32>
    %127 = arith.select %125, %123, %126 : vector<32x128xi1>, vector<32x128xf32>
    %128 = arith.addf %122, %127 : vector<32x128xf32>
    %cst_55 = arith.constant 0.00999999977 : f32
    %129 = vector.broadcast %cst_55 : f32 to vector<32x128xf32>
    %130 = arith.mulf %129, %128 : vector<32x128xf32>
    %131 = arith.maximumf %128, %130 : vector<32x128xf32>
    %132 = arith.truncf %131 : vector<32x128xf32> to vector<32x128xbf16>
    %c3 = arith.constant 3 : index
    %c0_56 = arith.constant 0 : index
    %c0_57 = arith.constant 0 : index
    %133 = vector.load %arg4[%c3, %c0_56, %c0_57] : memref<8x384x128xbf16, #tpu.memory_space<vmem>>, vector<1x384x128xbf16>
    %134 = vector.shape_cast %133 : vector<1x384x128xbf16> to vector<384x128xbf16>
    %c3_58 = arith.constant 3 : index
    %c0_59 = arith.constant 0 : index
    %c0_60 = arith.constant 0 : index
    %135 = vector.load %arg5[%c3_58, %c0_59, %c0_60] : memref<8x1x128xf32, #tpu.memory_space<vmem>>, vector<1x1x128xf32>
    %136 = vector.shape_cast %135 : vector<1x1x128xf32> to vector<1x128xf32>
    %137 = vector.extract_strided_slice %134 {offsets = [128, 0], sizes = [128, 128], strides = [1, 1]} : vector<384x128xbf16> to vector<128x128xbf16>
    %cst_61 = arith.constant dense<0.000000e+00> : vector<32x128xf32>
    %138 = tpu.matmul %132, %137, %cst_61 {dimension_numbers = #tpu.dot_dimension_numbers<[1], [0], [0], [1], [0, 0, 1, 1], [], []>} : vector<32x128xbf16>, vector<128x128xbf16>, vector<32x128xf32> -> vector<32x128xf32>
    %139 = vector.extract_strided_slice %134 {offsets = [0, 0], sizes = [128, 128], strides = [1, 1]} : vector<384x128xbf16> to vector<128x128xbf16>
    %cst_62 = arith.constant dense<0.000000e+00> : vector<32x128xf32>
    %140 = tpu.matmul %132, %139, %cst_62 {dimension_numbers = #tpu.dot_dimension_numbers<[1], [0], [0], [1], [0, 0, 1, 1], [], []>} : vector<32x128xbf16>, vector<128x128xbf16>, vector<32x128xf32> -> vector<32x128xf32>
    %141 = vector.extract_strided_slice %134 {offsets = [256, 0], sizes = [128, 128], strides = [1, 1]} : vector<384x128xbf16> to vector<128x128xbf16>
    %cst_63 = arith.constant dense<0.000000e+00> : vector<32x128xf32>
    %142 = tpu.matmul %132, %141, %cst_63 {dimension_numbers = #tpu.dot_dimension_numbers<[1], [0], [0], [1], [0, 0, 1, 1], [], []>} : vector<32x128xbf16>, vector<128x128xbf16>, vector<32x128xf32> -> vector<32x128xf32>
    %143 = vector.broadcast %136 : vector<1x128xf32> to vector<32x128xf32>
    %144 = arith.addf %138, %143 : vector<32x128xf32>
    %c1_i32_64 = arith.constant 1 : i32
    %145 = tpu.dynamic_rotate %140 by %c1_i32_64 dim 0 : vector<32x128xf32>, i32 -> vector<32x128xf32>
    %cst_65 = arith.constant 0.000000e+00 : f32
    %146 = vector.shape_cast %20 : vector<32x1xi1> to vector<32x1xi1>
    %147 = vector.broadcast %146 : vector<32x1xi1> to vector<32x128xi1>
    %148 = vector.broadcast %cst_65 : f32 to vector<32x128xf32>
    %149 = arith.select %147, %145, %148 : vector<32x128xi1>, vector<32x128xf32>
    %150 = arith.addf %144, %149 : vector<32x128xf32>
    %c31_i32_66 = arith.constant 31 : i32
    %151 = tpu.dynamic_rotate %142 by %c31_i32_66 dim 0 : vector<32x128xf32>, i32 -> vector<32x128xf32>
    %cst_67 = arith.constant 0.000000e+00 : f32
    %152 = vector.shape_cast %22 : vector<32x1xi1> to vector<32x1xi1>
    %153 = vector.broadcast %152 : vector<32x1xi1> to vector<32x128xi1>
    %154 = vector.broadcast %cst_67 : f32 to vector<32x128xf32>
    %155 = arith.select %153, %151, %154 : vector<32x128xi1>, vector<32x128xf32>
    %156 = arith.addf %150, %155 : vector<32x128xf32>
    %cst_68 = arith.constant 0.00999999977 : f32
    %157 = vector.broadcast %cst_68 : f32 to vector<32x128xf32>
    %158 = arith.mulf %157, %156 : vector<32x128xf32>
    %159 = arith.maximumf %156, %158 : vector<32x128xf32>
    %160 = arith.truncf %159 : vector<32x128xf32> to vector<32x128xbf16>
    %c4 = arith.constant 4 : index
    %c0_69 = arith.constant 0 : index
    %c0_70 = arith.constant 0 : index
    %161 = vector.load %arg4[%c4, %c0_69, %c0_70] : memref<8x384x128xbf16, #tpu.memory_space<vmem>>, vector<1x384x128xbf16>
    %162 = vector.shape_cast %161 : vector<1x384x128xbf16> to vector<384x128xbf16>
    %c4_71 = arith.constant 4 : index
    %c0_72 = arith.constant 0 : index
    %c0_73 = arith.constant 0 : index
    %163 = vector.load %arg5[%c4_71, %c0_72, %c0_73] : memref<8x1x128xf32, #tpu.memory_space<vmem>>, vector<1x1x128xf32>
    %164 = vector.shape_cast %163 : vector<1x1x128xf32> to vector<1x128xf32>
    %165 = vector.extract_strided_slice %162 {offsets = [128, 0], sizes = [128, 128], strides = [1, 1]} : vector<384x128xbf16> to vector<128x128xbf16>
    %cst_74 = arith.constant dense<0.000000e+00> : vector<32x128xf32>
    %166 = tpu.matmul %160, %165, %cst_74 {dimension_numbers = #tpu.dot_dimension_numbers<[1], [0], [0], [1], [0, 0, 1, 1], [], []>} : vector<32x128xbf16>, vector<128x128xbf16>, vector<32x128xf32> -> vector<32x128xf32>
    %167 = vector.extract_strided_slice %162 {offsets = [0, 0], sizes = [128, 128], strides = [1, 1]} : vector<384x128xbf16> to vector<128x128xbf16>
    %cst_75 = arith.constant dense<0.000000e+00> : vector<32x128xf32>
    %168 = tpu.matmul %160, %167, %cst_75 {dimension_numbers = #tpu.dot_dimension_numbers<[1], [0], [0], [1], [0, 0, 1, 1], [], []>} : vector<32x128xbf16>, vector<128x128xbf16>, vector<32x128xf32> -> vector<32x128xf32>
    %169 = vector.extract_strided_slice %162 {offsets = [256, 0], sizes = [128, 128], strides = [1, 1]} : vector<384x128xbf16> to vector<128x128xbf16>
    %cst_76 = arith.constant dense<0.000000e+00> : vector<32x128xf32>
    %170 = tpu.matmul %160, %169, %cst_76 {dimension_numbers = #tpu.dot_dimension_numbers<[1], [0], [0], [1], [0, 0, 1, 1], [], []>} : vector<32x128xbf16>, vector<128x128xbf16>, vector<32x128xf32> -> vector<32x128xf32>
    %171 = vector.broadcast %164 : vector<1x128xf32> to vector<32x128xf32>
    %172 = arith.addf %166, %171 : vector<32x128xf32>
    %c1_i32_77 = arith.constant 1 : i32
    %173 = tpu.dynamic_rotate %168 by %c1_i32_77 dim 0 : vector<32x128xf32>, i32 -> vector<32x128xf32>
    %cst_78 = arith.constant 0.000000e+00 : f32
    %174 = vector.shape_cast %20 : vector<32x1xi1> to vector<32x1xi1>
    %175 = vector.broadcast %174 : vector<32x1xi1> to vector<32x128xi1>
    %176 = vector.broadcast %cst_78 : f32 to vector<32x128xf32>
    %177 = arith.select %175, %173, %176 : vector<32x128xi1>, vector<32x128xf32>
    %178 = arith.addf %172, %177 : vector<32x128xf32>
    %c31_i32_79 = arith.constant 31 : i32
    %179 = tpu.dynamic_rotate %170 by %c31_i32_79 dim 0 : vector<32x128xf32>, i32 -> vector<32x128xf32>
    %cst_80 = arith.constant 0.000000e+00 : f32
    %180 = vector.shape_cast %22 : vector<32x1xi1> to vector<32x1xi1>
    %181 = vector.broadcast %180 : vector<32x1xi1> to vector<32x128xi1>
    %182 = vector.broadcast %cst_80 : f32 to vector<32x128xf32>
    %183 = arith.select %181, %179, %182 : vector<32x128xi1>, vector<32x128xf32>
    %184 = arith.addf %178, %183 : vector<32x128xf32>
    %cst_81 = arith.constant 0.00999999977 : f32
    %185 = vector.broadcast %cst_81 : f32 to vector<32x128xf32>
    %186 = arith.mulf %185, %184 : vector<32x128xf32>
    %187 = arith.maximumf %184, %186 : vector<32x128xf32>
    %188 = arith.truncf %187 : vector<32x128xf32> to vector<32x128xbf16>
    %c5 = arith.constant 5 : index
    %c0_82 = arith.constant 0 : index
    %c0_83 = arith.constant 0 : index
    %189 = vector.load %arg4[%c5, %c0_82, %c0_83] : memref<8x384x128xbf16, #tpu.memory_space<vmem>>, vector<1x384x128xbf16>
    %190 = vector.shape_cast %189 : vector<1x384x128xbf16> to vector<384x128xbf16>
    %c5_84 = arith.constant 5 : index
    %c0_85 = arith.constant 0 : index
    %c0_86 = arith.constant 0 : index
    %191 = vector.load %arg5[%c5_84, %c0_85, %c0_86] : memref<8x1x128xf32, #tpu.memory_space<vmem>>, vector<1x1x128xf32>
    %192 = vector.shape_cast %191 : vector<1x1x128xf32> to vector<1x128xf32>
    %193 = vector.extract_strided_slice %190 {offsets = [128, 0], sizes = [128, 128], strides = [1, 1]} : vector<384x128xbf16> to vector<128x128xbf16>
    %cst_87 = arith.constant dense<0.000000e+00> : vector<32x128xf32>
    %194 = tpu.matmul %188, %193, %cst_87 {dimension_numbers = #tpu.dot_dimension_numbers<[1], [0], [0], [1], [0, 0, 1, 1], [], []>} : vector<32x128xbf16>, vector<128x128xbf16>, vector<32x128xf32> -> vector<32x128xf32>
    %195 = vector.extract_strided_slice %190 {offsets = [0, 0], sizes = [128, 128], strides = [1, 1]} : vector<384x128xbf16> to vector<128x128xbf16>
    %cst_88 = arith.constant dense<0.000000e+00> : vector<32x128xf32>
    %196 = tpu.matmul %188, %195, %cst_88 {dimension_numbers = #tpu.dot_dimension_numbers<[1], [0], [0], [1], [0, 0, 1, 1], [], []>} : vector<32x128xbf16>, vector<128x128xbf16>, vector<32x128xf32> -> vector<32x128xf32>
    %197 = vector.extract_strided_slice %190 {offsets = [256, 0], sizes = [128, 128], strides = [1, 1]} : vector<384x128xbf16> to vector<128x128xbf16>
    %cst_89 = arith.constant dense<0.000000e+00> : vector<32x128xf32>
    %198 = tpu.matmul %188, %197, %cst_89 {dimension_numbers = #tpu.dot_dimension_numbers<[1], [0], [0], [1], [0, 0, 1, 1], [], []>} : vector<32x128xbf16>, vector<128x128xbf16>, vector<32x128xf32> -> vector<32x128xf32>
    %199 = vector.broadcast %192 : vector<1x128xf32> to vector<32x128xf32>
    %200 = arith.addf %194, %199 : vector<32x128xf32>
    %c1_i32_90 = arith.constant 1 : i32
    %201 = tpu.dynamic_rotate %196 by %c1_i32_90 dim 0 : vector<32x128xf32>, i32 -> vector<32x128xf32>
    %cst_91 = arith.constant 0.000000e+00 : f32
    %202 = vector.shape_cast %20 : vector<32x1xi1> to vector<32x1xi1>
    %203 = vector.broadcast %202 : vector<32x1xi1> to vector<32x128xi1>
    %204 = vector.broadcast %cst_91 : f32 to vector<32x128xf32>
    %205 = arith.select %203, %201, %204 : vector<32x128xi1>, vector<32x128xf32>
    %206 = arith.addf %200, %205 : vector<32x128xf32>
    %c31_i32_92 = arith.constant 31 : i32
    %207 = tpu.dynamic_rotate %198 by %c31_i32_92 dim 0 : vector<32x128xf32>, i32 -> vector<32x128xf32>
    %cst_93 = arith.constant 0.000000e+00 : f32
    %208 = vector.shape_cast %22 : vector<32x1xi1> to vector<32x1xi1>
    %209 = vector.broadcast %208 : vector<32x1xi1> to vector<32x128xi1>
    %210 = vector.broadcast %cst_93 : f32 to vector<32x128xf32>
    %211 = arith.select %209, %207, %210 : vector<32x128xi1>, vector<32x128xf32>
    %212 = arith.addf %206, %211 : vector<32x128xf32>
    %cst_94 = arith.constant 0.00999999977 : f32
    %213 = vector.broadcast %cst_94 : f32 to vector<32x128xf32>
    %214 = arith.mulf %213, %212 : vector<32x128xf32>
    %215 = arith.maximumf %212, %214 : vector<32x128xf32>
    %216 = arith.truncf %215 : vector<32x128xf32> to vector<32x128xbf16>
    %c6 = arith.constant 6 : index
    %c0_95 = arith.constant 0 : index
    %c0_96 = arith.constant 0 : index
    %217 = vector.load %arg4[%c6, %c0_95, %c0_96] : memref<8x384x128xbf16, #tpu.memory_space<vmem>>, vector<1x384x128xbf16>
    %218 = vector.shape_cast %217 : vector<1x384x128xbf16> to vector<384x128xbf16>
    %c6_97 = arith.constant 6 : index
    %c0_98 = arith.constant 0 : index
    %c0_99 = arith.constant 0 : index
    %219 = vector.load %arg5[%c6_97, %c0_98, %c0_99] : memref<8x1x128xf32, #tpu.memory_space<vmem>>, vector<1x1x128xf32>
    %220 = vector.shape_cast %219 : vector<1x1x128xf32> to vector<1x128xf32>
    %221 = vector.extract_strided_slice %218 {offsets = [128, 0], sizes = [128, 128], strides = [1, 1]} : vector<384x128xbf16> to vector<128x128xbf16>
    %cst_100 = arith.constant dense<0.000000e+00> : vector<32x128xf32>
    %222 = tpu.matmul %216, %221, %cst_100 {dimension_numbers = #tpu.dot_dimension_numbers<[1], [0], [0], [1], [0, 0, 1, 1], [], []>} : vector<32x128xbf16>, vector<128x128xbf16>, vector<32x128xf32> -> vector<32x128xf32>
    %223 = vector.extract_strided_slice %218 {offsets = [0, 0], sizes = [128, 128], strides = [1, 1]} : vector<384x128xbf16> to vector<128x128xbf16>
    %cst_101 = arith.constant dense<0.000000e+00> : vector<32x128xf32>
    %224 = tpu.matmul %216, %223, %cst_101 {dimension_numbers = #tpu.dot_dimension_numbers<[1], [0], [0], [1], [0, 0, 1, 1], [], []>} : vector<32x128xbf16>, vector<128x128xbf16>, vector<32x128xf32> -> vector<32x128xf32>
    %225 = vector.extract_strided_slice %218 {offsets = [256, 0], sizes = [128, 128], strides = [1, 1]} : vector<384x128xbf16> to vector<128x128xbf16>
    %cst_102 = arith.constant dense<0.000000e+00> : vector<32x128xf32>
    %226 = tpu.matmul %216, %225, %cst_102 {dimension_numbers = #tpu.dot_dimension_numbers<[1], [0], [0], [1], [0, 0, 1, 1], [], []>} : vector<32x128xbf16>, vector<128x128xbf16>, vector<32x128xf32> -> vector<32x128xf32>
    %227 = vector.broadcast %220 : vector<1x128xf32> to vector<32x128xf32>
    %228 = arith.addf %222, %227 : vector<32x128xf32>
    %c1_i32_103 = arith.constant 1 : i32
    %229 = tpu.dynamic_rotate %224 by %c1_i32_103 dim 0 : vector<32x128xf32>, i32 -> vector<32x128xf32>
    %cst_104 = arith.constant 0.000000e+00 : f32
    %230 = vector.shape_cast %20 : vector<32x1xi1> to vector<32x1xi1>
    %231 = vector.broadcast %230 : vector<32x1xi1> to vector<32x128xi1>
    %232 = vector.broadcast %cst_104 : f32 to vector<32x128xf32>
    %233 = arith.select %231, %229, %232 : vector<32x128xi1>, vector<32x128xf32>
    %234 = arith.addf %228, %233 : vector<32x128xf32>
    %c31_i32_105 = arith.constant 31 : i32
    %235 = tpu.dynamic_rotate %226 by %c31_i32_105 dim 0 : vector<32x128xf32>, i32 -> vector<32x128xf32>
    %cst_106 = arith.constant 0.000000e+00 : f32
    %236 = vector.shape_cast %22 : vector<32x1xi1> to vector<32x1xi1>
    %237 = vector.broadcast %236 : vector<32x1xi1> to vector<32x128xi1>
    %238 = vector.broadcast %cst_106 : f32 to vector<32x128xf32>
    %239 = arith.select %237, %235, %238 : vector<32x128xi1>, vector<32x128xf32>
    %240 = arith.addf %234, %239 : vector<32x128xf32>
    %cst_107 = arith.constant 0.00999999977 : f32
    %241 = vector.broadcast %cst_107 : f32 to vector<32x128xf32>
    %242 = arith.mulf %241, %240 : vector<32x128xf32>
    %243 = arith.maximumf %240, %242 : vector<32x128xf32>
    %244 = arith.truncf %243 : vector<32x128xf32> to vector<32x128xbf16>
    %c7 = arith.constant 7 : index
    %c0_108 = arith.constant 0 : index
    %c0_109 = arith.constant 0 : index
    %245 = vector.load %arg4[%c7, %c0_108, %c0_109] : memref<8x384x128xbf16, #tpu.memory_space<vmem>>, vector<1x384x128xbf16>
    %246 = vector.shape_cast %245 : vector<1x384x128xbf16> to vector<384x128xbf16>
    %c7_110 = arith.constant 7 : index
    %c0_111 = arith.constant 0 : index
    %c0_112 = arith.constant 0 : index
    %247 = vector.load %arg5[%c7_110, %c0_111, %c0_112] : memref<8x1x128xf32, #tpu.memory_space<vmem>>, vector<1x1x128xf32>
    %248 = vector.shape_cast %247 : vector<1x1x128xf32> to vector<1x128xf32>
    %249 = vector.extract_strided_slice %246 {offsets = [128, 0], sizes = [128, 128], strides = [1, 1]} : vector<384x128xbf16> to vector<128x128xbf16>
    %cst_113 = arith.constant dense<0.000000e+00> : vector<32x128xf32>
    %250 = tpu.matmul %244, %249, %cst_113 {dimension_numbers = #tpu.dot_dimension_numbers<[1], [0], [0], [1], [0, 0, 1, 1], [], []>} : vector<32x128xbf16>, vector<128x128xbf16>, vector<32x128xf32> -> vector<32x128xf32>
    %251 = vector.extract_strided_slice %246 {offsets = [0, 0], sizes = [128, 128], strides = [1, 1]} : vector<384x128xbf16> to vector<128x128xbf16>
    %cst_114 = arith.constant dense<0.000000e+00> : vector<32x128xf32>
    %252 = tpu.matmul %244, %251, %cst_114 {dimension_numbers = #tpu.dot_dimension_numbers<[1], [0], [0], [1], [0, 0, 1, 1], [], []>} : vector<32x128xbf16>, vector<128x128xbf16>, vector<32x128xf32> -> vector<32x128xf32>
    %253 = vector.extract_strided_slice %246 {offsets = [256, 0], sizes = [128, 128], strides = [1, 1]} : vector<384x128xbf16> to vector<128x128xbf16>
    %cst_115 = arith.constant dense<0.000000e+00> : vector<32x128xf32>
    %254 = tpu.matmul %244, %253, %cst_115 {dimension_numbers = #tpu.dot_dimension_numbers<[1], [0], [0], [1], [0, 0, 1, 1], [], []>} : vector<32x128xbf16>, vector<128x128xbf16>, vector<32x128xf32> -> vector<32x128xf32>
    %255 = vector.broadcast %248 : vector<1x128xf32> to vector<32x128xf32>
    %256 = arith.addf %250, %255 : vector<32x128xf32>
    %c1_i32_116 = arith.constant 1 : i32
    %257 = tpu.dynamic_rotate %252 by %c1_i32_116 dim 0 : vector<32x128xf32>, i32 -> vector<32x128xf32>
    %cst_117 = arith.constant 0.000000e+00 : f32
    %258 = vector.shape_cast %20 : vector<32x1xi1> to vector<32x1xi1>
    %259 = vector.broadcast %258 : vector<32x1xi1> to vector<32x128xi1>
    %260 = vector.broadcast %cst_117 : f32 to vector<32x128xf32>
    %261 = arith.select %259, %257, %260 : vector<32x128xi1>, vector<32x128xf32>
    %262 = arith.addf %256, %261 : vector<32x128xf32>
    %c31_i32_118 = arith.constant 31 : i32
    %263 = tpu.dynamic_rotate %254 by %c31_i32_118 dim 0 : vector<32x128xf32>, i32 -> vector<32x128xf32>
    %cst_119 = arith.constant 0.000000e+00 : f32
    %264 = vector.shape_cast %22 : vector<32x1xi1> to vector<32x1xi1>
    %265 = vector.broadcast %264 : vector<32x1xi1> to vector<32x128xi1>
    %266 = vector.broadcast %cst_119 : f32 to vector<32x128xf32>
    %267 = arith.select %265, %263, %266 : vector<32x128xi1>, vector<32x128xf32>
    %268 = arith.addf %262, %267 : vector<32x128xf32>
    %cst_120 = arith.constant 0.00999999977 : f32
    %269 = vector.broadcast %cst_120 : f32 to vector<32x128xf32>
    %270 = arith.mulf %269, %268 : vector<32x128xf32>
    %271 = arith.maximumf %268, %270 : vector<32x128xf32>
    %272 = arith.truncf %271 : vector<32x128xf32> to vector<32x128xbf16>
    %c0_121 = arith.constant 0 : index
    %c0_122 = arith.constant 0 : index
    %273 = vector.load %arg6[%c0_121, %c0_122] : memref<384x256xbf16, #tpu.memory_space<vmem>>, vector<384x256xbf16>
    %c0_123 = arith.constant 0 : index
    %c0_124 = arith.constant 0 : index
    %274 = vector.load %arg7[%c0_123, %c0_124] : memref<1x256xf32, #tpu.memory_space<vmem>>, vector<1x256xf32>
    %275 = vector.extract_strided_slice %273 {offsets = [128, 0], sizes = [128, 256], strides = [1, 1]} : vector<384x256xbf16> to vector<128x256xbf16>
    %cst_125 = arith.constant dense<0.000000e+00> : vector<32x256xf32>
    %276 = tpu.matmul %272, %275, %cst_125 {dimension_numbers = #tpu.dot_dimension_numbers<[1], [0], [0], [1], [0, 0, 1, 1], [], []>} : vector<32x128xbf16>, vector<128x256xbf16>, vector<32x256xf32> -> vector<32x256xf32>
    %277 = vector.extract_strided_slice %273 {offsets = [0, 0], sizes = [128, 256], strides = [1, 1]} : vector<384x256xbf16> to vector<128x256xbf16>
    %cst_126 = arith.constant dense<0.000000e+00> : vector<32x256xf32>
    %278 = tpu.matmul %272, %277, %cst_126 {dimension_numbers = #tpu.dot_dimension_numbers<[1], [0], [0], [1], [0, 0, 1, 1], [], []>} : vector<32x128xbf16>, vector<128x256xbf16>, vector<32x256xf32> -> vector<32x256xf32>
    %279 = vector.extract_strided_slice %273 {offsets = [256, 0], sizes = [128, 256], strides = [1, 1]} : vector<384x256xbf16> to vector<128x256xbf16>
    %cst_127 = arith.constant dense<0.000000e+00> : vector<32x256xf32>
    %280 = tpu.matmul %272, %279, %cst_127 {dimension_numbers = #tpu.dot_dimension_numbers<[1], [0], [0], [1], [0, 0, 1, 1], [], []>} : vector<32x128xbf16>, vector<128x256xbf16>, vector<32x256xf32> -> vector<32x256xf32>
    %281 = vector.broadcast %274 : vector<1x256xf32> to vector<32x256xf32>
    %282 = arith.addf %276, %281 : vector<32x256xf32>
    %c1_i32_128 = arith.constant 1 : i32
    %283 = tpu.dynamic_rotate %278 by %c1_i32_128 dim 0 : vector<32x256xf32>, i32 -> vector<32x256xf32>
    %cst_129 = arith.constant 0.000000e+00 : f32
    %284 = vector.shape_cast %20 : vector<32x1xi1> to vector<32x1xi1>
    %285 = vector.broadcast %284 : vector<32x1xi1> to vector<32x256xi1>
    %286 = vector.broadcast %cst_129 : f32 to vector<32x256xf32>
    %287 = arith.select %285, %283, %286 : vector<32x256xi1>, vector<32x256xf32>
    %288 = arith.addf %282, %287 : vector<32x256xf32>
    %c31_i32_130 = arith.constant 31 : i32
    %289 = tpu.dynamic_rotate %280 by %c31_i32_130 dim 0 : vector<32x256xf32>, i32 -> vector<32x256xf32>
    %cst_131 = arith.constant 0.000000e+00 : f32
    %290 = vector.shape_cast %22 : vector<32x1xi1> to vector<32x1xi1>
    %291 = vector.broadcast %290 : vector<32x1xi1> to vector<32x256xi1>
    %292 = vector.broadcast %cst_131 : f32 to vector<32x256xf32>
    %293 = arith.select %291, %289, %292 : vector<32x256xi1>, vector<32x256xf32>
    %294 = arith.addf %288, %293 : vector<32x256xf32>
    %cst_132 = arith.constant 0.00999999977 : f32
    %295 = vector.broadcast %cst_132 : f32 to vector<32x256xf32>
    %296 = arith.mulf %295, %294 : vector<32x256xf32>
    %297 = arith.maximumf %294, %296 : vector<32x256xf32>
    %298 = arith.truncf %297 : vector<32x256xf32> to vector<32x256xbf16>
    %c0_133 = arith.constant 0 : index
    %c0_134 = arith.constant 0 : index
    %299 = vector.load %arg8[%c0_133, %c0_134] : memref<2x256xbf16, #tpu.memory_space<vmem>>, vector<2x256xbf16>
    %cst_135 = arith.constant dense<0.000000e+00> : vector<2x32xf32>
    %300 = tpu.matmul %299, %298, %cst_135 {dimension_numbers = #tpu.dot_dimension_numbers<[1], [1], [0], [0], [0, 0, 1, 0], [], []>} : vector<2x256xbf16>, vector<32x256xbf16>, vector<2x32xf32> -> vector<2x32xf32>
    %c0_136 = arith.constant 0 : index
    %c0_137 = arith.constant 0 : index
    %301 = vector.load %arg9[%c0_136, %c0_137] : memref<2x1xf32, #tpu.memory_space<vmem>>, vector<2x1xf32>
    %302 = vector.broadcast %301 : vector<2x1xf32> to vector<2x32xf32>
    %303 = arith.addf %300, %302 : vector<2x32xf32>
    %c0_138 = arith.constant 0 : index
    %c0_139 = arith.constant 0 : index
    %c0_140 = arith.constant 0 : index
    %304 = vector.load %arg10[%c0_138, %c0_139, %c0_140] : memref<1x2x32xf32, #tpu.memory_space<vmem>>, vector<1x2x32xf32>
    %305 = vector.shape_cast %304 : vector<1x2x32xf32> to vector<2x32xf32>
    %306 = vector.shape_cast %303 : vector<2x32xf32> to vector<1x2x32xf32>
    tpu.vector_store %arg10[%c0_138, %c0_139, %c0_140], %306 {strides = array<i32>} : memref<1x2x32xf32, #tpu.memory_space<vmem>>, vector<1x2x32xf32>,
    return
  }
  func.func @transform_0(%arg0: i32) -> (i32, i32, i32) {
    %c0_i32 = arith.constant 0 : i32
    %c0_i32_0 = arith.constant 0 : i32
    %c0_i32_1 = arith.constant 0 : i32
    return %arg0, %c0_i32, %c0_i32_0 : i32, i32, i32
  }
  func.func @transform_1(%arg0: i32) -> (i32, i32) {
    %c0_i32 = arith.constant 0 : i32
    %c0_i32_0 = arith.constant 0 : i32
    %c0_i32_1 = arith.constant 0 : i32
    return %c0_i32, %c0_i32_0 : i32, i32
  }
  func.func @transform_2(%arg0: i32) -> (i32, i32) {
    %c0_i32 = arith.constant 0 : i32
    %c0_i32_0 = arith.constant 0 : i32
    %c0_i32_1 = arith.constant 0 : i32
    return %c0_i32, %c0_i32_0 : i32, i32
  }
  func.func @transform_3(%arg0: i32) -> (i32, i32, i32) {
    %c0_i32 = arith.constant 0 : i32
    %c0_i32_0 = arith.constant 0 : i32
    %c0_i32_1 = arith.constant 0 : i32
    %c0_i32_2 = arith.constant 0 : i32
    return %c0_i32, %c0_i32_0, %c0_i32_1 : i32, i32, i32
  }
  func.func @transform_4(%arg0: i32) -> (i32, i32, i32) {
    %c0_i32 = arith.constant 0 : i32
    %c0_i32_0 = arith.constant 0 : i32
    %c0_i32_1 = arith.constant 0 : i32
    %c0_i32_2 = arith.constant 0 : i32
    return %c0_i32, %c0_i32_0, %c0_i32_1 : i32, i32, i32
  }
  func.func @transform_5(%arg0: i32) -> (i32, i32) {
    %c0_i32 = arith.constant 0 : i32
    %c0_i32_0 = arith.constant 0 : i32
    %c0_i32_1 = arith.constant 0 : i32
    return %c0_i32, %c0_i32_0 : i32, i32
  }
  func.func @transform_6(%arg0: i32) -> (i32, i32) {
    %c0_i32 = arith.constant 0 : i32
    %c0_i32_0 = arith.constant 0 : i32
    %c0_i32_1 = arith.constant 0 : i32
    return %c0_i32, %c0_i32_0 : i32, i32
  }
  func.func @transform_7(%arg0: i32) -> (i32, i32) {
    %c0_i32 = arith.constant 0 : i32
    %c0_i32_0 = arith.constant 0 : i32
    %c0_i32_1 = arith.constant 0 : i32
    return %c0_i32, %c0_i32_0 : i32, i32
  }
  func.func @transform_8(%arg0: i32) -> (i32, i32) {
    %c0_i32 = arith.constant 0 : i32
    %c0_i32_0 = arith.constant 0 : i32
    %c0_i32_1 = arith.constant 0 : i32
    return %c0_i32, %c0_i32_0 : i32, i32
  }
  func.func @transform_9(%arg0: i32) -> (i32, i32, i32) {
    %c0_i32 = arith.constant 0 : i32
    %c0_i32_0 = arith.constant 0 : i32
    %c0_i32_1 = arith.constant 0 : i32
    return %arg0, %c0_i32, %c0_i32_0 : i32, i32, i32
  }
}

</mosaic_0001>

<llo_original>
// kernel: pitch_predictor.1
$region0: #{pitch_predictor.1}
  #allocation0 [shape = 'u32[]', space=smem, size = 0x4, offset = 0x4, fixed_abs, tag = 'smem constant byte address 0x4 - core index']
  #allocation1 [shape = 'u32[144,128]{1,0:T(1,128)}', space=vmem, size = 0x12000, scoped, tag = 'internal scratch']
  %s0 = inlined_call_operand.vmem [shape: bf16[1,32,64], index: 0, kind: input, shape index: {}]
  %s1 = inlined_call_operand.vmem [shape: bf16[192,128], index: 1, kind: input, shape index: {}]
  %s2 = inlined_call_operand.vmem [shape: f32[1,128], index: 2, kind: input, shape index: {}]
  %s3 = inlined_call_operand.hbm [shape: bf16[8,384,128], index: 3, kind: input, shape index: {}]
  %s4 = inlined_call_operand.vmem [shape: f32[8,1,128], index: 4, kind: input, shape index: {}]
  %s5 = inlined_call_operand.vmem [shape: bf16[384,256], index: 5, kind: input, shape index: {}]
  %s6 = inlined_call_operand.vmem [shape: f32[1,256], index: 6, kind: input, shape index: {}]
  %s7 = inlined_call_operand.vmem [shape: bf16[2,256], index: 7, kind: input, shape index: {}]
  %s8 = inlined_call_operand.vmem [shape: f32[2,1], index: 8, kind: input, shape index: {}]
  %s9 = inlined_call_operand.vmem [shape: f32[1,2,32], index: 9, kind: output, shape index: {}]
  %s10 = sld [smem:[#allocation0]]
  $region50: #{pitch_predictor.1} parent=0
    _
  %s12 = ssub.s32 1, %s10
  %s13 = scalar_select 0, %s12, %s10
  $region1: #{pitch_predictor.1} parent=0
    #allocation2 [shape = 'u8[786432]{0}', space=vmem, size = 0xc0000, scoped, tag = 'input window, operand 3, single buffered']
    #allocation3 [shape = 's32[1]{0}', space=sflag, size = 0x4, scoped, tag = 'scoped memory for pitch_predictor.1']
    %14 = vsyncpa [#allocation3], 0
    // Predicated region
    $region2: #{pitch_predictor.1} parent=1 // pred_check
      _
    $region3: #{pitch_predictor.1} parent=1 // pred_check_branch
      %16 = sbr.rel (0) target = $region5
    $region4: #{pitch_predictor.1} parent=1 // pred_region
      _
    $region5: #{pitch_predictor.1} parent=1 // pred_fallthru
      _
    // Predicated region
    $region6: #{pitch_predictor.1} parent=1 // pred_check
      _
    $region7: #{pitch_predictor.1} parent=1 // pred_check_branch
      %18 = sbr.rel (0) target = $region9
    $region8: #{pitch_predictor.1} parent=1 // pred_region
      _
    $region9: #{pitch_predictor.1} parent=1 // pred_fallthru
      _
    // Predicated region
    $region10: #{pitch_predictor.1} parent=1 // pred_check
      _
    $region11: #{pitch_predictor.1} parent=1 // pred_check_branch
      %20 = sbr.rel (0) target = $region13
    $region12: #{pitch_predictor.1} parent=1 // pred_region
      _
    $region13: #{pitch_predictor.1} parent=1 // pred_fallthru
      _
    // Predicated region
    $region14: #{pitch_predictor.1} parent=1 // pred_check
      _
    $region15: #{pitch_predictor.1} parent=1 // pred_check_branch
      %22 = sbr.rel (0) target = $region17
    $region16: #{pitch_predictor.1} parent=1 // pred_region
      %s24 = ssub.s32 24576, 24576
      %25 = vsyncadd [#allocation3], %s24
      %s26 = sshll.u32 [#allocation2], 4
      %s27 = int_to_ptr.vmem [resolvable:$true] %s26
      %32 = dma.hbm_to_vmem [thread:$0]  %s3, 24576, %s27, [#allocation3], 64, 64, 4
    $region17: #{pitch_predictor.1} parent=1 // pred_fallthru
      _
    // Predicated region
    $region18: #{pitch_predictor.1} parent=1 // pred_check
      _
    $region19: #{pitch_predictor.1} parent=1 // pred_check_branch
      %34 = sbr.rel (0) target = $region21
    $region20: #{pitch_predictor.1} parent=1 // pred_region
      _
    $region21: #{pitch_predictor.1} parent=1 // pred_fallthru
      _
    // Predicated region
    $region22: #{pitch_predictor.1} parent=1 // pred_check
      _
    $region23: #{pitch_predictor.1} parent=1 // pred_check_branch
      %36 = sbr.rel (0) target = $region25
    $region24: #{pitch_predictor.1} parent=1 // pred_region
      _
    $region25: #{pitch_predictor.1} parent=1 // pred_fallthru
      _
    // Predicated region
    $region26: #{pitch_predictor.1} parent=1 // pred_check
      _
    $region27: #{pitch_predictor.1} parent=1 // pred_check_branch
      %38 = sbr.rel (0) target = $region29
    $region28: #{pitch_predictor.1} parent=1 // pred_region
      _
    $region29: #{pitch_predictor.1} parent=1 // pred_fallthru
      _
    // Predicated region
    $region30: #{pitch_predictor.1} parent=1 // pred_check
      _
    $region31: #{pitch_predictor.1} parent=1 // pred_check_branch
      %40 = sbr.rel (0) target = $region33
    $region32: #{pitch_predictor.1} parent=1 // pred_region
      _
    $region33: #{pitch_predictor.1} parent=1 // pred_fallthru
      _
    // Predicated region
    $region34: #{pitch_predictor.1} parent=1 // pred_check
      _
    $region35: #{pitch_predictor.1} parent=1 // pred_check_branch
      %42 = sbr.rel (0) target = $region37
    $region36: #{pitch_predictor.1} parent=1 // pred_region
      _
    $region37: #{pitch_predictor.1} parent=1 // pred_fallthru
      _
    // Predicated region
    $region38: #{pitch_predictor.1} parent=1 // pred_check
      _
    $region39: #{pitch_predictor.1} parent=1 // pred_check_branch
      %44 = sbr.rel (0) target = $region41
    $region40: #{pitch_predictor.1} parent=1 // pred_region
      %45 = dma.done [#allocation3], 24576
    $region41: #{pitch_predictor.1} parent=1 // pred_fallthru
      _
    %v47 = vld [vmem:[%s0] sm:$0xf]
    %v48 = vld [vmem:[%s0 + $0x4] sm:$0xf]
    %v49 = vld [vmem:[%s0 + $0x8] sm:$0xf]
    %v50 = vld [vmem:[%s0 + $0xc] sm:$0xf]
    %v51 = vlaneseq
    %v52 = vshrl.u32 %v51, 7
    %v53 = vadd.s32 %v52, 8
    %v54 = vadd.s32 %v52, 16
    %v55 = vadd.s32 %v52, 24
    %vm56 = vcmp.lt.s32.totalorder %v52, 0
    %v57 = vsub.s32 0, %v52
    %v58 = vsel %vm56, %v57, %v52
    %v59 = vshrl.u32 %v58, 4
    %v60 = vand.u32 %v58, 15
    %v61 = vsub.s32 0, %v60
    %v62 = vsel %vm56, %v61, %v60
    %vm63 = vcmp.lt.s32.totalorder %v53, 0
    %v64 = vsub.s32 0, %v53
    %v65 = vsel %vm63, %v64, %v53
    %v66 = vshrl.u32 %v65, 4
    %v67 = vand.u32 %v65, 15
    %v68 = vsub.s32 0, %v67
    %v69 = vsel %vm63, %v68, %v67
    %vm70 = vcmp.lt.s32.totalorder %v54, 0
    %v71 = vsub.s32 0, %v54
    %v72 = vsel %vm70, %v71, %v54
    %v73 = vshrl.u32 %v72, 4
    %v74 = vand.u32 %v72, 15
    %v75 = vsub.s32 0, %v74
    %v76 = vsel %vm70, %v75, %v74
    %vm77 = vcmp.lt.s32.totalorder %v55, 0
    %v78 = vsub.s32 0, %v55
    %v79 = vsel %vm77, %v78, %v55
    %v80 = vshrl.u32 %v79, 4
    %v81 = vand.u32 %v79, 15
    %v82 = vsub.s32 0, %v81
    %v83 = vsel %vm77, %v82, %v81
    %vm84 = vcmp.ne.s32.totalorder %v62, 0
    %vm85 = vcmp.ne.s32.totalorder %v69, 0
    %vm86 = vcmp.ne.s32.totalorder %v76, 0
    %vm87 = vcmp.ne.s32.totalorder %v83, 0
    %vm88 = vcmp.lt.s32.totalorder %v62, 0
    %vm89 = vcmp.lt.s32.totalorder %v69, 0
    %vm90 = vcmp.lt.s32.totalorder %v76, 0
    %vm91 = vcmp.lt.s32.totalorder %v83, 0
    %vm92 = vmand %vm88, %vm84
    %vm93 = vmand %vm89, %vm85
    %vm94 = vmand %vm90, %vm86
    %vm95 = vmand %vm91, %vm87
    %v96 = vadd.s32 %v62, 16
    %v97 = vadd.s32 %v69, 16
    %v98 = vadd.s32 %v76, 16
    %v99 = vadd.s32 %v83, 16
    %v100 = vsel %vm92, %v96, %v62
    %v101 = vsel %vm93, %v97, %v69
    %v102 = vsel %vm94, %v98, %v76
    %v103 = vsel %vm95, %v99, %v83
    %vm104 = vcmp.gt.s32.totalorder %v100, 0
    %vm105 = vcmp.gt.s32.totalorder %v101, 0
    %vm106 = vcmp.gt.s32.totalorder %v102, 0
    %vm107 = vcmp.gt.s32.totalorder %v103, 0
    %vm108 = vcmp.lt.s32.totalorder %v100, 15
    %vm109 = vcmp.lt.s32.totalorder %v101, 15
    %vm110 = vcmp.lt.s32.totalorder %v102, 15
    %vm111 = vcmp.lt.s32.totalorder %v103, 15
    %v112 = vld [vmem:[%s1] sm:$0xf]
    %v113 = vld [vmem:[%s1 + $0x4] sm:$0xf]
    %v114 = vld [vmem:[%s1 + $0x8] sm:$0xf]
    %v115 = vld [vmem:[%s1 + $0xc] sm:$0xf]
    %v116 = vld [vmem:[%s1 + $0x10] sm:$0xf]
    %v117 = vld [vmem:[%s1 + $0x14] sm:$0xf]
    %v118 = vld [vmem:[%s1 + $0x18] sm:$0xf]
    %v119 = vld [vmem:[%s1 + $0x1c] sm:$0xf]
    %v120 = vld [vmem:[%s1 + $0x20] sm:$0xf]
    %v121 = vld [vmem:[%s1 + $0x24] sm:$0xf]
    %v122 = vld [vmem:[%s1 + $0x28] sm:$0xf]
    %v123 = vld [vmem:[%s1 + $0x2c] sm:$0xf]
    %v124 = vld [vmem:[%s1 + $0x30] sm:$0xf]
    %v125 = vld [vmem:[%s1 + $0x34] sm:$0xf]
    %v126 = vld [vmem:[%s1 + $0x38] sm:$0xf]
    %v127 = vld [vmem:[%s1 + $0x3c] sm:$0xf]
    %v128 = vld [vmem:[%s1 + $0x40] sm:$0xf]
    %v129 = vld [vmem:[%s1 + $0x44] sm:$0xf]
    %v130 = vld [vmem:[%s1 + $0x48] sm:$0xf]
    %v131 = vld [vmem:[%s1 + $0x4c] sm:$0xf]
    %v132 = vld [vmem:[%s1 + $0x50] sm:$0xf]
    %v133 = vld [vmem:[%s1 + $0x54] sm:$0xf]
    %v134 = vld [vmem:[%s1 + $0x58] sm:$0xf]
    %v135 = vld [vmem:[%s1 + $0x5c] sm:$0xf]
    %v136 = vld [vmem:[%s2] sm:$0x1]
    %v141 = vunpack.c.l.b16 %v47
    %v142 = vunpack.c.l.b16 %v48
    %v143 = vunpack.c.l.b16 %v49
    %v144 = vunpack.c.l.b16 %v50
    %v145 = vpack.c.b16 %v142, %v141
    %v146 = vpack.c.b16 %v144, %v143
    %v155 = vunpack.c.l.b16 %v112
    %v156 = vunpack.c.l.b16 %v113
    %v157 = vunpack.c.l.b16 %v114
    %v158 = vunpack.c.l.b16 %v115
    %v159 = vunpack.c.l.b16 %v116
    %v160 = vunpack.c.l.b16 %v117
    %v161 = vunpack.c.l.b16 %v118
    %v162 = vunpack.c.l.b16 %v119
    %v163 = vpack.c.b16 %v156, %v155
    %v164 = vpack.c.b16 %v158, %v157
    %v165 = vpack.c.b16 %v160, %v159
    %v166 = vpack.c.b16 %v162, %v161
    %vm171 = vcmask 523264
    %v173 = vsel %vm171, %v145, 0
    %v176 = vsel %vm171, %v146, 0
    %178 = vmatprep.subr.bf16.mxu0 0
    %179 = vmatpush1.bf16.msra.mxu0 %v163
    %180 = vmatprep.subr.bf16.mxu0 0
    %181 = vmatpush1.bf16.msra.mxu0 %v164
    %182 = vmatprep.subr.bf16.mxu0 0
    %183 = vmatpush1.bf16.msra.mxu0 %v165
    %184 = vmatprep.subr.bf16.mxu0 0
    %185 = vmatpush1.bf16.msra.mxu0 %v166
    %186 = vmatprep.subr.bf16.mxu0 0
    %187 = vmatpush1.bf16.msra.mxu0 0
    %188 = vmatprep.subr.bf16.mxu0 0
    %189 = vmatpush1.bf16.msra.mxu0 0
    %190 = vmatprep.subr.bf16.mxu0 0
    %191 = vmatpush1.bf16.msra.mxu0 0
    %192 = vmatprep.subr.bf16.mxu0 0
    %193 = vmatpush1.bf16.msra.mxu0 0
    %194 = vmatprep.subr.bf16.mxu0 0
    %195 = vmatpush1.bf16.msra.mxu0 0
    %196 = vmatprep.subr.bf16.mxu0 0
    %197 = vmatpush1.bf16.msra.mxu0 0
    %198 = vmatprep.subr.bf16.mxu0 0
    %199 = vmatpush1.bf16.msra.mxu0 0
    %200 = vmatprep.subr.bf16.mxu0 0
    %201 = vmatpush1.bf16.msra.mxu0 0
    %202 = vmatprep.subr.bf16.mxu0 0
    %203 = vmatpush1.bf16.msra.mxu0 0
    %204 = vmatprep.subr.bf16.mxu0 0
    %205 = vmatpush1.bf16.msra.mxu0 0
    %206 = vmatprep.subr.bf16.mxu0 0
    %207 = vmatpush1.bf16.msra.mxu0 0
    %208 = vmatprep.subr.bf16.mxu0 0
    %209 = vmatpush1.bf16.msra.mxu0 0
    %210 = vmatprep.mubr.bf16.mxu0 0
    %211 = vmatmul.mubr.bf16.gmra.mrb[0].mxu0 %v173
    %v212 = vpop.f32.mrb[0].mxu0
    %v213 = vadd.f32 0.0, %v212
    %v214 = vpop.f32.mrb[0].mxu0
    %v215 = vpop.f32.mrb[0].mxu0
    %v216 = vadd.f32 0.0, %v215
    %v217 = vpop.f32.mrb[0].mxu0
    %218 = vmatprep.mubr.bf16.mxu0 0
    %219 = vmatmul.mubr.bf16.gmra.mrb[0].mxu0 %v176
    %v220 = vpop.f32.mrb[0].mxu0
    %v221 = vadd.f32 0.0, %v220
    %v222 = vpop.f32.mrb[0].mxu0
    %v223 = vpop.f32.mrb[0].mxu0
    %v224 = vadd.f32 0.0, %v223
    %v225 = vpop.f32.mrb[0].mxu0
    %226 = vdwg.mxu0
    %v235 = vunpack.c.l.b16 %v128
    %v236 = vunpack.c.l.b16 %v129
    %v237 = vunpack.c.l.b16 %v130
    %v238 = vunpack.c.l.b16 %v131
    %v239 = vunpack.c.l.b16 %v132
    %v240 = vunpack.c.l.b16 %v133
    %v241 = vunpack.c.l.b16 %v134
    %v242 = vunpack.c.l.b16 %v135
    %v243 = vpack.c.b16 %v236, %v235
    %v244 = vpack.c.b16 %v238, %v237
    %v245 = vpack.c.b16 %v240, %v239
    %v246 = vpack.c.b16 %v242, %v241
    %251 = vmatprep.subr.bf16.mxu0 0
    %252 = vmatpush1.bf16.msra.mxu0 %v243
    %253 = vmatprep.subr.bf16.mxu0 0
    %254 = vmatpush1.bf16.msra.mxu0 %v244
    %255 = vmatprep.subr.bf16.mxu0 0
    %256 = vmatpush1.bf16.msra.mxu0 %v245
    %257 = vmatprep.subr.bf16.mxu0 0
    %258 = vmatpush1.bf16.msra.mxu0 %v246
    %259 = vmatprep.subr.bf16.mxu0 0
    %260 = vmatpush1.bf16.msra.mxu0 0
    %261 = vmatprep.subr.bf16.mxu0 0
    %262 = vmatpush1.bf16.msra.mxu0 0
    %263 = vmatprep.subr.bf16.mxu0 0
    %264 = vmatpush1.bf16.msra.mxu0 0
    %265 = vmatprep.subr.bf16.mxu0 0
    %266 = vmatpush1.bf16.msra.mxu0 0
    %267 = vmatprep.subr.bf16.mxu0 0
    %268 = vmatpush1.bf16.msra.mxu0 0
    %269 = vmatprep.subr.bf16.mxu0 0
    %270 = vmatpush1.bf16.msra.mxu0 0
    %271 = vmatprep.subr.bf16.mxu0 0
    %272 = vmatpush1.bf16.msra.mxu0 0
    %273 = vmatprep.subr.bf16.mxu0 0
    %274 = vmatpush1.bf16.msra.mxu0 0
    %275 = vmatprep.subr.bf16.mxu0 0
    %276 = vmatpush1.bf16.msra.mxu0 0
    %277 = vmatprep.subr.bf16.mxu0 0
    %278 = vmatpush1.bf16.msra.mxu0 0
    %279 = vmatprep.subr.bf16.mxu0 0
    %280 = vmatpush1.bf16.msra.mxu0 0
    %281 = vmatprep.subr.bf16.mxu0 0
    %282 = vmatpush1.bf16.msra.mxu0 0
    %283 = vmatprep.mubr.bf16.mxu0 0
    %284 = vmatmul.mubr.bf16.gmra.mrb[0].mxu0 %v173
    %v285 = vpop.f32.mrb[0].mxu0
    %v286 = vadd.f32 0.0, %v285
    %v287 = vpop.f32.mrb[0].mxu0
    %v288 = vpop.f32.mrb[0].mxu0
    %v289 = vadd.f32 0.0, %v288
    %v290 = vpop.f32.mrb[0].mxu0
    %291 = vmatprep.mubr.bf16.mxu0 0
    %292 = vmatmul.mubr.bf16.gmra.mrb[0].mxu0 %v176
    %v293 = vpop.f32.mrb[0].mxu0
    %v294 = vadd.f32 0.0, %v293
    %v295 = vpop.f32.mrb[0].mxu0
    %v296 = vpop.f32.mrb[0].mxu0
    %v297 = vadd.f32 0.0, %v296
    %v298 = vpop.f32.mrb[0].mxu0
    %299 = vdwg.mxu0
    %v301 = vlaneseq
    %v302 = vshrl.u32 %v301, 7
    %v303 = vsub.s32 0, %v302
    %v304 = vrot.slane %v136, %v303
    %v314 = vunpack.c.l.b16 %v120
    %v315 = vunpack.c.l.b16 %v121
    %v316 = vunpack.c.l.b16 %v122
    %v317 = vunpack.c.l.b16 %v123
    %v318 = vunpack.c.l.b16 %v124
    %v319 = vunpack.c.l.b16 %v125
    %v320 = vunpack.c.l.b16 %v126
    %v321 = vunpack.c.l.b16 %v127
    %v322 = vpack.c.b16 %v315, %v314
    %v323 = vpack.c.b16 %v317, %v316
    %v324 = vpack.c.b16 %v319, %v318
    %v325 = vpack.c.b16 %v321, %v320
    %330 = vmatprep.subr.bf16.mxu0 0
    %331 = vmatpush1.bf16.msra.mxu0 %v322
    %332 = vmatprep.subr.bf16.mxu0 0
    %333 = vmatpush1.bf16.msra.mxu0 %v323
    %334 = vmatprep.subr.bf16.mxu0 0
    %335 = vmatpush1.bf16.msra.mxu0 %v324
    %336 = vmatprep.subr.bf16.mxu0 0
    %337 = vmatpush1.bf16.msra.mxu0 %v325
    %338 = vmatprep.subr.bf16.mxu0 0
    %339 = vmatpush1.bf16.msra.mxu0 0
    %340 = vmatprep.subr.bf16.mxu0 0
    %341 = vmatpush1.bf16.msra.mxu0 0
    %342 = vmatprep.subr.bf16.mxu0 0
    %343 = vmatpush1.bf16.msra.mxu0 0
    %344 = vmatprep.subr.bf16.mxu0 0
    %345 = vmatpush1.bf16.msra.mxu0 0
    %346 = vmatprep.subr.bf16.mxu0 0
    %347 = vmatpush1.bf16.msra.mxu0 0
    %348 = vmatprep.subr.bf16.mxu0 0
    %349 = vmatpush1.bf16.msra.mxu0 0
    %350 = vmatprep.subr.bf16.mxu0 0
    %351 = vmatpush1.bf16.msra.mxu0 0
    %352 = vmatprep.subr.bf16.mxu0 0
    %353 = vmatpush1.bf16.msra.mxu0 0
    %354 = vmatprep.subr.bf16.mxu0 0
    %355 = vmatpush1.bf16.msra.mxu0 0
    %356 = vmatprep.subr.bf16.mxu0 0
    %357 = vmatpush1.bf16.msra.mxu0 0
    %358 = vmatprep.subr.bf16.mxu0 0
    %359 = vmatpush1.bf16.msra.mxu0 0
    %360 = vmatprep.subr.bf16.mxu0 0
    %361 = vmatpush1.bf16.msra.mxu0 0
    %362 = vmatprep.mubr.bf16.mxu0 0
    %363 = vmatmul.mubr.bf16.gmra.mrb[0].mxu0 %v173
    %v364 = vpop.f32.mrb[0].mxu0
    %v365 = vadd.f32 %v304, %v364
    %v366 = vpop.f32.mrb[0].mxu0
    %v367 = vpop.f32.mrb[0].mxu0
    %v368 = vadd.f32 %v304, %v367
    %v369 = vpop.f32.mrb[0].mxu0
    %370 = vmatprep.mubr.bf16.mxu0 0
    %371 = vmatmul.mubr.bf16.gmra.mrb[0].mxu0 %v176
    %v372 = vpop.f32.mrb[0].mxu0
    %v373 = vadd.f32 %v304, %v372
    %v374 = vpop.f32.mrb[0].mxu0
    %v375 = vpop.f32.mrb[0].mxu0
    %v376 = vadd.f32 %v304, %v375
    %v377 = vpop.f32.mrb[0].mxu0
    %378 = vdwg.mxu0
    %v379 = vrot.slane %v213, 7
    %v380 = vrot.slane %v216, 7
    %v381 = vrot.slane %v221, 7
    %v382 = vrot.slane %v224, 7
    %vm383 = vcmp.lt.s32.totalorder %v52, 1
    %v384 = vsel %vm383, %v381, %v382
    %v385 = vsel %vm383, %v380, %v381
    %v386 = vsel %vm383, %v379, %v380
    %v387 = vsel %vm383, %v382, %v379
    %v388 = vsel %vm104, 1, 0
    %v389 = vsel %vm105, 1, 0
    %v390 = vsel %vm106, 1, 0
    %v391 = vsel %vm107, 1, 0
    %vm392 = vcmp.eq.s32.totalorder %v388, 1
    %vm393 = vcmp.eq.s32.totalorder %v389, 1
    %vm394 = vcmp.eq.s32.totalorder %v390, 1
    %vm395 = vcmp.eq.s32.totalorder %v391, 1
    %v396 = vsel %vm392, %v387, 0.0
    %v397 = vsel %vm393, %v386, 0.0
    %v398 = vsel %vm394, %v385, 0.0
    %v399 = vsel %vm395, %v384, 0.0
    %v400 = vadd.f32 %v365, %v396
    %v401 = vadd.f32 %v368, %v397
    %v402 = vadd.f32 %v373, %v398
    %v403 = vadd.f32 %v376, %v399
    %v404 = vrot.slane %v286, 1
    %v405 = vrot.slane %v289, 1
    %v406 = vrot.slane %v294, 1
    %v407 = vrot.slane %v297, 1
    %vm408 = vcmp.lt.s32.totalorder %v52, 7
    %v409 = vsel %vm408, %v406, %v407
    %v410 = vsel %vm408, %v405, %v406
    %v411 = vsel %vm408, %v404, %v405
    %v412 = vsel %vm408, %v407, %v404
    %v413 = vsel %vm108, 1, 0
    %v414 = vsel %vm109, 1, 0
    %v415 = vsel %vm110, 1, 0
    %v416 = vsel %vm111, 1, 0
    %vm417 = vcmp.eq.s32.totalorder %v413, 1
    %vm418 = vcmp.eq.s32.totalorder %v414, 1
    %vm419 = vcmp.eq.s32.totalorder %v415, 1
    %vm420 = vcmp.eq.s32.totalorder %v416, 1
    %v421 = vsel %vm417, %v411, 0.0
    %v422 = vsel %vm418, %v410, 0.0
    %v423 = vsel %vm419, %v409, 0.0
    %v424 = vsel %vm420, %v412, 0.0
    %v425 = vadd.f32 %v400, %v421
    %v426 = vadd.f32 %v401, %v422
    %v427 = vadd.f32 %v402, %v423
    %v428 = vadd.f32 %v403, %v424
    %v429 = vmul.f32 %v425, 0.01
    %v430 = vmul.f32 %v426, 0.01
    %v431 = vmul.f32 %v427, 0.01
    %v432 = vmul.f32 %v428, 0.01
    %v433 = vmax.f32 %v425, %v429
    %v434 = vmax.f32 %v426, %v430
    %v435 = vmax.f32 %v427, %v431
    %v436 = vmax.f32 %v428, %v432
    %v437 = vpack.c.bf16 %v434, %v433
    %v438 = vpack.c.bf16 %v436, %v435
    %v439 = vld [vmem:[#allocation2] sm:$0xf]
    %v440 = vld [vmem:[#allocation2 + $0x4] sm:$0xf]
    %v441 = vld [vmem:[#allocation2 + $0x8] sm:$0xf]
    %v442 = vld [vmem:[#allocation2 + $0xc] sm:$0xf]
    %v443 = vld [vmem:[#allocation2 + $0x10] sm:$0xf]
    %v444 = vld [vmem:[#allocation2 + $0x14] sm:$0xf]
    %v445 = vld [vmem:[#allocation2 + $0x18] sm:$0xf]
    %v446 = vld [vmem:[#allocation2 + $0x1c] sm:$0xf]
    %v447 = vld [vmem:[#allocation2 + $0x20] sm:$0xf]
    %v448 = vld [vmem:[#allocation2 + $0x24] sm:$0xf]
    %v449 = vld [vmem:[#allocation2 + $0x28] sm:$0xf]
    %v450 = vld [vmem:[#allocation2 + $0x2c] sm:$0xf]
    %v451 = vld [vmem:[#allocation2 + $0x30] sm:$0xf]
    %v452 = vld [vmem:[#allocation2 + $0x34] sm:$0xf]
    %v453 = vld [vmem:[#allocation2 + $0x38] sm:$0xf]
    %v454 = vld [vmem:[#allocation2 + $0x3c] sm:$0xf]
    %v455 = vld [vmem:[#allocation2 + $0x40] sm:$0xf]
    %v456 = vld [vmem:[#allocation2 + $0x44] sm:$0xf]
    %v457 = vld [vmem:[#allocation2 + $0x48] sm:$0xf]
    %v458 = vld [vmem:[#allocation2 + $0x4c] sm:$0xf]
    %v459 = vld [vmem:[#allocation2 + $0x50] sm:$0xf]
    %v460 = vld [vmem:[#allocation2 + $0x54] sm:$0xf]
    %v461 = vld [vmem:[#allocation2 + $0x58] sm:$0xf]
    %v462 = vld [vmem:[#allocation2 + $0x5c] sm:$0xf]
    %v463 = vld [vmem:[#allocation2 + $0x60] sm:$0xf]
    %v464 = vld [vmem:[#allocation2 + $0x64] sm:$0xf]
    %v465 = vld [vmem:[#allocation2 + $0x68] sm:$0xf]
    %v466 = vld [vmem:[#allocation2 + $0x6c] sm:$0xf]
    %v467 = vld [vmem:[#allocation2 + $0x70] sm:$0xf]
    %v468 = vld [vmem:[#allocation2 + $0x74] sm:$0xf]
    %v469 = vld [vmem:[#allocation2 + $0x78] sm:$0xf]
    %v470 = vld [vmem:[#allocation2 + $0x7c] sm:$0xf]
    %v471 = vld [vmem:[#allocation2 + $0x80] sm:$0xf]
    %v472 = vld [vmem:[#allocation2 + $0x84] sm:$0xf]
    %v473 = vld [vmem:[#allocation2 + $0x88] sm:$0xf]
    %v474 = vld [vmem:[#allocation2 + $0x8c] sm:$0xf]
    %v475 = vld [vmem:[#allocation2 + $0x90] sm:$0xf]
    %v476 = vld [vmem:[#allocation2 + $0x94] sm:$0xf]
    %v477 = vld [vmem:[#allocation2 + $0x98] sm:$0xf]
    %v478 = vld [vmem:[#allocation2 + $0x9c] sm:$0xf]
    %v479 = vld [vmem:[#allocation2 + $0xa0] sm:$0xf]
    %v480 = vld [vmem:[#allocation2 + $0xa4] sm:$0xf]
    %v481 = vld [vmem:[#allocation2 + $0xa8] sm:$0xf]
    %v482 = vld [vmem:[#allocation2 + $0xac] sm:$0xf]
    %v483 = vld [vmem:[#allocation2 + $0xb0] sm:$0xf]
    %v484 = vld [vmem:[#allocation2 + $0xb4] sm:$0xf]
    %v485 = vld [vmem:[#allocation2 + $0xb8] sm:$0xf]
    %v486 = vld [vmem:[#allocation2 + $0xbc] sm:$0xf]
    %v487 = vld [vmem:[%s4] sm:$0x1]
    %v504 = vunpack.c.l.b16 %v439
    %v505 = vunpack.c.l.b16 %v440
    %v506 = vunpack.c.l.b16 %v441
    %v507 = vunpack.c.l.b16 %v442
    %v508 = vunpack.c.l.b16 %v443
    %v509 = vunpack.c.l.b16 %v444
    %v510 = vunpack.c.l.b16 %v445
    %v511 = vunpack.c.l.b16 %v446
    %v512 = vunpack.c.l.b16 %v447
    %v513 = vunpack.c.l.b16 %v448
    %v514 = vunpack.c.l.b16 %v449
    %v515 = vunpack.c.l.b16 %v450
    %v516 = vunpack.c.l.b16 %v451
    %v517 = vunpack.c.l.b16 %v452
    %v518 = vunpack.c.l.b16 %v453
    %v519 = vunpack.c.l.b16 %v454
    %v520 = vpack.c.b16 %v505, %v504
    %v521 = vpack.c.b16 %v507, %v506
    %v522 = vpack.c.b16 %v509, %v508
    %v523 = vpack.c.b16 %v511, %v510
    %v524 = vpack.c.b16 %v513, %v512
    %v525 = vpack.c.b16 %v515, %v514
    %v526 = vpack.c.b16 %v517, %v516
    %v527 = vpack.c.b16 %v519, %v518
    %536 = vmatprep.subr.bf16.mxu0 0
    %537 = vmatpush1.bf16.msra.mxu0 %v520
    %538 = vmatprep.subr.bf16.mxu0 0
    %539 = vmatpush1.bf16.msra.mxu0 %v521
    %540 = vmatprep.subr.bf16.mxu0 0
    %541 = vmatpush1.bf16.msra.mxu0 %v522
    %542 = vmatprep.subr.bf16.mxu0 0
    %543 = vmatpush1.bf16.msra.mxu0 %v523
    %544 = vmatprep.subr.bf16.mxu0 0
    %545 = vmatpush1.bf16.msra.mxu0 %v524
    %546 = vmatprep.subr.bf16.mxu0 0
    %547 = vmatpush1.bf16.msra.mxu0 %v525
    %548 = vmatprep.subr.bf16.mxu0 0
    %549 = vmatpush1.bf16.msra.mxu0 %v526
    %550 = vmatprep.subr.bf16.mxu0 0
    %551 = vmatpush1.bf16.msra.mxu0 %v527
    %552 = vmatprep.subr.bf16.mxu0 0
    %553 = vmatpush1.bf16.msra.mxu0 0
    %554 = vmatprep.subr.bf16.mxu0 0
    %555 = vmatpush1.bf16.msra.mxu0 0
    %556 = vmatprep.subr.bf16.mxu0 0
    %557 = vmatpush1.bf16.msra.mxu0 0
    %558 = vmatprep.subr.bf16.mxu0 0
    %559 = vmatpush1.bf16.msra.mxu0 0
    %560 = vmatprep.subr.bf16.mxu0 0
    %561 = vmatpush1.bf16.msra.mxu0 0
    %562 = vmatprep.subr.bf16.mxu0 0
    %563 = vmatpush1.bf16.msra.mxu0 0
    %564 = vmatprep.subr.bf16.mxu0 0
    %565 = vmatpush1.bf16.msra.mxu0 0
    %566 = vmatprep.subr.bf16.mxu0 0
    %567 = vmatpush1.bf16.msra.mxu0 0
    %568 = vmatprep.mubr.bf16.mxu0 0
    %569 = vmatmul.mubr.bf16.gmra.mrb[0].mxu0 %v437
    %v570 = vpop.f32.mrb[0].mxu0
    %v571 = vadd.f32 0.0, %v570
    %v572 = vpop.f32.mrb[0].mxu0
    %v573 = vpop.f32.mrb[0].mxu0
    %v574 = vadd.f32 0.0, %v573
    %v575 = vpop.f32.mrb[0].mxu0
    %576 = vmatprep.mubr.bf16.mxu0 0
    %577 = vmatmul.mubr.bf16.gmra.mrb[0].mxu0 %v438
    %v578 = vpop.f32.mrb[0].mxu0
    %v579 = vadd.f32 0.0, %v578
    %v580 = vpop.f32.mrb[0].mxu0
    %v581 = vpop.f32.mrb[0].mxu0
    %v582 = vadd.f32 0.0, %v581
    %v583 = vpop.f32.mrb[0].mxu0
    %584 = vdwg.mxu0
    %v601 = vunpack.c.l.b16 %v471
    %v602 = vunpack.c.l.b16 %v472
    %v603 = vunpack.c.l.b16 %v473
    %v604 = vunpack.c.l.b16 %v474
    %v605 = vunpack.c.l.b16 %v475
    %v606 = vunpack.c.l.b16 %v476
    %v607 = vunpack.c.l.b16 %v477
    %v608 = vunpack.c.l.b16 %v478
    %v609 = vunpack.c.l.b16 %v479
    %v610 = vunpack.c.l.b16 %v480
    %v611 = vunpack.c.l.b16 %v481
    %v612 = vunpack.c.l.b16 %v482
    %v613 = vunpack.c.l.b16 %v483
    %v614 = vunpack.c.l.b16 %v484
    %v615 = vunpack.c.l.b16 %v485
    %v616 = vunpack.c.l.b16 %v486
    %v617 = vpack.c.b16 %v602, %v601
    %v618 = vpack.c.b16 %v604, %v603
    %v619 = vpack.c.b16 %v606, %v605
    %v620 = vpack.c.b16 %v608, %v607
    %v621 = vpack.c.b16 %v610, %v609
    %v622 = vpack.c.b16 %v612, %v611
    %v623 = vpack.c.b16 %v614, %v613
    %v624 = vpack.c.b16 %v616, %v615
    %633 = vmatprep.subr.bf16.mxu0 0
    %634 = vmatpush1.bf16.msra.mxu0 %v617
    %635 = vmatprep.subr.bf16.mxu0 0
    %636 = vmatpush1.bf16.msra.mxu0 %v618
    %637 = vmatprep.subr.bf16.mxu0 0
    %638 = vmatpush1.bf16.msra.mxu0 %v619
    %639 = vmatprep.subr.bf16.mxu0 0
    %640 = vmatpush1.bf16.msra.mxu0 %v620
    %641 = vmatprep.subr.bf16.mxu0 0
    %642 = vmatpush1.bf16.msra.mxu0 %v621
    %643 = vmatprep.subr.bf16.mxu0 0
    %644 = vmatpush1.bf16.msra.mxu0 %v622
    %645 = vmatprep.subr.bf16.mxu0 0
    %646 = vmatpush1.bf16.msra.mxu0 %v623
    %647 = vmatprep.subr.bf16.mxu0 0
    %648 = vmatpush1.bf16.msra.mxu0 %v624
    %649 = vmatprep.subr.bf16.mxu0 0
    %650 = vmatpush1.bf16.msra.mxu0 0
    %651 = vmatprep.subr.bf16.mxu0 0
    %652 = vmatpush1.bf16.msra.mxu0 0
    %653 = vmatprep.subr.bf16.mxu0 0
    %654 = vmatpush1.bf16.msra.mxu0 0
    %655 = vmatprep.subr.bf16.mxu0 0
    %656 = vmatpush1.bf16.msra.mxu0 0
    %657 = vmatprep.subr.bf16.mxu0 0
    %658 = vmatpush1.bf16.msra.mxu0 0
    %659 = vmatprep.subr.bf16.mxu0 0
    %660 = vmatpush1.bf16.msra.mxu0 0
    %661 = vmatprep.subr.bf16.mxu0 0
    %662 = vmatpush1.bf16.msra.mxu0 0
    %663 = vmatprep.subr.bf16.mxu0 0
    %664 = vmatpush1.bf16.msra.mxu0 0
    %665 = vmatprep.mubr.bf16.mxu0 0
    %666 = vmatmul.mubr.bf16.gmra.mrb[0].mxu0 %v437
    %v667 = vpop.f32.mrb[0].mxu0
    %v668 = vadd.f32 0.0, %v667
    %v669 = vpop.f32.mrb[0].mxu0
    %v670 = vpop.f32.mrb[0].mxu0
    %v671 = vadd.f32 0.0, %v670
    %v672 = vpop.f32.mrb[0].mxu0
    %673 = vmatprep.mubr.bf16.mxu0 0
    %674 = vmatmul.mubr.bf16.gmra.mrb[0].mxu0 %v438
    %v675 = vpop.f32.mrb[0].mxu0
    %v676 = vadd.f32 0.0, %v675
    %v677 = vpop.f32.mrb[0].mxu0
    %v678 = vpop.f32.mrb[0].mxu0
    %v679 = vadd.f32 0.0, %v678
    %v680 = vpop.f32.mrb[0].mxu0
    %681 = vdwg.mxu0
    %v683 = vlaneseq
    %v684 = vshrl.u32 %v683, 7
    %v685 = vsub.s32 0, %v684
    %v686 = vrot.slane %v487, %v685
    %v704 = vunpack.c.l.b16 %v455
    %v705 = vunpack.c.l.b16 %v456
    %v706 = vunpack.c.l.b16 %v457
    %v707 = vunpack.c.l.b16 %v458
    %v708 = vunpack.c.l.b16 %v459
    %v709 = vunpack.c.l.b16 %v460
    %v710 = vunpack.c.l.b16 %v461
    %v711 = vunpack.c.l.b16 %v462
    %v712 = vunpack.c.l.b16 %v463
    %v713 = vunpack.c.l.b16 %v464
    %v714 = vunpack.c.l.b16 %v465
    %v715 = vunpack.c.l.b16 %v466
    %v716 = vunpack.c.l.b16 %v467
    %v717 = vunpack.c.l.b16 %v468
    %v718 = vunpack.c.l.b16 %v469
    %v719 = vunpack.c.l.b16 %v470
    %v720 = vpack.c.b16 %v705, %v704
    %v721 = vpack.c.b16 %v707, %v706
    %v722 = vpack.c.b16 %v709, %v708
    %v723 = vpack.c.b16 %v711, %v710
    %v724 = vpack.c.b16 %v713, %v712
    %v725 = vpack.c.b16 %v715, %v714
    %v726 = vpack.c.b16 %v717, %v716
    %v727 = vpack.c.b16 %v719, %v718
    %736 = vmatprep.subr.bf16.mxu0 0
    %737 = vmatpush1.bf16.msra.mxu0 %v720
    %738 = vmatprep.subr.bf16.mxu0 0
    %739 = vmatpush1.bf16.msra.mxu0 %v721
    %740 = vmatprep.subr.bf16.mxu0 0
    %741 = vmatpush1.bf16.msra.mxu0 %v722
    %742 = vmatprep.subr.bf16.mxu0 0
    %743 = vmatpush1.bf16.msra.mxu0 %v723
    %744 = vmatprep.subr.bf16.mxu0 0
    %745 = vmatpush1.bf16.msra.mxu0 %v724
    %746 = vmatprep.subr.bf16.mxu0 0
    %747 = vmatpush1.bf16.msra.mxu0 %v725
    %748 = vmatprep.subr.bf16.mxu0 0
    %749 = vmatpush1.bf16.msra.mxu0 %v726
    %750 = vmatprep.subr.bf16.mxu0 0
    %751 = vmatpush1.bf16.msra.mxu0 %v727
    %752 = vmatprep.subr.bf16.mxu0 0
    %753 = vmatpush1.bf16.msra.mxu0 0
    %754 = vmatprep.subr.bf16.mxu0 0
    %755 = vmatpush1.bf16.msra.mxu0 0
    %756 = vmatprep.subr.bf16.mxu0 0
    %757 = vmatpush1.bf16.msra.mxu0 0
    %758 = vmatprep.subr.bf16.mxu0 0
    %759 = vmatpush1.bf16.msra.mxu0 0
    %760 = vmatprep.subr.bf16.mxu0 0
    %761 = vmatpush1.bf16.msra.mxu0 0
    %762 = vmatprep.subr.bf16.mxu0 0
    %763 = vmatpush1.bf16.msra.mxu0 0
    %764 = vmatprep.subr.bf16.mxu0 0
    %765 = vmatpush1.bf16.msra.mxu0 0
    %766 = vmatprep.subr.bf16.mxu0 0
    %767 = vmatpush1.bf16.msra.mxu0 0
    %768 = vmatprep.mubr.bf16.mxu0 0
    %769 = vmatmul.mubr.bf16.gmra.mrb[0].mxu0 %v437
    %v770 = vpop.f32.mrb[0].mxu0
    %v771 = vadd.f32 %v686, %v770
    %v772 = vpop.f32.mrb[0].mxu0
    %v773 = vpop.f32.mrb[0].mxu0
    %v774 = vadd.f32 %v686, %v773
    %v775 = vpop.f32.mrb[0].mxu0
    %776 = vmatprep.mubr.bf16.mxu0 0
    %777 = vmatmul.mubr.bf16.gmra.mrb[0].mxu0 %v438
    %v778 = vpop.f32.mrb[0].mxu0
    %v779 = vadd.f32 %v686, %v778
    %v780 = vpop.f32.mrb[0].mxu0
    %v781 = vpop.f32.mrb[0].mxu0
    %v782 = vadd.f32 %v686, %v781
    %v783 = vpop.f32.mrb[0].mxu0
    %784 = vdwg.mxu0
    %v785 = vrot.slane %v571, 7
    %v786 = vrot.slane %v574, 7
    %v787 = vrot.slane %v579, 7
    %v788 = vrot.slane %v582, 7
    %v789 = vsel %vm383, %v787, %v788
    %v790 = vsel %vm383, %v786, %v787
    %v791 = vsel %vm383, %v785, %v786
    %v792 = vsel %vm383, %v788, %v785
    %v793 = vsel %vm392, %v792, 0.0
    %v794 = vsel %vm393, %v791, 0.0
    %v795 = vsel %vm394, %v790, 0.0
    %v796 = vsel %vm395, %v789, 0.0
    %v797 = vadd.f32 %v771, %v793
    %v798 = vadd.f32 %v774, %v794
    %v799 = vadd.f32 %v779, %v795
    %v800 = vadd.f32 %v782, %v796
    %v801 = vrot.slane %v668, 1
    %v802 = vrot.slane %v671, 1
    %v803 = vrot.slane %v676, 1
    %v804 = vrot.slane %v679, 1
    %v805 = vsel %vm408, %v803, %v804
    %v806 = vsel %vm408, %v802, %v803
    %v807 = vsel %vm408, %v801, %v802
    %v808 = vsel %vm408, %v804, %v801
    %v809 = vsel %vm417, %v807, 0.0
    %v810 = vsel %vm418, %v806, 0.0
    %v811 = vsel %vm419, %v805, 0.0
    %v812 = vsel %vm420, %v808, 0.0
    %v813 = vadd.f32 %v797, %v809
    %v814 = vadd.f32 %v798, %v810
    %v815 = vadd.f32 %v799, %v811
    %v816 = vadd.f32 %v800, %v812
    %v817 = vmul.f32 %v813, 0.01
    %v818 = vmul.f32 %v814, 0.01
    %v819 = vmul.f32 %v815, 0.01
    %v820 = vmul.f32 %v816, 0.01
    %v821 = vmax.f32 %v813, %v817
    %v822 = vmax.f32 %v814, %v818
    %v823 = vmax.f32 %v815, %v819
    %v824 = vmax.f32 %v816, %v820
    %v825 = vpack.c.bf16 %v822, %v821
    %v826 = vpack.c.bf16 %v824, %v823
    %s827 = scalar_lea.vmem [#allocation2], 192
    %v828 = vld [vmem:[%s827] sm:$0xf]
    %v829 = vld [vmem:[%s827 + $0x4] sm:$0xf]
    %v830 = vld [vmem:[%s827 + $0x8] sm:$0xf]
    %v831 = vld [vmem:[%s827 + $0xc] sm:$0xf]
    %v832 = vld [vmem:[%s827 + $0x10] sm:$0xf]
    %v833 = vld [vmem:[%s827 + $0x14] sm:$0xf]
    %v834 = vld [vmem:[%s827 + $0x18] sm:$0xf]
    %v835 = vld [vmem:[%s827 + $0x1c] sm:$0xf]
    %v836 = vld [vmem:[%s827 + $0x20] sm:$0xf]
    %v837 = vld [vmem:[%s827 + $0x24] sm:$0xf]
    %v838 = vld [vmem:[%s827 + $0x28] sm:$0xf]
    %v839 = vld [vmem:[%s827 + $0x2c] sm:$0xf]
    %v840 = vld [vmem:[%s827 + $0x30] sm:$0xf]
    %v841 = vld [vmem:[%s827 + $0x34] sm:$0xf]
    %v842 = vld [vmem:[%s827 + $0x38] sm:$0xf]
    %v843 = vld [vmem:[%s827 + $0x3c] sm:$0xf]
    %v844 = vld [vmem:[%s827 + $0x40] sm:$0xf]
    %v845 = vld [vmem:[%s827 + $0x44] sm:$0xf]
    %v846 = vld [vmem:[%s827 + $0x48] sm:$0xf]
    %v847 = vld [vmem:[%s827 + $0x4c] sm:$0xf]
    %v848 = vld [vmem:[%s827 + $0x50] sm:$0xf]
    %v849 = vld [vmem:[%s827 + $0x54] sm:$0xf]
    %v850 = vld [vmem:[%s827 + $0x58] sm:$0xf]
    %v851 = vld [vmem:[%s827 + $0x5c] sm:$0xf]
    %v852 = vld [vmem:[%s827 + $0x60] sm:$0xf]
    %v853 = vld [vmem:[%s827 + $0x64] sm:$0xf]
    %v854 = vld [vmem:[%s827 + $0x68] sm:$0xf]
    %v855 = vld [vmem:[%s827 + $0x6c] sm:$0xf]
    %v856 = vld [vmem:[%s827 + $0x70] sm:$0xf]
    %v857 = vld [vmem:[%s827 + $0x74] sm:$0xf]
    %v858 = vld [vmem:[%s827 + $0x78] sm:$0xf]
    %v859 = vld [vmem:[%s827 + $0x7c] sm:$0xf]
    %v860 = vld [vmem:[%s827 + $0x80] sm:$0xf]
    %v861 = vld [vmem:[%s827 + $0x84] sm:$0xf]
    %v862 = vld [vmem:[%s827 + $0x88] sm:$0xf]
    %v863 = vld [vmem:[%s827 + $0x8c] sm:$0xf]
    %v864 = vld [vmem:[%s827 + $0x90] sm:$0xf]
    %v865 = vld [vmem:[%s827 + $0x94] sm:$0xf]
    %v866 = vld [vmem:[%s827 + $0x98] sm:$0xf]
    %v867 = vld [vmem:[%s827 + $0x9c] sm:$0xf]
    %v868 = vld [vmem:[%s827 + $0xa0] sm:$0xf]
    %v869 = vld [vmem:[%s827 + $0xa4] sm:$0xf]
    %v870 = vld [vmem:[%s827 + $0xa8] sm:$0xf]
    %v871 = vld [vmem:[%s827 + $0xac] sm:$0xf]
    %v872 = vld [vmem:[%s827 + $0xb0] sm:$0xf]
    %v873 = vld [vmem:[%s827 + $0xb4] sm:$0xf]
    %v874 = vld [vmem:[%s827 + $0xb8] sm:$0xf]
    %v875 = vld [vmem:[%s827 + $0xbc] sm:$0xf]
    %s876 = scalar_lea.vmem %s4, 1
    %v877 = vld [vmem:[%s876] sm:$0x1]
    %v894 = vunpack.c.l.b16 %v828
    %v895 = vunpack.c.l.b16 %v829
    %v896 = vunpack.c.l.b16 %v830
    %v897 = vunpack.c.l.b16 %v831
    %v898 = vunpack.c.l.b16 %v832
    %v899 = vunpack.c.l.b16 %v833
    %v900 = vunpack.c.l.b16 %v834
    %v901 = vunpack.c.l.b16 %v835
    %v902 = vunpack.c.l.b16 %v836
    %v903 = vunpack.c.l.b16 %v837
    %v904 = vunpack.c.l.b16 %v838
    %v905 = vunpack.c.l.b16 %v839
    %v906 = vunpack.c.l.b16 %v840
    %v907 = vunpack.c.l.b16 %v841
    %v908 = vunpack.c.l.b16 %v842
    %v909 = vunpack.c.l.b16 %v843
    %v910 = vpack.c.b16 %v895, %v894
    %v911 = vpack.c.b16 %v897, %v896
    %v912 = vpack.c.b16 %v899, %v898
    %v913 = vpack.c.b16 %v901, %v900
    %v914 = vpack.c.b16 %v903, %v902
    %v915 = vpack.c.b16 %v905, %v904
    %v916 = vpack.c.b16 %v907, %v906
    %v917 = vpack.c.b16 %v909, %v908
    %926 = vmatprep.subr.bf16.mxu0 0
    %927 = vmatpush1.bf16.msra.mxu0 %v910
    %928 = vmatprep.subr.bf16.mxu0 0
    %929 = vmatpush1.bf16.msra.mxu0 %v911
    %930 = vmatprep.subr.bf16.mxu0 0
    %931 = vmatpush1.bf16.msra.mxu0 %v912
    %932 = vmatprep.subr.bf16.mxu0 0
    %933 = vmatpush1.bf16.msra.mxu0 %v913
    %934 = vmatprep.subr.bf16.mxu0 0
    %935 = vmatpush1.bf16.msra.mxu0 %v914
    %936 = vmatprep.subr.bf16.mxu0 0
    %937 = vmatpush1.bf16.msra.mxu0 %v915
    %938 = vmatprep.subr.bf16.mxu0 0
    %939 = vmatpush1.bf16.msra.mxu0 %v916
    %940 = vmatprep.subr.bf16.mxu0 0
    %941 = vmatpush1.bf16.msra.mxu0 %v917
    %942 = vmatprep.subr.bf16.mxu0 0
    %943 = vmatpush1.bf16.msra.mxu0 0
    %944 = vmatprep.subr.bf16.mxu0 0
    %945 = vmatpush1.bf16.msra.mxu0 0
    %946 = vmatprep.subr.bf16.mxu0 0
    %947 = vmatpush1.bf16.msra.mxu0 0
    %948 = vmatprep.subr.bf16.mxu0 0
    %949 = vmatpush1.bf16.msra.mxu0 0
    %950 = vmatprep.subr.bf16.mxu0 0
    %951 = vmatpush1.bf16.msra.mxu0 0
    %952 = vmatprep.subr.bf16.mxu0 0
    %953 = vmatpush1.bf16.msra.mxu0 0
    %954 = vmatprep.subr.bf16.mxu0 0
    %955 = vmatpush1.bf16.msra.mxu0 0
    %956 = vmatprep.subr.bf16.mxu0 0
    %957 = vmatpush1.bf16.msra.mxu0 0
    %958 = vmatprep.mubr.bf16.mxu0 0
    %959 = vmatmul.mubr.bf16.gmra.mrb[0].mxu0 %v825
    %v960 = vpop.f32.mrb[0].mxu0
    %v961 = vadd.f32 0.0, %v960
    %v962 = vpop.f32.mrb[0].mxu0
    %v963 = vpop.f32.mrb[0].mxu0
    %v964 = vadd.f32 0.0, %v963
    %v965 = vpop.f32.mrb[0].mxu0
    %966 = vmatprep.mubr.bf16.mxu0 0
    %967 = vmatmul.mubr.bf16.gmra.mrb[0].mxu0 %v826
    %v968 = vpop.f32.mrb[0].mxu0
    %v969 = vadd.f32 0.0, %v968
    %v970 = vpop.f32.mrb[0].mxu0
    %v971 = vpop.f32.mrb[0].mxu0
    %v972 = vadd.f32 0.0, %v971
    %v973 = vpop.f32.mrb[0].mxu0
    %974 = vdwg.mxu0
    %v991 = vunpack.c.l.b16 %v860
    %v992 = vunpack.c.l.b16 %v861
    %v993 = vunpack.c.l.b16 %v862
    %v994 = vunpack.c.l.b16 %v863
    %v995 = vunpack.c.l.b16 %v864
    %v996 = vunpack.c.l.b16 %v865
    %v997 = vunpack.c.l.b16 %v866
    %v998 = vunpack.c.l.b16 %v867
    %v999 = vunpack.c.l.b16 %v868
    %v1000 = vunpack.c.l.b16 %v869
    %v1001 = vunpack.c.l.b16 %v870
    %v1002 = vunpack.c.l.b16 %v871
    %v1003 = vunpack.c.l.b16 %v872
    %v1004 = vunpack.c.l.b16 %v873
    %v1005 = vunpack.c.l.b16 %v874
    %v1006 = vunpack.c.l.b16 %v875
    %v1007 = vpack.c.b16 %v992, %v991
    %v1008 = vpack.c.b16 %v994, %v993
    %v1009 = vpack.c.b16 %v996, %v995
    %v1010 = vpack.c.b16 %v998, %v997
    %v1011 = vpack.c.b16 %v1000, %v999
    %v1012 = vpack.c.b16 %v1002, %v1001
    %v1013 = vpack.c.b16 %v1004, %v1003
    %v1014 = vpack.c.b16 %v1006, %v1005
    %1023 = vmatprep.subr.bf16.mxu0 0
    %1024 = vmatpush1.bf16.msra.mxu0 %v1007
    %1025 = vmatprep.subr.bf16.mxu0 0
    %1026 = vmatpush1.bf16.msra.mxu0 %v1008
    %1027 = vmatprep.subr.bf16.mxu0 0
    %1028 = vmatpush1.bf16.msra.mxu0 %v1009
    %1029 = vmatprep.subr.bf16.mxu0 0
    %1030 = vmatpush1.bf16.msra.mxu0 %v1010
    %1031 = vmatprep.subr.bf16.mxu0 0
    %1032 = vmatpush1.bf16.msra.mxu0 %v1011
    %1033 = vmatprep.subr.bf16.mxu0 0
    %1034 = vmatpush1.bf16.msra.mxu0 %v1012
    %1035 = vmatprep.subr.bf16.mxu0 0
    %1036 = vmatpush1.bf16.msra.mxu0 %v1013
    %1037 = vmatprep.subr.bf16.mxu0 0
    %1038 = vmatpush1.bf16.msra.mxu0 %v1014
    %1039 = vmatprep.subr.bf16.mxu0 0
    %1040 = vmatpush1.bf16.msra.mxu0 0
    %1041 = vmatprep.subr.bf16.mxu0 0
    %1042 = vmatpush1.bf16.msra.mxu0 0
    %1043 = vmatprep.subr.bf16.mxu0 0
    %1044 = vmatpush1.bf16.msra.mxu0 0
    %1045 = vmatprep.subr.bf16.mxu0 0
    %1046 = vmatpush1.bf16.msra.mxu0 0
    %1047 = vmatprep.subr.bf16.mxu0 0
    %1048 = vmatpush1.bf16.msra.mxu0 0
    %1049 = vmatprep.subr.bf16.mxu0 0
    %1050 = vmatpush1.bf16.msra.mxu0 0
    %1051 = vmatprep.subr.bf16.mxu0 0
    %1052 = vmatpush1.bf16.msra.mxu0 0
    %1053 = vmatprep.subr.bf16.mxu0 0
    %1054 = vmatpush1.bf16.msra.mxu0 0
    %1055 = vmatprep.mubr.bf16.mxu0 0
    %1056 = vmatmul.mubr.bf16.gmra.mrb[0].mxu0 %v825
    %v1057 = vpop.f32.mrb[0].mxu0
    %v1058 = vadd.f32 0.0, %v1057
    %v1059 = vpop.f32.mrb[0].mxu0
    %v1060 = vpop.f32.mrb[0].mxu0
    %v1061 = vadd.f32 0.0, %v1060
    %v1062 = vpop.f32.mrb[0].mxu0
    %1063 = vmatprep.mubr.bf16.mxu0 0
    %1064 = vmatmul.mubr.bf16.gmra.mrb[0].mxu0 %v826
    %v1065 = vpop.f32.mrb[0].mxu0
    %v1066 = vadd.f32 0.0, %v1065
    %v1067 = vpop.f32.mrb[0].mxu0
    %v1068 = vpop.f32.mrb[0].mxu0
    %v1069 = vadd.f32 0.0, %v1068
    %v1070 = vpop.f32.mrb[0].mxu0
    %1071 = vdwg.mxu0
    %v1073 = vlaneseq
    %v1074 = vshrl.u32 %v1073, 7
    %v1075 = vsub.s32 0, %v1074
    %v1076 = vrot.slane %v877, %v1075
    %v1094 = vunpack.c.l.b16 %v844
    %v1095 = vunpack.c.l.b16 %v845
    %v1096 = vunpack.c.l.b16 %v846
    %v1097 = vunpack.c.l.b16 %v847
    %v1098 = vunpack.c.l.b16 %v848
    %v1099 = vunpack.c.l.b16 %v849
    %v1100 = vunpack.c.l.b16 %v850
    %v1101 = vunpack.c.l.b16 %v851
    %v1102 = vunpack.c.l.b16 %v852
    %v1103 = vunpack.c.l.b16 %v853
    %v1104 = vunpack.c.l.b16 %v854
    %v1105 = vunpack.c.l.b16 %v855
    %v1106 = vunpack.c.l.b16 %v856
    %v1107 = vunpack.c.l.b16 %v857
    %v1108 = vunpack.c.l.b16 %v858
    %v1109 = vunpack.c.l.b16 %v859
    %v1110 = vpack.c.b16 %v1095, %v1094
    %v1111 = vpack.c.b16 %v1097, %v1096
    %v1112 = vpack.c.b16 %v1099, %v1098
    %v1113 = vpack.c.b16 %v1101, %v1100
    %v1114 = vpack.c.b16 %v1103, %v1102
    %v1115 = vpack.c.b16 %v1105, %v1104
    %v1116 = vpack.c.b16 %v1107, %v1106
    %v1117 = vpack.c.b16 %v1109, %v1108
    %1126 = vmatprep.subr.bf16.mxu0 0
    %1127 = vmatpush1.bf16.msra.mxu0 %v1110
    %1128 = vmatprep.subr.bf16.mxu0 0
    %1129 = vmatpush1.bf16.msra.mxu0 %v1111
    %1130 = vmatprep.subr.bf16.mxu0 0
    %1131 = vmatpush1.bf16.msra.mxu0 %v1112
    %1132 = vmatprep.subr.bf16.mxu0 0
    %1133 = vmatpush1.bf16.msra.mxu0 %v1113
    %1134 = vmatprep.subr.bf16.mxu0 0
    %1135 = vmatpush1.bf16.msra.mxu0 %v1114
    %1136 = vmatprep.subr.bf16.mxu0 0
    %1137 = vmatpush1.bf16.msra.mxu0 %v1115
    %1138 = vmatprep.subr.bf16.mxu0 0
    %1139 = vmatpush1.bf16.msra.mxu0 %v1116
    %1140 = vmatprep.subr.bf16.mxu0 0
    %1141 = vmatpush1.bf16.msra.mxu0 %v1117
    %1142 = vmatprep.subr.bf16.mxu0 0
    %1143 = vmatpush1.bf16.msra.mxu0 0
    %1144 = vmatprep.subr.bf16.mxu0 0
    %1145 = vmatpush1.bf16.msra.mxu0 0
    %1146 = vmatprep.subr.bf16.mxu0 0
    %1147 = vmatpush1.bf16.msra.mxu0 0
    %1148 = vmatprep.subr.bf16.mxu0 0
    %1149 = vmatpush1.bf16.msra.mxu0 0
    %1150 = vmatprep.subr.bf16.mxu0 0
    %1151 = vmatpush1.bf16.msra.mxu0 0
    %1152 = vmatprep.subr.bf16.mxu0 0
    %1153 = vmatpush1.bf16.msra.mxu0 0
    %1154 = vmatprep.subr.bf16.mxu0 0
    %1155 = vmatpush1.bf16.msra.mxu0 0
    %1156 = vmatprep.subr.bf16.mxu0 0
    %1157 = vmatpush1.bf16.msra.mxu0 0
    %1158 = vmatprep.mubr.bf16.mxu0 0
    %1159 = vmatmul.mubr.bf16.gmra.mrb[0].mxu0 %v825
    %v1160 = vpop.f32.mrb[0].mxu0
    %v1161 = vadd.f32 %v1076, %v1160
    %v1162 = vpop.f32.mrb[0].mxu0
    %v1163 = vpop.f32.mrb[0].mxu0
    %v1164 = vadd.f32 %v1076, %v1163
    %v1165 = vpop.f32.mrb[0].mxu0
    %1166 = vmatprep.mubr.bf16.mxu0 0
    %1167 = vmatmul.mubr.bf16.gmra.mrb[0].mxu0 %v826
    %v1168 = vpop.f32.mrb[0].mxu0
    %v1169 = vadd.f32 %v1076, %v1168
    %v1170 = vpop.f32.mrb[0].mxu0
    %v1171 = vpop.f32.mrb[0].mxu0
    %v1172 = vadd.f32 %v1076, %v1171
    %v1173 = vpop.f32.mrb[0].mxu0
    %1174 = vdwg.mxu0
    %v1175 = vrot.slane %v961, 7
    %v1176 = vrot.slane %v964, 7
    %v1177 = vrot.slane %v969, 7
    %v1178 = vrot.slane %v972, 7
    %v1179 = vsel %vm383, %v1177, %v1178
    %v1180 = vsel %vm383, %v1176, %v1177
    %v1181 = vsel %vm383, %v1175, %v1176
    %v1182 = vsel %vm383, %v1178, %v1175
    %v1183 = vsel %vm392, %v1182, 0.0
    %v1184 = vsel %vm393, %v1181, 0.0
    %v1185 = vsel %vm394, %v1180, 0.0
    %v1186 = vsel %vm395, %v1179, 0.0
    %v1187 = vadd.f32 %v1161, %v1183
    %v1188 = vadd.f32 %v1164, %v1184
    %v1189 = vadd.f32 %v1169, %v1185
    %v1190 = vadd.f32 %v1172, %v1186
    %v1191 = vrot.slane %v1058, 1
    %v1192 = vrot.slane %v1061, 1
    %v1193 = vrot.slane %v1066, 1
    %v1194 = vrot.slane %v1069, 1
    %v1195 = vsel %vm408, %v1193, %v1194
    %v1196 = vsel %vm408, %v1192, %v1193
    %v1197 = vsel %vm408, %v1191, %v1192
    %v1198 = vsel %vm408, %v1194, %v1191
    %v1199 = vsel %vm417, %v1197, 0.0
    %v1200 = vsel %vm418, %v1196, 0.0
    %v1201 = vsel %vm419, %v1195, 0.0
    %v1202 = vsel %vm420, %v1198, 0.0
    %v1203 = vadd.f32 %v1187, %v1199
    %v1204 = vadd.f32 %v1188, %v1200
    %v1205 = vadd.f32 %v1189, %v1201
    %v1206 = vadd.f32 %v1190, %v1202
    %v1207 = vmul.f32 %v1203, 0.01
    %v1208 = vmul.f32 %v1204, 0.01
    %v1209 = vmul.f32 %v1205, 0.01
    %v1210 = vmul.f32 %v1206, 0.01
    %v1211 = vmax.f32 %v1203, %v1207
    %v1212 = vmax.f32 %v1204, %v1208
    %v1213 = vmax.f32 %v1205, %v1209
    %v1214 = vmax.f32 %v1206, %v1210
    %v1215 = vpack.c.bf16 %v1212, %v1211
    %v1216 = vpack.c.bf16 %v1214, %v1213
    %s1217 = scalar_lea.vmem [#allocation2], 384
    %v1218 = vld [vmem:[%s1217] sm:$0xf]
    %v1219 = vld [vmem:[%s1217 + $0x4] sm:$0xf]
    %v1220 = vld [vmem:[%s1217 + $0x8] sm:$0xf]
    %v1221 = vld [vmem:[%s1217 + $0xc] sm:$0xf]
    %v1222 = vld [vmem:[%s1217 + $0x10] sm:$0xf]
    %v1223 = vld [vmem:[%s1217 + $0x14] sm:$0xf]
    %v1224 = vld [vmem:[%s1217 + $0x18] sm:$0xf]
    %v1225 = vld [vmem:[%s1217 + $0x1c] sm:$0xf]
    %v1226 = vld [vmem:[%s1217 + $0x20] sm:$0xf]
    %v1227 = vld [vmem:[%s1217 + $0x24] sm:$0xf]
    %v1228 = vld [vmem:[%s1217 + $0x28] sm:$0xf]
    %v1229 = vld [vmem:[%s1217 + $0x2c] sm:$0xf]
    %v1230 = vld [vmem:[%s1217 + $0x30] sm:$0xf]
    %v1231 = vld [vmem:[%s1217 + $0x34] sm:$0xf]
    %v1232 = vld [vmem:[%s1217 + $0x38] sm:$0xf]
    %v1233 = vld [vmem:[%s1217 + $0x3c] sm:$0xf]
    %v1234 = vld [vmem:[%s1217 + $0x40] sm:$0xf]
    %v1235 = vld [vmem:[%s1217 + $0x44] sm:$0xf]
    %v1236 = vld [vmem:[%s1217 + $0x48] sm:$0xf]
    %v1237 = vld [vmem:[%s1217 + $0x4c] sm:$0xf]
    %v1238 = vld [vmem:[%s1217 + $0x50] sm:$0xf]
    %v1239 = vld [vmem:[%s1217 + $0x54] sm:$0xf]
    %v1240 = vld [vmem:[%s1217 + $0x58] sm:$0xf]
    %v1241 = vld [vmem:[%s1217 + $0x5c] sm:$0xf]
    %v1242 = vld [vmem:[%s1217 + $0x60] sm:$0xf]
    %v1243 = vld [vmem:[%s1217 + $0x64] sm:$0xf]
    %v1244 = vld [vmem:[%s1217 + $0x68] sm:$0xf]
    %v1245 = vld [vmem:[%s1217 + $0x6c] sm:$0xf]
    %v1246 = vld [vmem:[%s1217 + $0x70] sm:$0xf]
    %v1247 = vld [vmem:[%s1217 + $0x74] sm:$0xf]
    %v1248 = vld [vmem:[%s1217 + $0x78] sm:$0xf]
    %v1249 = vld [vmem:[%s1217 + $0x7c] sm:$0xf]
    %v1250 = vld [vmem:[%s1217 + $0x80] sm:$0xf]
    %v1251 = vld [vmem:[%s1217 + $0x84] sm:$0xf]
    %v1252 = vld [vmem:[%s1217 + $0x88] sm:$0xf]
    %v1253 = vld [vmem:[%s1217 + $0x8c] sm:$0xf]
    %v1254 = vld [vmem:[%s1217 + $0x90] sm:$0xf]
    %v1255 = vld [vmem:[%s1217 + $0x94] sm:$0xf]
    %v1256 = vld [vmem:[%s1217 + $0x98] sm:$0xf]
    %v1257 = vld [vmem:[%s1217 + $0x9c] sm:$0xf]
    %v1258 = vld [vmem:[%s1217 + $0xa0] sm:$0xf]
    %v1259 = vld [vmem:[%s1217 + $0xa4] sm:$0xf]
    %v1260 = vld [vmem:[%s1217 + $0xa8] sm:$0xf]
    %v1261 = vld [vmem:[%s1217 + $0xac] sm:$0xf]
    %v1262 = vld [vmem:[%s1217 + $0xb0] sm:$0xf]
    %v1263 = vld [vmem:[%s1217 + $0xb4] sm:$0xf]
    %v1264 = vld [vmem:[%s1217 + $0xb8] sm:$0xf]
    %v1265 = vld [vmem:[%s1217 + $0xbc] sm:$0xf]
    %s1266 = scalar_lea.vmem %s4, 2
    %v1267 = vld [vmem:[%s1266] sm:$0x1]
    %v1284 = vunpack.c.l.b16 %v1218
    %v1285 = vunpack.c.l.b16 %v1219
    %v1286 = vunpack.c.l.b16 %v1220
    %v1287 = vunpack.c.l.b16 %v1221
    %v1288 = vunpack.c.l.b16 %v1222
    %v1289 = vunpack.c.l.b16 %v1223
    %v1290 = vunpack.c.l.b16 %v1224
    %v1291 = vunpack.c.l.b16 %v1225
    %v1292 = vunpack.c.l.b16 %v1226
    %v1293 = vunpack.c.l.b16 %v1227
    %v1294 = vunpack.c.l.b16 %v1228
    %v1295 = vunpack.c.l.b16 %v1229
    %v1296 = vunpack.c.l.b16 %v1230
    %v1297 = vunpack.c.l.b16 %v1231
    %v1298 = vunpack.c.l.b16 %v1232
    %v1299 = vunpack.c.l.b16 %v1233
    %v1300 = vpack.c.b16 %v1285, %v1284
    %v1301 = vpack.c.b16 %v1287, %v1286
    %v1302 = vpack.c.b16 %v1289, %v1288
    %v1303 = vpack.c.b16 %v1291, %v1290
    %v1304 = vpack.c.b16 %v1293, %v1292
    %v1305 = vpack.c.b16 %v1295, %v1294
    %v1306 = vpack.c.b16 %v1297, %v1296
    %v1307 = vpack.c.b16 %v1299, %v1298
    %1316 = vmatprep.subr.bf16.mxu0 0
    %1317 = vmatpush1.bf16.msra.mxu0 %v1300
    %1318 = vmatprep.subr.bf16.mxu0 0
    %1319 = vmatpush1.bf16.msra.mxu0 %v1301
    %1320 = vmatprep.subr.bf16.mxu0 0
    %1321 = vmatpush1.bf16.msra.mxu0 %v1302
    %1322 = vmatprep.subr.bf16.mxu0 0
    %1323 = vmatpush1.bf16.msra.mxu0 %v1303
    %1324 = vmatprep.subr.bf16.mxu0 0
    %1325 = vmatpush1.bf16.msra.mxu0 %v1304
    %1326 = vmatprep.subr.bf16.mxu0 0
    %1327 = vmatpush1.bf16.msra.mxu0 %v1305
    %1328 = vmatprep.subr.bf16.mxu0 0
    %1329 = vmatpush1.bf16.msra.mxu0 %v1306
    %1330 = vmatprep.subr.bf16.mxu0 0
    %1331 = vmatpush1.bf16.msra.mxu0 %v1307
    %1332 = vmatprep.subr.bf16.mxu0 0
    %1333 = vmatpush1.bf16.msra.mxu0 0
    %1334 = vmatprep.subr.bf16.mxu0 0
    %1335 = vmatpush1.bf16.msra.mxu0 0
    %1336 = vmatprep.subr.bf16.mxu0 0
    %1337 = vmatpush1.bf16.msra.mxu0 0
    %1338 = vmatprep.subr.bf16.mxu0 0
    %1339 = vmatpush1.bf16.msra.mxu0 0
    %1340 = vmatprep.subr.bf16.mxu0 0
    %1341 = vmatpush1.bf16.msra.mxu0 0
    %1342 = vmatprep.subr.bf16.mxu0 0
    %1343 = vmatpush1.bf16.msra.mxu0 0
    %1344 = vmatprep.subr.bf16.mxu0 0
    %1345 = vmatpush1.bf16.msra.mxu0 0
    %1346 = vmatprep.subr.bf16.mxu0 0
    %1347 = vmatpush1.bf16.msra.mxu0 0
    %1348 = vmatprep.mubr.bf16.mxu0 0
    %1349 = vmatmul.mubr.bf16.gmra.mrb[0].mxu0 %v1215
    %v1350 = vpop.f32.mrb[0].mxu0
    %v1351 = vadd.f32 0.0, %v1350
    %v1352 = vpop.f32.mrb[0].mxu0
    %v1353 = vpop.f32.mrb[0].mxu0
    %v1354 = vadd.f32 0.0, %v1353
    %v1355 = vpop.f32.mrb[0].mxu0
    %1356 = vmatprep.mubr.bf16.mxu0 0
    %1357 = vmatmul.mubr.bf16.gmra.mrb[0].mxu0 %v1216
    %v1358 = vpop.f32.mrb[0].mxu0
    %v1359 = vadd.f32 0.0, %v1358
    %v1360 = vpop.f32.mrb[0].mxu0
    %v1361 = vpop.f32.mrb[0].mxu0
    %v1362 = vadd.f32 0.0, %v1361
    %v1363 = vpop.f32.mrb[0].mxu0
    %1364 = vdwg.mxu0
    %v1381 = vunpack.c.l.b16 %v1250
    %v1382 = vunpack.c.l.b16 %v1251
    %v1383 = vunpack.c.l.b16 %v1252
    %v1384 = vunpack.c.l.b16 %v1253
    %v1385 = vunpack.c.l.b16 %v1254
    %v1386 = vunpack.c.l.b16 %v1255
    %v1387 = vunpack.c.l.b16 %v1256
    %v1388 = vunpack.c.l.b16 %v1257
    %v1389 = vunpack.c.l.b16 %v1258
    %v1390 = vunpack.c.l.b16 %v1259
    %v1391 = vunpack.c.l.b16 %v1260
    %v1392 = vunpack.c.l.b16 %v1261
    %v1393 = vunpack.c.l.b16 %v1262
    %v1394 = vunpack.c.l.b16 %v1263
    %v1395 = vunpack.c.l.b16 %v1264
    %v1396 = vunpack.c.l.b16 %v1265
    %v1397 = vpack.c.b16 %v1382, %v1381
    %v1398 = vpack.c.b16 %v1384, %v1383
    %v1399 = vpack.c.b16 %v1386, %v1385
    %v1400 = vpack.c.b16 %v1388, %v1387
    %v1401 = vpack.c.b16 %v1390, %v1389
    %v1402 = vpack.c.b16 %v1392, %v1391
    %v1403 = vpack.c.b16 %v1394, %v1393
    %v1404 = vpack.c.b16 %v1396, %v1395
    %1413 = vmatprep.subr.bf16.mxu0 0
    %1414 = vmatpush1.bf16.msra.mxu0 %v1397
    %1415 = vmatprep.subr.bf16.mxu0 0
    %1416 = vmatpush1.bf16.msra.mxu0 %v1398
    %1417 = vmatprep.subr.bf16.mxu0 0
    %1418 = vmatpush1.bf16.msra.mxu0 %v1399
    %1419 = vmatprep.subr.bf16.mxu0 0
    %1420 = vmatpush1.bf16.msra.mxu0 %v1400
    %1421 = vmatprep.subr.bf16.mxu0 0
    %1422 = vmatpush1.bf16.msra.mxu0 %v1401
    %1423 = vmatprep.subr.bf16.mxu0 0
    %1424 = vmatpush1.bf16.msra.mxu0 %v1402
    %1425 = vmatprep.subr.bf16.mxu0 0
    %1426 = vmatpush1.bf16.msra.mxu0 %v1403
    %1427 = vmatprep.subr.bf16.mxu0 0
    %1428 = vmatpush1.bf16.msra.mxu0 %v1404
    %1429 = vmatprep.subr.bf16.mxu0 0
    %1430 = vmatpush1.bf16.msra.mxu0 0
    %1431 = vmatprep.subr.bf16.mxu0 0
    %1432 = vmatpush1.bf16.msra.mxu0 0
    %1433 = vmatprep.subr.bf16.mxu0 0
    %1434 = vmatpush1.bf16.msra.mxu0 0
    %1435 = vmatprep.subr.bf16.mxu0 0
    %1436 = vmatpush1.bf16.msra.mxu0 0
    %1437 = vmatprep.subr.bf16.mxu0 0
    %1438 = vmatpush1.bf16.msra.mxu0 0
    %1439 = vmatprep.subr.bf16.mxu0 0
    %1440 = vmatpush1.bf16.msra.mxu0 0
    %1441 = vmatprep.subr.bf16.mxu0 0
    %1442 = vmatpush1.bf16.msra.mxu0 0
    %1443 = vmatprep.subr.bf16.mxu0 0
    %1444 = vmatpush1.bf16.msra.mxu0 0
    %1445 = vmatprep.mubr.bf16.mxu0 0
    %1446 = vmatmul.mubr.bf16.gmra.mrb[0].mxu0 %v1215
    %v1447 = vpop.f32.mrb[0].mxu0
    %v1448 = vadd.f32 0.0, %v1447
    %v1449 = vpop.f32.mrb[0].mxu0
    %v1450 = vpop.f32.mrb[0].mxu0
    %v1451 = vadd.f32 0.0, %v1450
    %v1452 = vpop.f32.mrb[0].mxu0
    %1453 = vmatprep.mubr.bf16.mxu0 0
    %1454 = vmatmul.mubr.bf16.gmra.mrb[0].mxu0 %v1216
    %v1455 = vpop.f32.mrb[0].mxu0
    %v1456 = vadd.f32 0.0, %v1455
    %v1457 = vpop.f32.mrb[0].mxu0
    %v1458 = vpop.f32.mrb[0].mxu0
    %v1459 = vadd.f32 0.0, %v1458
    %v1460 = vpop.f32.mrb[0].mxu0
    %1461 = vdwg.mxu0
    %v1463 = vlaneseq
    %v1464 = vshrl.u32 %v1463, 7
    %v1465 = vsub.s32 0, %v1464
    %v1466 = vrot.slane %v1267, %v1465
    %v1484 = vunpack.c.l.b16 %v1234
    %v1485 = vunpack.c.l.b16 %v1235
    %v1486 = vunpack.c.l.b16 %v1236
    %v1487 = vunpack.c.l.b16 %v1237
    %v1488 = vunpack.c.l.b16 %v1238
    %v1489 = vunpack.c.l.b16 %v1239
    %v1490 = vunpack.c.l.b16 %v1240
    %v1491 = vunpack.c.l.b16 %v1241
    %v1492 = vunpack.c.l.b16 %v1242
    %v1493 = vunpack.c.l.b16 %v1243
    %v1494 = vunpack.c.l.b16 %v1244
    %v1495 = vunpack.c.l.b16 %v1245
    %v1496 = vunpack.c.l.b16 %v1246
    %v1497 = vunpack.c.l.b16 %v1247
    %v1498 = vunpack.c.l.b16 %v1248
    %v1499 = vunpack.c.l.b16 %v1249
    %v1500 = vpack.c.b16 %v1485, %v1484
    %v1501 = vpack.c.b16 %v1487, %v1486
    %v1502 = vpack.c.b16 %v1489, %v1488
    %v1503 = vpack.c.b16 %v1491, %v1490
    %v1504 = vpack.c.b16 %v1493, %v1492
    %v1505 = vpack.c.b16 %v1495, %v1494
    %v1506 = vpack.c.b16 %v1497, %v1496
    %v1507 = vpack.c.b16 %v1499, %v1498
    %1516 = vmatprep.subr.bf16.mxu0 0
    %1517 = vmatpush1.bf16.msra.mxu0 %v1500
    %1518 = vmatprep.subr.bf16.mxu0 0
    %1519 = vmatpush1.bf16.msra.mxu0 %v1501
    %1520 = vmatprep.subr.bf16.mxu0 0
    %1521 = vmatpush1.bf16.msra.mxu0 %v1502
    %1522 = vmatprep.subr.bf16.mxu0 0
    %1523 = vmatpush1.bf16.msra.mxu0 %v1503
    %1524 = vmatprep.subr.bf16.mxu0 0
    %1525 = vmatpush1.bf16.msra.mxu0 %v1504
    %1526 = vmatprep.subr.bf16.mxu0 0
    %1527 = vmatpush1.bf16.msra.mxu0 %v1505
    %1528 = vmatprep.subr.bf16.mxu0 0
    %1529 = vmatpush1.bf16.msra.mxu0 %v1506
    %1530 = vmatprep.subr.bf16.mxu0 0
    %1531 = vmatpush1.bf16.msra.mxu0 %v1507
    %1532 = vmatprep.subr.bf16.mxu0 0
    %1533 = vmatpush1.bf16.msra.mxu0 0
    %1534 = vmatprep.subr.bf16.mxu0 0
    %1535 = vmatpush1.bf16.msra.mxu0 0
    %1536 = vmatprep.subr.bf16.mxu0 0
    %1537 = vmatpush1.bf16.msra.mxu0 0
    %1538 = vmatprep.subr.bf16.mxu0 0
    %1539 = vmatpush1.bf16.msra.mxu0 0
    %1540 = vmatprep.subr.bf16.mxu0 0
    %1541 = vmatpush1.bf16.msra.mxu0 0
    %1542 = vmatprep.subr.bf16.mxu0 0
    %1543 = vmatpush1.bf16.msra.mxu0 0
    %1544 = vmatprep.subr.bf16.mxu0 0
    %1545 = vmatpush1.bf16.msra.mxu0 0
    %1546 = vmatprep.subr.bf16.mxu0 0
    %1547 = vmatpush1.bf16.msra.mxu0 0
    %1548 = vmatprep.mubr.bf16.mxu0 0
    %1549 = vmatmul.mubr.bf16.gmra.mrb[0].mxu0 %v1215
    %v1550 = vpop.f32.mrb[0].mxu0
    %v1551 = vadd.f32 %v1466, %v1550
    %v1552 = vpop.f32.mrb[0].mxu0
    %v1553 = vpop.f32.mrb[0].mxu0
    %v1554 = vadd.f32 %v1466, %v1553
    %v1555 = vpop.f32.mrb[0].mxu0
    %1556 = vmatprep.mubr.bf16.mxu0 0
    %1557 = vmatmul.mubr.bf16.gmra.mrb[0].mxu0 %v1216
    %v1558 = vpop.f32.mrb[0].mxu0
    %v1559 = vadd.f32 %v1466, %v1558
    %v1560 = vpop.f32.mrb[0].mxu0
    %v1561 = vpop.f32.mrb[0].mxu0
    %v1562 = vadd.f32 %v1466, %v1561
    %v1563 = vpop.f32.mrb[0].mxu0
    %1564 = vdwg.mxu0
    %v1565 = vrot.slane %v1351, 7
    %v1566 = vrot.slane %v1354, 7
    %v1567 = vrot.slane %v1359, 7
    %v1568 = vrot.slane %v1362, 7
    %v1569 = vsel %vm383, %v1567, %v1568
    %v1570 = vsel %vm383, %v1566, %v1567
    %v1571 = vsel %vm383, %v1565, %v1566
    %v1572 = vsel %vm383, %v1568, %v1565
    %v1573 = vsel %vm392, %v1572, 0.0
    %v1574 = vsel %vm393, %v1571, 0.0
    %v1575 = vsel %vm394, %v1570, 0.0
    %v1576 = vsel %vm395, %v1569, 0.0
    %v1577 = vadd.f32 %v1551, %v1573
    %v1578 = vadd.f32 %v1554, %v1574
    %v1579 = vadd.f32 %v1559, %v1575
    %v1580 = vadd.f32 %v1562, %v1576
    %v1581 = vrot.slane %v1448, 1
    %v1582 = vrot.slane %v1451, 1
    %v1583 = vrot.slane %v1456, 1
    %v1584 = vrot.slane %v1459, 1
    %v1585 = vsel %vm408, %v1583, %v1584
    %v1586 = vsel %vm408, %v1582, %v1583
    %v1587 = vsel %vm408, %v1581, %v1582
    %v1588 = vsel %vm408, %v1584, %v1581
    %v1589 = vsel %vm417, %v1587, 0.0
    %v1590 = vsel %vm418, %v1586, 0.0
    %v1591 = vsel %vm419, %v1585, 0.0
    %v1592 = vsel %vm420, %v1588, 0.0
    %v1593 = vadd.f32 %v1577, %v1589
    %v1594 = vadd.f32 %v1578, %v1590
    %v1595 = vadd.f32 %v1579, %v1591
    %v1596 = vadd.f32 %v1580, %v1592
    %v1597 = vmul.f32 %v1593, 0.01
    %v1598 = vmul.f32 %v1594, 0.01
    %v1599 = vmul.f32 %v1595, 0.01
    %v1600 = vmul.f32 %v1596, 0.01
    %v1601 = vmax.f32 %v1593, %v1597
    %v1602 = vmax.f32 %v1594, %v1598
    %v1603 = vmax.f32 %v1595, %v1599
    %v1604 = vmax.f32 %v1596, %v1600
    %v1605 = vpack.c.bf16 %v1602, %v1601
    %v1606 = vpack.c.bf16 %v1604, %v1603
    %s1607 = scalar_lea.vmem [#allocation2], 576
    %v1608 = vld [vmem:[%s1607] sm:$0xf]
    %v1609 = vld [vmem:[%s1607 + $0x4] sm:$0xf]
    %v1610 = vld [vmem:[%s1607 + $0x8] sm:$0xf]
    %v1611 = vld [vmem:[%s1607 + $0xc] sm:$0xf]
    %v1612 = vld [vmem:[%s1607 + $0x10] sm:$0xf]
    %v1613 = vld [vmem:[%s1607 + $0x14] sm:$0xf]
    %v1614 = vld [vmem:[%s1607 + $0x18] sm:$0xf]
    %v1615 = vld [vmem:[%s1607 + $0x1c] sm:$0xf]
    %v1616 = vld [vmem:[%s1607 + $0x20] sm:$0xf]
    %v1617 = vld [vmem:[%s1607 + $0x24] sm:$0xf]
    %v1618 = vld [vmem:[%s1607 + $0x28] sm:$0xf]
    %v1619 = vld [vmem:[%s1607 + $0x2c] sm:$0xf]
    %v1620 = vld [vmem:[%s1607 + $0x30] sm:$0xf]
    %v1621 = vld [vmem:[%s1607 + $0x34] sm:$0xf]
    %v1622 = vld [vmem:[%s1607 + $0x38] sm:$0xf]
    %v1623 = vld [vmem:[%s1607 + $0x3c] sm:$0xf]
    %v1624 = vld [vmem:[%s1607 + $0x40] sm:$0xf]
    %v1625 = vld [vmem:[%s1607 + $0x44] sm:$0xf]
    %v1626 = vld [vmem:[%s1607 + $0x48] sm:$0xf]
    %v1627 = vld [vmem:[%s1607 + $0x4c] sm:$0xf]
    %v1628 = vld [vmem:[%s1607 + $0x50] sm:$0xf]
    %v1629 = vld [vmem:[%s1607 + $0x54] sm:$0xf]
    %v1630 = vld [vmem:[%s1607 + $0x58] sm:$0xf]
    %v1631 = vld [vmem:[%s1607 + $0x5c] sm:$0xf]
    %v1632 = vld [vmem:[%s1607 + $0x60] sm:$0xf]
    %v1633 = vld [vmem:[%s1607 + $0x64] sm:$0xf]
    %v1634 = vld [vmem:[%s1607 + $0x68] sm:$0xf]
    %v1635 = vld [vmem:[%s1607 + $0x6c] sm:$0xf]
    %v1636 = vld [vmem:[%s1607 + $0x70] sm:$0xf]
    %v1637 = vld [vmem:[%s1607 + $0x74] sm:$0xf]
    %v1638 = vld [vmem:[%s1607 + $0x78] sm:$0xf]
    %v1639 = vld [vmem:[%s1607 + $0x7c] sm:$0xf]
    %v1640 = vld [vmem:[%s1607 + $0x80] sm:$0xf]
    %v1641 = vld [vmem:[%s1607 + $0x84] sm:$0xf]
    %v1642 = vld [vmem:[%s1607 + $0x88] sm:$0xf]
    %v1643 = vld [vmem:[%s1607 + $0x8c] sm:$0xf]
    %v1644 = vld [vmem:[%s1607 + $0x90] sm:$0xf]
    %v1645 = vld [vmem:[%s1607 + $0x94] sm:$0xf]
    %v1646 = vld [vmem:[%s1607 + $0x98] sm:$0xf]
    %v1647 = vld [vmem:[%s1607 + $0x9c] sm:$0xf]
    %v1648 = vld [vmem:[%s1607 + $0xa0] sm:$0xf]
    %v1649 = vld [vmem:[%s1607 + $0xa4] sm:$0xf]
    %v1650 = vld [vmem:[%s1607 + $0xa8] sm:$0xf]
    %v1651 = vld [vmem:[%s1607 + $0xac] sm:$0xf]
    %v1652 = vld [vmem:[%s1607 + $0xb0] sm:$0xf]
    %v1653 = vld [vmem:[%s1607 + $0xb4] sm:$0xf]
    %v1654 = vld [vmem:[%s1607 + $0xb8] sm:$0xf]
    %v1655 = vld [vmem:[%s1607 + $0xbc] sm:$0xf]
    %s1656 = scalar_lea.vmem %s4, 3
    %v1657 = vld [vmem:[%s1656] sm:$0x1]
    %v1674 = vunpack.c.l.b16 %v1608
    %v1675 = vunpack.c.l.b16 %v1609
    %v1676 = vunpack.c.l.b16 %v1610
    %v1677 = vunpack.c.l.b16 %v1611
    %v1678 = vunpack.c.l.b16 %v1612
    %v1679 = vunpack.c.l.b16 %v1613
    %v1680 = vunpack.c.l.b16 %v1614
    %v1681 = vunpack.c.l.b16 %v1615
    %v1682 = vunpack.c.l.b16 %v1616
    %v1683 = vunpack.c.l.b16 %v1617
    %v1684 = vunpack.c.l.b16 %v1618
    %v1685 = vunpack.c.l.b16 %v1619
    %v1686 = vunpack.c.l.b16 %v1620
    %v1687 = vunpack.c.l.b16 %v1621
    %v1688 = vunpack.c.l.b16 %v1622
    %v1689 = vunpack.c.l.b16 %v1623
    %v1690 = vpack.c.b16 %v1675, %v1674
    %v1691 = vpack.c.b16 %v1677, %v1676
    %v1692 = vpack.c.b16 %v1679, %v1678
    %v1693 = vpack.c.b16 %v1681, %v1680
    %v1694 = vpack.c.b16 %v1683, %v1682
    %v1695 = vpack.c.b16 %v1685, %v1684
    %v1696 = vpack.c.b16 %v1687, %v1686
    %v1697 = vpack.c.b16 %v1689, %v1688
    %1706 = vmatprep.subr.bf16.mxu0 0
    %1707 = vmatpush1.bf16.msra.mxu0 %v1690
    %1708 = vmatprep.subr.bf16.mxu0 0
    %1709 = vmatpush1.bf16.msra.mxu0 %v1691
    %1710 = vmatprep.subr.bf16.mxu0 0
    %1711 = vmatpush1.bf16.msra.mxu0 %v1692
    %1712 = vmatprep.subr.bf16.mxu0 0
    %1713 = vmatpush1.bf16.msra.mxu0 %v1693
    %1714 = vmatprep.subr.bf16.mxu0 0
    %1715 = vmatpush1.bf16.msra.mxu0 %v1694
    %1716 = vmatprep.subr.bf16.mxu0 0
    %1717 = vmatpush1.bf16.msra.mxu0 %v1695
    %1718 = vmatprep.subr.bf16.mxu0 0
    %1719 = vmatpush1.bf16.msra.mxu0 %v1696
    %1720 = vmatprep.subr.bf16.mxu0 0
    %1721 = vmatpush1.bf16.msra.mxu0 %v1697
    %1722 = vmatprep.subr.bf16.mxu0 0
    %1723 = vmatpush1.bf16.msra.mxu0 0
    %1724 = vmatprep.subr.bf16.mxu0 0
    %1725 = vmatpush1.bf16.msra.mxu0 0
    %1726 = vmatprep.subr.bf16.mxu0 0
    %1727 = vmatpush1.bf16.msra.mxu0 0
    %1728 = vmatprep.subr.bf16.mxu0 0
    %1729 = vmatpush1.bf16.msra.mxu0 0
    %1730 = vmatprep.subr.bf16.mxu0 0
    %1731 = vmatpush1.bf16.msra.mxu0 0
    %1732 = vmatprep.subr.bf16.mxu0 0
    %1733 = vmatpush1.bf16.msra.mxu0 0
    %1734 = vmatprep.subr.bf16.mxu0 0
    %1735 = vmatpush1.bf16.msra.mxu0 0
    %1736 = vmatprep.subr.bf16.mxu0 0
    %1737 = vmatpush1.bf16.msra.mxu0 0
    %1738 = vmatprep.mubr.bf16.mxu0 0
    %1739 = vmatmul.mubr.bf16.gmra.mrb[0].mxu0 %v1605
    %v1740 = vpop.f32.mrb[0].mxu0
    %v1741 = vadd.f32 0.0, %v1740
    %v1742 = vpop.f32.mrb[0].mxu0
    %v1743 = vpop.f32.mrb[0].mxu0
    %v1744 = vadd.f32 0.0, %v1743
    %v1745 = vpop.f32.mrb[0].mxu0
    %1746 = vmatprep.mubr.bf16.mxu0 0
    %1747 = vmatmul.mubr.bf16.gmra.mrb[0].mxu0 %v1606
    %v1748 = vpop.f32.mrb[0].mxu0
    %v1749 = vadd.f32 0.0, %v1748
    %v1750 = vpop.f32.mrb[0].mxu0
    %v1751 = vpop.f32.mrb[0].mxu0
    %v1752 = vadd.f32 0.0, %v1751
    %v1753 = vpop.f32.mrb[0].mxu0
    %1754 = vdwg.mxu0
    %v1771 = vunpack.c.l.b16 %v1640
    %v1772 = vunpack.c.l.b16 %v1641
    %v1773 = vunpack.c.l.b16 %v1642
    %v1774 = vunpack.c.l.b16 %v1643
    %v1775 = vunpack.c.l.b16 %v1644
    %v1776 = vunpack.c.l.b16 %v1645
    %v1777 = vunpack.c.l.b16 %v1646
    %v1778 = vunpack.c.l.b16 %v1647
    %v1779 = vunpack.c.l.b16 %v1648
    %v1780 = vunpack.c.l.b16 %v1649
    %v1781 = vunpack.c.l.b16 %v1650
    %v1782 = vunpack.c.l.b16 %v1651
    %v1783 = vunpack.c.l.b16 %v1652
    %v1784 = vunpack.c.l.b16 %v1653
    %v1785 = vunpack.c.l.b16 %v1654
    %v1786 = vunpack.c.l.b16 %v1655
    %v1787 = vpack.c.b16 %v1772, %v1771
    %v1788 = vpack.c.b16 %v1774, %v1773
    %v1789 = vpack.c.b16 %v1776, %v1775
    %v1790 = vpack.c.b16 %v1778, %v1777
    %v1791 = vpack.c.b16 %v1780, %v1779
    %v1792 = vpack.c.b16 %v1782, %v1781
    %v1793 = vpack.c.b16 %v1784, %v1783
    %v1794 = vpack.c.b16 %v1786, %v1785
    %1803 = vmatprep.subr.bf16.mxu0 0
    %1804 = vmatpush1.bf16.msra.mxu0 %v1787
    %1805 = vmatprep.subr.bf16.mxu0 0
    %1806 = vmatpush1.bf16.msra.mxu0 %v1788
    %1807 = vmatprep.subr.bf16.mxu0 0
    %1808 = vmatpush1.bf16.msra.mxu0 %v1789
    %1809 = vmatprep.subr.bf16.mxu0 0
    %1810 = vmatpush1.bf16.msra.mxu0 %v1790
    %1811 = vmatprep.subr.bf16.mxu0 0
    %1812 = vmatpush1.bf16.msra.mxu0 %v1791
    %1813 = vmatprep.subr.bf16.mxu0 0
    %1814 = vmatpush1.bf16.msra.mxu0 %v1792
    %1815 = vmatprep.subr.bf16.mxu0 0
    %1816 = vmatpush1.bf16.msra.mxu0 %v1793
    %1817 = vmatprep.subr.bf16.mxu0 0
    %1818 = vmatpush1.bf16.msra.mxu0 %v1794
    %1819 = vmatprep.subr.bf16.mxu0 0
    %1820 = vmatpush1.bf16.msra.mxu0 0
    %1821 = vmatprep.subr.bf16.mxu0 0
    %1822 = vmatpush1.bf16.msra.mxu0 0
    %1823 = vmatprep.subr.bf16.mxu0 0
    %1824 = vmatpush1.bf16.msra.mxu0 0
    %1825 = vmatprep.subr.bf16.mxu0 0
    %1826 = vmatpush1.bf16.msra.mxu0 0
    %1827 = vmatprep.subr.bf16.mxu0 0
    %1828 = vmatpush1.bf16.msra.mxu0 0
    %1829 = vmatprep.subr.bf16.mxu0 0
    %1830 = vmatpush1.bf16.msra.mxu0 0
    %1831 = vmatprep.subr.bf16.mxu0 0
    %1832 = vmatpush1.bf16.msra.mxu0 0
    %1833 = vmatprep.subr.bf16.mxu0 0
    %1834 = vmatpush1.bf16.msra.mxu0 0
    %1835 = vmatprep.mubr.bf16.mxu0 0
    %1836 = vmatmul.mubr.bf16.gmra.mrb[0].mxu0 %v1605
    %v1837 = vpop.f32.mrb[0].mxu0
    %v1838 = vadd.f32 0.0, %v1837
    %v1839 = vpop.f32.mrb[0].mxu0
    %v1840 = vpop.f32.mrb[0].mxu0
    %v1841 = vadd.f32 0.0, %v1840
    %v1842 = vpop.f32.mrb[0].mxu0
    %1843 = vmatprep.mubr.bf16.mxu0 0
    %1844 = vmatmul.mubr.bf16.gmra.mrb[0].mxu0 %v1606
    %v1845 = vpop.f32.mrb[0].mxu0
    %v1846 = vadd.f32 0.0, %v1845
    %v1847 = vpop.f32.mrb[0].mxu0
    %v1848 = vpop.f32.mrb[0].mxu0
    %v1849 = vadd.f32 0.0, %v1848
    %v1850 = vpop.f32.mrb[0].mxu0
    %1851 = vdwg.mxu0
    %v1853 = vlaneseq
    %v1854 = vshrl.u32 %v1853, 7
    %v1855 = vsub.s32 0, %v1854
    %v1856 = vrot.slane %v1657, %v1855
    %v1874 = vunpack.c.l.b16 %v1624
    %v1875 = vunpack.c.l.b16 %v1625
    %v1876 = vunpack.c.l.b16 %v1626
    %v1877 = vunpack.c.l.b16 %v1627
    %v1878 = vunpack.c.l.b16 %v1628
    %v1879 = vunpack.c.l.b16 %v1629
    %v1880 = vunpack.c.l.b16 %v1630
    %v1881 = vunpack.c.l.b16 %v1631
    %v1882 = vunpack.c.l.b16 %v1632
    %v1883 = vunpack.c.l.b16 %v1633
    %v1884 = vunpack.c.l.b16 %v1634
    %v1885 = vunpack.c.l.b16 %v1635
    %v1886 = vunpack.c.l.b16 %v1636
    %v1887 = vunpack.c.l.b16 %v1637
    %v1888 = vunpack.c.l.b16 %v1638
    %v1889 = vunpack.c.l.b16 %v1639
    %v1890 = vpack.c.b16 %v1875, %v1874
    %v1891 = vpack.c.b16 %v1877, %v1876
    %v1892 = vpack.c.b16 %v1879, %v1878
    %v1893 = vpack.c.b16 %v1881, %v1880
    %v1894 = vpack.c.b16 %v1883, %v1882
    %v1895 = vpack.c.b16 %v1885, %v1884
    %v1896 = vpack.c.b16 %v1887, %v1886
    %v1897 = vpack.c.b16 %v1889, %v1888
    %1906 = vmatprep.subr.bf16.mxu0 0
    %1907 = vmatpush1.bf16.msra.mxu0 %v1890
    %1908 = vmatprep.subr.bf16.mxu0 0
    %1909 = vmatpush1.bf16.msra.mxu0 %v1891
    %1910 = vmatprep.subr.bf16.mxu0 0
    %1911 = vmatpush1.bf16.msra.mxu0 %v1892
    %1912 = vmatprep.subr.bf16.mxu0 0
    %1913 = vmatpush1.bf16.msra.mxu0 %v1893
    %1914 = vmatprep.subr.bf16.mxu0 0
    %1915 = vmatpush1.bf16.msra.mxu0 %v1894
    %1916 = vmatprep.subr.bf16.mxu0 0
    %1917 = vmatpush1.bf16.msra.mxu0 %v1895
    %1918 = vmatprep.subr.bf16.mxu0 0
    %1919 = vmatpush1.bf16.msra.mxu0 %v1896
    %1920 = vmatprep.subr.bf16.mxu0 0
    %1921 = vmatpush1.bf16.msra.mxu0 %v1897
    %1922 = vmatprep.subr.bf16.mxu0 0
    %1923 = vmatpush1.bf16.msra.mxu0 0
    %1924 = vmatprep.subr.bf16.mxu0 0
    %1925 = vmatpush1.bf16.msra.mxu0 0
    %1926 = vmatprep.subr.bf16.mxu0 0
    %1927 = vmatpush1.bf16.msra.mxu0 0
    %1928 = vmatprep.subr.bf16.mxu0 0
    %1929 = vmatpush1.bf16.msra.mxu0 0
    %1930 = vmatprep.subr.bf16.mxu0 0
    %1931 = vmatpush1.bf16.msra.mxu0 0
    %1932 = vmatprep.subr.bf16.mxu0 0
    %1933 = vmatpush1.bf16.msra.mxu0 0
    %1934 = vmatprep.subr.bf16.mxu0 0
    %1935 = vmatpush1.bf16.msra.mxu0 0
    %1936 = vmatprep.subr.bf16.mxu0 0
    %1937 = vmatpush1.bf16.msra.mxu0 0
    %1938 = vmatprep.mubr.bf16.mxu0 0
    %1939 = vmatmul.mubr.bf16.gmra.mrb[0].mxu0 %v1605
    %v1940 = vpop.f32.mrb[0].mxu0
    %v1941 = vadd.f32 %v1856, %v1940
    %v1942 = vpop.f32.mrb[0].mxu0
    %v1943 = vpop.f32.mrb[0].mxu0
    %v1944 = vadd.f32 %v1856, %v1943
    %v1945 = vpop.f32.mrb[0].mxu0
    %1946 = vmatprep.mubr.bf16.mxu0 0
    %1947 = vmatmul.mubr.bf16.gmra.mrb[0].mxu0 %v1606
    %v1948 = vpop.f32.mrb[0].mxu0
    %v1949 = vadd.f32 %v1856, %v1948
    %v1950 = vpop.f32.mrb[0].mxu0
    %v1951 = vpop.f32.mrb[0].mxu0
    %v1952 = vadd.f32 %v1856, %v1951
    %v1953 = vpop.f32.mrb[0].mxu0
    %1954 = vdwg.mxu0
    %v1955 = vrot.slane %v1741, 7
    %v1956 = vrot.slane %v1744, 7
    %v1957 = vrot.slane %v1749, 7
    %v1958 = vrot.slane %v1752, 7
    %v1959 = vsel %vm383, %v1957, %v1958
    %v1960 = vsel %vm383, %v1956, %v1957
    %v1961 = vsel %vm383, %v1955, %v1956
    %v1962 = vsel %vm383, %v1958, %v1955
    %v1963 = vsel %vm392, %v1962, 0.0
    %v1964 = vsel %vm393, %v1961, 0.0
    %v1965 = vsel %vm394, %v1960, 0.0
    %v1966 = vsel %vm395, %v1959, 0.0
    %v1967 = vadd.f32 %v1941, %v1963
    %v1968 = vadd.f32 %v1944, %v1964
    %v1969 = vadd.f32 %v1949, %v1965
    %v1970 = vadd.f32 %v1952, %v1966
    %v1971 = vrot.slane %v1838, 1
    %v1972 = vrot.slane %v1841, 1
    %v1973 = vrot.slane %v1846, 1
    %v1974 = vrot.slane %v1849, 1
    %v1975 = vsel %vm408, %v1973, %v1974
    %v1976 = vsel %vm408, %v1972, %v1973
    %v1977 = vsel %vm408, %v1971, %v1972
    %v1978 = vsel %vm408, %v1974, %v1971
    %v1979 = vsel %vm417, %v1977, 0.0
    %v1980 = vsel %vm418, %v1976, 0.0
    %v1981 = vsel %vm419, %v1975, 0.0
    %v1982 = vsel %vm420, %v1978, 0.0
    %v1983 = vadd.f32 %v1967, %v1979
    %v1984 = vadd.f32 %v1968, %v1980
    %v1985 = vadd.f32 %v1969, %v1981
    %v1986 = vadd.f32 %v1970, %v1982
    %v1987 = vmul.f32 %v1983, 0.01
    %v1988 = vmul.f32 %v1984, 0.01
    %v1989 = vmul.f32 %v1985, 0.01
    %v1990 = vmul.f32 %v1986, 0.01
    %v1991 = vmax.f32 %v1983, %v1987
    %v1992 = vmax.f32 %v1984, %v1988
    %v1993 = vmax.f32 %v1985, %v1989
    %v1994 = vmax.f32 %v1986, %v1990
    %v1995 = vpack.c.bf16 %v1992, %v1991
    %v1996 = vpack.c.bf16 %v1994, %v1993
    %s1997 = scalar_lea.vmem [#allocation2], 768
    %v1998 = vld [vmem:[%s1997] sm:$0xf]
    %v1999 = vld [vmem:[%s1997 + $0x4] sm:$0xf]
    %v2000 = vld [vmem:[%s1997 + $0x8] sm:$0xf]
    %v2001 = vld [vmem:[%s1997 + $0xc] sm:$0xf]
    %v2002 = vld [vmem:[%s1997 + $0x10] sm:$0xf]
    %v2003 = vld [vmem:[%s1997 + $0x14] sm:$0xf]
    %v2004 = vld [vmem:[%s1997 + $0x18] sm:$0xf]
    %v2005 = vld [vmem:[%s1997 + $0x1c] sm:$0xf]
    %v2006 = vld [vmem:[%s1997 + $0x20] sm:$0xf]
    %v2007 = vld [vmem:[%s1997 + $0x24] sm:$0xf]
    %v2008 = vld [vmem:[%s1997 + $0x28] sm:$0xf]
    %v2009 = vld [vmem:[%s1997 + $0x2c] sm:$0xf]
    %v2010 = vld [vmem:[%s1997 + $0x30] sm:$0xf]
    %v2011 = vld [vmem:[%s1997 + $0x34] sm:$0xf]
    %v2012 = vld [vmem:[%s1997 + $0x38] sm:$0xf]
    %v2013 = vld [vmem:[%s1997 + $0x3c] sm:$0xf]
    %v2014 = vld [vmem:[%s1997 + $0x40] sm:$0xf]
    %v2015 = vld [vmem:[%s1997 + $0x44] sm:$0xf]
    %v2016 = vld [vmem:[%s1997 + $0x48] sm:$0xf]
    %v2017 = vld [vmem:[%s1997 + $0x4c] sm:$0xf]
    %v2018 = vld [vmem:[%s1997 + $0x50] sm:$0xf]
    %v2019 = vld [vmem:[%s1997 + $0x54] sm:$0xf]
    %v2020 = vld [vmem:[%s1997 + $0x58] sm:$0xf]
    %v2021 = vld [vmem:[%s1997 + $0x5c] sm:$0xf]
    %v2022 = vld [vmem:[%s1997 + $0x60] sm:$0xf]
    %v2023 = vld [vmem:[%s1997 + $0x64] sm:$0xf]
    %v2024 = vld [vmem:[%s1997 + $0x68] sm:$0xf]
    %v2025 = vld [vmem:[%s1997 + $0x6c] sm:$0xf]
    %v2026 = vld [vmem:[%s1997 + $0x70] sm:$0xf]
    %v2027 = vld [vmem:[%s1997 + $0x74] sm:$0xf]
    %v2028 = vld [vmem:[%s1997 + $0x78] sm:$0xf]
    %v2029 = vld [vmem:[%s1997 + $0x7c] sm:$0xf]
    %v2030 = vld [vmem:[%s1997 + $0x80] sm:$0xf]
    %v2031 = vld [vmem:[%s1997 + $0x84] sm:$0xf]
    %v2032 = vld [vmem:[%s1997 + $0x88] sm:$0xf]
    %v2033 = vld [vmem:[%s1997 + $0x8c] sm:$0xf]
    %v2034 = vld [vmem:[%s1997 + $0x90] sm:$0xf]
    %v2035 = vld [vmem:[%s1997 + $0x94] sm:$0xf]
    %v2036 = vld [vmem:[%s1997 + $0x98] sm:$0xf]
    %v2037 = vld [vmem:[%s1997 + $0x9c] sm:$0xf]
    %v2038 = vld [vmem:[%s1997 + $0xa0] sm:$0xf]
    %v2039 = vld [vmem:[%s1997 + $0xa4] sm:$0xf]
    %v2040 = vld [vmem:[%s1997 + $0xa8] sm:$0xf]
    %v2041 = vld [vmem:[%s1997 + $0xac] sm:$0xf]
    %v2042 = vld [vmem:[%s1997 + $0xb0] sm:$0xf]
    %v2043 = vld [vmem:[%s1997 + $0xb4] sm:$0xf]
    %v2044 = vld [vmem:[%s1997 + $0xb8] sm:$0xf]
    %v2045 = vld [vmem:[%s1997 + $0xbc] sm:$0xf]
    %s2046 = scalar_lea.vmem %s4, 4
    %v2047 = vld [vmem:[%s2046] sm:$0x1]
    %v2064 = vunpack.c.l.b16 %v1998
    %v2065 = vunpack.c.l.b16 %v1999
    %v2066 = vunpack.c.l.b16 %v2000
    %v2067 = vunpack.c.l.b16 %v2001
    %v2068 = vunpack.c.l.b16 %v2002
    %v2069 = vunpack.c.l.b16 %v2003
    %v2070 = vunpack.c.l.b16 %v2004
    %v2071 = vunpack.c.l.b16 %v2005
    %v2072 = vunpack.c.l.b16 %v2006
    %v2073 = vunpack.c.l.b16 %v2007
    %v2074 = vunpack.c.l.b16 %v2008
    %v2075 = vunpack.c.l.b16 %v2009
    %v2076 = vunpack.c.l.b16 %v2010
    %v2077 = vunpack.c.l.b16 %v2011
    %v2078 = vunpack.c.l.b16 %v2012
    %v2079 = vunpack.c.l.b16 %v2013
    %v2080 = vpack.c.b16 %v2065, %v2064
    %v2081 = vpack.c.b16 %v2067, %v2066
    %v2082 = vpack.c.b16 %v2069, %v2068
    %v2083 = vpack.c.b16 %v2071, %v2070
    %v2084 = vpack.c.b16 %v2073, %v2072
    %v2085 = vpack.c.b16 %v2075, %v2074
    %v2086 = vpack.c.b16 %v2077, %v2076
    %v2087 = vpack.c.b16 %v2079, %v2078
    %2096 = vmatprep.subr.bf16.mxu0 0
    %2097 = vmatpush1.bf16.msra.mxu0 %v2080
    %2098 = vmatprep.subr.bf16.mxu0 0
    %2099 = vmatpush1.bf16.msra.mxu0 %v2081
    %2100 = vmatprep.subr.bf16.mxu0 0
    %2101 = vmatpush1.bf16.msra.mxu0 %v2082
    %2102 = vmatprep.subr.bf16.mxu0 0
    %2103 = vmatpush1.bf16.msra.mxu0 %v2083
    %2104 = vmatprep.subr.bf16.mxu0 0
    %2105 = vmatpush1.bf16.msra.mxu0 %v2084
    %2106 = vmatprep.subr.bf16.mxu0 0
    %2107 = vmatpush1.bf16.msra.mxu0 %v2085
    %2108 = vmatprep.subr.bf16.mxu0 0
    %2109 = vmatpush1.bf16.msra.mxu0 %v2086
    %2110 = vmatprep.subr.bf16.mxu0 0
    %2111 = vmatpush1.bf16.msra.mxu0 %v2087
    %2112 = vmatprep.subr.bf16.mxu0 0
    %2113 = vmatpush1.bf16.msra.mxu0 0
    %2114 = vmatprep.subr.bf16.mxu0 0
    %2115 = vmatpush1.bf16.msra.mxu0 0
    %2116 = vmatprep.subr.bf16.mxu0 0
    %2117 = vmatpush1.bf16.msra.mxu0 0
    %2118 = vmatprep.subr.bf16.mxu0 0
    %2119 = vmatpush1.bf16.msra.mxu0 0
    %2120 = vmatprep.subr.bf16.mxu0 0
    %2121 = vmatpush1.bf16.msra.mxu0 0
    %2122 = vmatprep.subr.bf16.mxu0 0
    %2123 = vmatpush1.bf16.msra.mxu0 0
    %2124 = vmatprep.subr.bf16.mxu0 0
    %2125 = vmatpush1.bf16.msra.mxu0 0
    %2126 = vmatprep.subr.bf16.mxu0 0
    %2127 = vmatpush1.bf16.msra.mxu0 0
    %2128 = vmatprep.mubr.bf16.mxu0 0
    %2129 = vmatmul.mubr.bf16.gmra.mrb[0].mxu0 %v1995
    %v2130 = vpop.f32.mrb[0].mxu0
    %v2131 = vadd.f32 0.0, %v2130
    %v2132 = vpop.f32.mrb[0].mxu0
    %v2133 = vpop.f32.mrb[0].mxu0
    %v2134 = vadd.f32 0.0, %v2133
    %v2135 = vpop.f32.mrb[0].mxu0
    %2136 = vmatprep.mubr.bf16.mxu0 0
    %2137 = vmatmul.mubr.bf16.gmra.mrb[0].mxu0 %v1996
    %v2138 = vpop.f32.mrb[0].mxu0
    %v2139 = vadd.f32 0.0, %v2138
    %v2140 = vpop.f32.mrb[0].mxu0
    %v2141 = vpop.f32.mrb[0].mxu0
    %v2142 = vadd.f32 0.0, %v2141
    %v2143 = vpop.f32.mrb[0].mxu0
    %2144 = vdwg.mxu0
    %v2161 = vunpack.c.l.b16 %v2030
    %v2162 = vunpack.c.l.b16 %v2031
    %v2163 = vunpack.c.l.b16 %v2032
    %v2164 = vunpack.c.l.b16 %v2033
    %v2165 = vunpack.c.l.b16 %v2034
    %v2166 = vunpack.c.l.b16 %v2035
    %v2167 = vunpack.c.l.b16 %v2036
    %v2168 = vunpack.c.l.b16 %v2037
    %v2169 = vunpack.c.l.b16 %v2038
    %v2170 = vunpack.c.l.b16 %v2039
    %v2171 = vunpack.c.l.b16 %v2040
    %v2172 = vunpack.c.l.b16 %v2041
    %v2173 = vunpack.c.l.b16 %v2042
    %v2174 = vunpack.c.l.b16 %v2043
    %v2175 = vunpack.c.l.b16 %v2044
    %v2176 = vunpack.c.l.b16 %v2045
    %v2177 = vpack.c.b16 %v2162, %v2161
    %v2178 = vpack.c.b16 %v2164, %v2163
    %v2179 = vpack.c.b16 %v2166, %v2165
    %v2180 = vpack.c.b16 %v2168, %v2167
    %v2181 = vpack.c.b16 %v2170, %v2169
    %v2182 = vpack.c.b16 %v2172, %v2171
    %v2183 = vpack.c.b16 %v2174, %v2173
    %v2184 = vpack.c.b16 %v2176, %v2175
    %2193 = vmatprep.subr.bf16.mxu0 0
    %2194 = vmatpush1.bf16.msra.mxu0 %v2177
    %2195 = vmatprep.subr.bf16.mxu0 0
    %2196 = vmatpush1.bf16.msra.mxu0 %v2178
    %2197 = vmatprep.subr.bf16.mxu0 0
    %2198 = vmatpush1.bf16.msra.mxu0 %v2179
    %2199 = vmatprep.subr.bf16.mxu0 0
    %2200 = vmatpush1.bf16.msra.mxu0 %v2180
    %2201 = vmatprep.subr.bf16.mxu0 0
    %2202 = vmatpush1.bf16.msra.mxu0 %v2181
    %2203 = vmatprep.subr.bf16.mxu0 0
    %2204 = vmatpush1.bf16.msra.mxu0 %v2182
    %2205 = vmatprep.subr.bf16.mxu0 0
    %2206 = vmatpush1.bf16.msra.mxu0 %v2183
    %2207 = vmatprep.subr.bf16.mxu0 0
    %2208 = vmatpush1.bf16.msra.mxu0 %v2184
    %2209 = vmatprep.subr.bf16.mxu0 0
    %2210 = vmatpush1.bf16.msra.mxu0 0
    %2211 = vmatprep.subr.bf16.mxu0 0
    %2212 = vmatpush1.bf16.msra.mxu0 0
    %2213 = vmatprep.subr.bf16.mxu0 0
    %2214 = vmatpush1.bf16.msra.mxu0 0
    %2215 = vmatprep.subr.bf16.mxu0 0
    %2216 = vmatpush1.bf16.msra.mxu0 0
    %2217 = vmatprep.subr.bf16.mxu0 0
    %2218 = vmatpush1.bf16.msra.mxu0 0
    %2219 = vmatprep.subr.bf16.mxu0 0
    %2220 = vmatpush1.bf16.msra.mxu0 0
    %2221 = vmatprep.subr.bf16.mxu0 0
    %2222 = vmatpush1.bf16.msra.mxu0 0
    %2223 = vmatprep.subr.bf16.mxu0 0
    %2224 = vmatpush1.bf16.msra.mxu0 0
    %2225 = vmatprep.mubr.bf16.mxu0 0
    %2226 = vmatmul.mubr.bf16.gmra.mrb[0].mxu0 %v1995
    %v2227 = vpop.f32.mrb[0].mxu0
    %v2228 = vadd.f32 0.0, %v2227
    %v2229 = vpop.f32.mrb[0].mxu0
    %v2230 = vpop.f32.mrb[0].mxu0
    %v2231 = vadd.f32 0.0, %v2230
    %v2232 = vpop.f32.mrb[0].mxu0
    %2233 = vmatprep.mubr.bf16.mxu0 0
    %2234 = vmatmul.mubr.bf16.gmra.mrb[0].mxu0 %v1996
    %v2235 = vpop.f32.mrb[0].mxu0
    %v2236 = vadd.f32 0.0, %v2235
    %v2237 = vpop.f32.mrb[0].mxu0
    %v2238 = vpop.f32.mrb[0].mxu0
    %v2239 = vadd.f32 0.0, %v2238
    %v2240 = vpop.f32.mrb[0].mxu0
    %2241 = vdwg.mxu0
    %v2243 = vlaneseq
    %v2244 = vshrl.u32 %v2243, 7
    %v2245 = vsub.s32 0, %v2244
    %v2246 = vrot.slane %v2047, %v2245
    %v2264 = vunpack.c.l.b16 %v2014
    %v2265 = vunpack.c.l.b16 %v2015
    %v2266 = vunpack.c.l.b16 %v2016
    %v2267 = vunpack.c.l.b16 %v2017
    %v2268 = vunpack.c.l.b16 %v2018
    %v2269 = vunpack.c.l.b16 %v2019
    %v2270 = vunpack.c.l.b16 %v2020
    %v2271 = vunpack.c.l.b16 %v2021
    %v2272 = vunpack.c.l.b16 %v2022
    %v2273 = vunpack.c.l.b16 %v2023
    %v2274 = vunpack.c.l.b16 %v2024
    %v2275 = vunpack.c.l.b16 %v2025
    %v2276 = vunpack.c.l.b16 %v2026
    %v2277 = vunpack.c.l.b16 %v2027
    %v2278 = vunpack.c.l.b16 %v2028
    %v2279 = vunpack.c.l.b16 %v2029
    %v2280 = vpack.c.b16 %v2265, %v2264
    %v2281 = vpack.c.b16 %v2267, %v2266
    %v2282 = vpack.c.b16 %v2269, %v2268
    %v2283 = vpack.c.b16 %v2271, %v2270
    %v2284 = vpack.c.b16 %v2273, %v2272
    %v2285 = vpack.c.b16 %v2275, %v2274
    %v2286 = vpack.c.b16 %v2277, %v2276
    %v2287 = vpack.c.b16 %v2279, %v2278
    %2296 = vmatprep.subr.bf16.mxu0 0
    %2297 = vmatpush1.bf16.msra.mxu0 %v2280
    %2298 = vmatprep.subr.bf16.mxu0 0
    %2299 = vmatpush1.bf16.msra.mxu0 %v2281
    %2300 = vmatprep.subr.bf16.mxu0 0
    %2301 = vmatpush1.bf16.msra.mxu0 %v2282
    %2302 = vmatprep.subr.bf16.mxu0 0
    %2303 = vmatpush1.bf16.msra.mxu0 %v2283
    %2304 = vmatprep.subr.bf16.mxu0 0
    %2305 = vmatpush1.bf16.msra.mxu0 %v2284
    %2306 = vmatprep.subr.bf16.mxu0 0
    %2307 = vmatpush1.bf16.msra.mxu0 %v2285
    %2308 = vmatprep.subr.bf16.mxu0 0
    %2309 = vmatpush1.bf16.msra.mxu0 %v2286
    %2310 = vmatprep.subr.bf16.mxu0 0
    %2311 = vmatpush1.bf16.msra.mxu0 %v2287
    %2312 = vmatprep.subr.bf16.mxu0 0
    %2313 = vmatpush1.bf16.msra.mxu0 0
    %2314 = vmatprep.subr.bf16.mxu0 0
    %2315 = vmatpush1.bf16.msra.mxu0 0
    %2316 = vmatprep.subr.bf16.mxu0 0
    %2317 = vmatpush1.bf16.msra.mxu0 0
    %2318 = vmatprep.subr.bf16.mxu0 0
    %2319 = vmatpush1.bf16.msra.mxu0 0
    %2320 = vmatprep.subr.bf16.mxu0 0
    %2321 = vmatpush1.bf16.msra.mxu0 0
    %2322 = vmatprep.subr.bf16.mxu0 0
    %2323 = vmatpush1.bf16.msra.mxu0 0
    %2324 = vmatprep.subr.bf16.mxu0 0
    %2325 = vmatpush1.bf16.msra.mxu0 0
    %2326 = vmatprep.subr.bf16.mxu0 0
    %2327 = vmatpush1.bf16.msra.mxu0 0
    %2328 = vmatprep.mubr.bf16.mxu0 0
    %2329 = vmatmul.mubr.bf16.gmra.mrb[0].mxu0 %v1995
    %v2330 = vpop.f32.mrb[0].mxu0
    %v2331 = vadd.f32 %v2246, %v2330
    %v2332 = vpop.f32.mrb[0].mxu0
    %v2333 = vpop.f32.mrb[0].mxu0
    %v2334 = vadd.f32 %v2246, %v2333
    %v2335 = vpop.f32.mrb[0].mxu0
    %2336 = vmatprep.mubr.bf16.mxu0 0
    %2337 = vmatmul.mubr.bf16.gmra.mrb[0].mxu0 %v1996
    %v2338 = vpop.f32.mrb[0].mxu0
    %v2339 = vadd.f32 %v2246, %v2338
    %v2340 = vpop.f32.mrb[0].mxu0
    %v2341 = vpop.f32.mrb[0].mxu0
    %v2342 = vadd.f32 %v2246, %v2341
    %v2343 = vpop.f32.mrb[0].mxu0
    %2344 = vdwg.mxu0
    %v2345 = vrot.slane %v2131, 7
    %v2346 = vrot.slane %v2134, 7
    %v2347 = vrot.slane %v2139, 7
    %v2348 = vrot.slane %v2142, 7
    %v2349 = vsel %vm383, %v2347, %v2348
    %v2350 = vsel %vm383, %v2346, %v2347
    %v2351 = vsel %vm383, %v2345, %v2346
    %v2352 = vsel %vm383, %v2348, %v2345
    %v2353 = vsel %vm392, %v2352, 0.0
    %v2354 = vsel %vm393, %v2351, 0.0
    %v2355 = vsel %vm394, %v2350, 0.0
    %v2356 = vsel %vm395, %v2349, 0.0
    %v2357 = vadd.f32 %v2331, %v2353
    %v2358 = vadd.f32 %v2334, %v2354
    %v2359 = vadd.f32 %v2339, %v2355
    %v2360 = vadd.f32 %v2342, %v2356
    %v2361 = vrot.slane %v2228, 1
    %v2362 = vrot.slane %v2231, 1
    %v2363 = vrot.slane %v2236, 1
    %v2364 = vrot.slane %v2239, 1
    %v2365 = vsel %vm408, %v2363, %v2364
    %v2366 = vsel %vm408, %v2362, %v2363
    %v2367 = vsel %vm408, %v2361, %v2362
    %v2368 = vsel %vm408, %v2364, %v2361
    %v2369 = vsel %vm417, %v2367, 0.0
    %v2370 = vsel %vm418, %v2366, 0.0
    %v2371 = vsel %vm419, %v2365, 0.0
    %v2372 = vsel %vm420, %v2368, 0.0
    %v2373 = vadd.f32 %v2357, %v2369
    %v2374 = vadd.f32 %v2358, %v2370
    %v2375 = vadd.f32 %v2359, %v2371
    %v2376 = vadd.f32 %v2360, %v2372
    %v2377 = vmul.f32 %v2373, 0.01
    %v2378 = vmul.f32 %v2374, 0.01
    %v2379 = vmul.f32 %v2375, 0.01
    %v2380 = vmul.f32 %v2376, 0.01
    %v2381 = vmax.f32 %v2373, %v2377
    %v2382 = vmax.f32 %v2374, %v2378
    %v2383 = vmax.f32 %v2375, %v2379
    %v2384 = vmax.f32 %v2376, %v2380
    %v2385 = vpack.c.bf16 %v2382, %v2381
    %v2386 = vpack.c.bf16 %v2384, %v2383
    %s2387 = scalar_lea.vmem [#allocation2], 960
    %v2388 = vld [vmem:[%s2387] sm:$0xf]
    %v2389 = vld [vmem:[%s2387 + $0x4] sm:$0xf]
    %v2390 = vld [vmem:[%s2387 + $0x8] sm:$0xf]
    %v2391 = vld [vmem:[%s2387 + $0xc] sm:$0xf]
    %v2392 = vld [vmem:[%s2387 + $0x10] sm:$0xf]
    %v2393 = vld [vmem:[%s2387 + $0x14] sm:$0xf]
    %v2394 = vld [vmem:[%s2387 + $0x18] sm:$0xf]
    %v2395 = vld [vmem:[%s2387 + $0x1c] sm:$0xf]
    %v2396 = vld [vmem:[%s2387 + $0x20] sm:$0xf]
    %v2397 = vld [vmem:[%s2387 + $0x24] sm:$0xf]
    %v2398 = vld [vmem:[%s2387 + $0x28] sm:$0xf]
    %v2399 = vld [vmem:[%s2387 + $0x2c] sm:$0xf]
    %v2400 = vld [vmem:[%s2387 + $0x30] sm:$0xf]
    %v2401 = vld [vmem:[%s2387 + $0x34] sm:$0xf]
    %v2402 = vld [vmem:[%s2387 + $0x38] sm:$0xf]
    %v2403 = vld [vmem:[%s2387 + $0x3c] sm:$0xf]
    %v2404 = vld [vmem:[%s2387 + $0x40] sm:$0xf]
    %v2405 = vld [vmem:[%s2387 + $0x44] sm:$0xf]
    %v2406 = vld [vmem:[%s2387 + $0x48] sm:$0xf]
    %v2407 = vld [vmem:[%s2387 + $0x4c] sm:$0xf]
    %v2408 = vld [vmem:[%s2387 + $0x50] sm:$0xf]
    %v2409 = vld [vmem:[%s2387 + $0x54] sm:$0xf]
    %v2410 = vld [vmem:[%s2387 + $0x58] sm:$0xf]
    %v2411 = vld [vmem:[%s2387 + $0x5c] sm:$0xf]
    %v2412 = vld [vmem:[%s2387 + $0x60] sm:$0xf]
    %v2413 = vld [vmem:[%s2387 + $0x64] sm:$0xf]
    %v2414 = vld [vmem:[%s2387 + $0x68] sm:$0xf]
    %v2415 = vld [vmem:[%s2387 + $0x6c] sm:$0xf]
    %v2416 = vld [vmem:[%s2387 + $0x70] sm:$0xf]
    %v2417 = vld [vmem:[%s2387 + $0x74] sm:$0xf]
    %v2418 = vld [vmem:[%s2387 + $0x78] sm:$0xf]
    %v2419 = vld [vmem:[%s2387 + $0x7c] sm:$0xf]
    %v2420 = vld [vmem:[%s2387 + $0x80] sm:$0xf]
    %v2421 = vld [vmem:[%s2387 + $0x84] sm:$0xf]
    %v2422 = vld [vmem:[%s2387 + $0x88] sm:$0xf]
    %v2423 = vld [vmem:[%s2387 + $0x8c] sm:$0xf]
    %v2424 = vld [vmem:[%s2387 + $0x90] sm:$0xf]
    %v2425 = vld [vmem:[%s2387 + $0x94] sm:$0xf]
    %v2426 = vld [vmem:[%s2387 + $0x98] sm:$0xf]
    %v2427 = vld [vmem:[%s2387 + $0x9c] sm:$0xf]
    %v2428 = vld [vmem:[%s2387 + $0xa0] sm:$0xf]
    %v2429 = vld [vmem:[%s2387 + $0xa4] sm:$0xf]
    %v2430 = vld [vmem:[%s2387 + $0xa8] sm:$0xf]
    %v2431 = vld [vmem:[%s2387 + $0xac] sm:$0xf]
    %v2432 = vld [vmem:[%s2387 + $0xb0] sm:$0xf]
    %v2433 = vld [vmem:[%s2387 + $0xb4] sm:$0xf]
    %v2434 = vld [vmem:[%s2387 + $0xb8] sm:$0xf]
    %v2435 = vld [vmem:[%s2387 + $0xbc] sm:$0xf]
    %s2436 = scalar_lea.vmem %s4, 5
    %v2437 = vld [vmem:[%s2436] sm:$0x1]
    %v2454 = vunpack.c.l.b16 %v2388
    %v2455 = vunpack.c.l.b16 %v2389
    %v2456 = vunpack.c.l.b16 %v2390
    %v2457 = vunpack.c.l.b16 %v2391
    %v2458 = vunpack.c.l.b16 %v2392
    %v2459 = vunpack.c.l.b16 %v2393
    %v2460 = vunpack.c.l.b16 %v2394
    %v2461 = vunpack.c.l.b16 %v2395
    %v2462 = vunpack.c.l.b16 %v2396
    %v2463 = vunpack.c.l.b16 %v2397
    %v2464 = vunpack.c.l.b16 %v2398
    %v2465 = vunpack.c.l.b16 %v2399
    %v2466 = vunpack.c.l.b16 %v2400
    %v2467 = vunpack.c.l.b16 %v2401
    %v2468 = vunpack.c.l.b16 %v2402
    %v2469 = vunpack.c.l.b16 %v2403
    %v2470 = vpack.c.b16 %v2455, %v2454
    %v2471 = vpack.c.b16 %v2457, %v2456
    %v2472 = vpack.c.b16 %v2459, %v2458
    %v2473 = vpack.c.b16 %v2461, %v2460
    %v2474 = vpack.c.b16 %v2463, %v2462
    %v2475 = vpack.c.b16 %v2465, %v2464
    %v2476 = vpack.c.b16 %v2467, %v2466
    %v2477 = vpack.c.b16 %v2469, %v2468
    %2486 = vmatprep.subr.bf16.mxu0 0
    %2487 = vmatpush1.bf16.msra.mxu0 %v2470
    %2488 = vmatprep.subr.bf16.mxu0 0
    %2489 = vmatpush1.bf16.msra.mxu0 %v2471
    %2490 = vmatprep.subr.bf16.mxu0 0
    %2491 = vmatpush1.bf16.msra.mxu0 %v2472
    %2492 = vmatprep.subr.bf16.mxu0 0
    %2493 = vmatpush1.bf16.msra.mxu0 %v2473
    %2494 = vmatprep.subr.bf16.mxu0 0
    %2495 = vmatpush1.bf16.msra.mxu0 %v2474
    %2496 = vmatprep.subr.bf16.mxu0 0
    %2497 = vmatpush1.bf16.msra.mxu0 %v2475
    %2498 = vmatprep.subr.bf16.mxu0 0
    %2499 = vmatpush1.bf16.msra.mxu0 %v2476
    %2500 = vmatprep.subr.bf16.mxu0 0
    %2501 = vmatpush1.bf16.msra.mxu0 %v2477
    %2502 = vmatprep.subr.bf16.mxu0 0
    %2503 = vmatpush1.bf16.msra.mxu0 0
    %2504 = vmatprep.subr.bf16.mxu0 0
    %2505 = vmatpush1.bf16.msra.mxu0 0
    %2506 = vmatprep.subr.bf16.mxu0 0
    %2507 = vmatpush1.bf16.msra.mxu0 0
    %2508 = vmatprep.subr.bf16.mxu0 0
    %2509 = vmatpush1.bf16.msra.mxu0 0
    %2510 = vmatprep.subr.bf16.mxu0 0
    %2511 = vmatpush1.bf16.msra.mxu0 0
    %2512 = vmatprep.subr.bf16.mxu0 0
    %2513 = vmatpush1.bf16.msra.mxu0 0
    %2514 = vmatprep.subr.bf16.mxu0 0
    %2515 = vmatpush1.bf16.msra.mxu0 0
    %2516 = vmatprep.subr.bf16.mxu0 0
    %2517 = vmatpush1.bf16.msra.mxu0 0
    %2518 = vmatprep.mubr.bf16.mxu0 0
    %2519 = vmatmul.mubr.bf16.gmra.mrb[0].mxu0 %v2385
    %v2520 = vpop.f32.mrb[0].mxu0
    %v2521 = vadd.f32 0.0, %v2520
    %v2522 = vpop.f32.mrb[0].mxu0
    %v2523 = vpop.f32.mrb[0].mxu0
    %v2524 = vadd.f32 0.0, %v2523
    %v2525 = vpop.f32.mrb[0].mxu0
    %2526 = vmatprep.mubr.bf16.mxu0 0
    %2527 = vmatmul.mubr.bf16.gmra.mrb[0].mxu0 %v2386
    %v2528 = vpop.f32.mrb[0].mxu0
    %v2529 = vadd.f32 0.0, %v2528
    %v2530 = vpop.f32.mrb[0].mxu0
    %v2531 = vpop.f32.mrb[0].mxu0
    %v2532 = vadd.f32 0.0, %v2531
    %v2533 = vpop.f32.mrb[0].mxu0
    %2534 = vdwg.mxu0
    %v2551 = vunpack.c.l.b16 %v2420
    %v2552 = vunpack.c.l.b16 %v2421
    %v2553 = vunpack.c.l.b16 %v2422
    %v2554 = vunpack.c.l.b16 %v2423
    %v2555 = vunpack.c.l.b16 %v2424
    %v2556 = vunpack.c.l.b16 %v2425
    %v2557 = vunpack.c.l.b16 %v2426
    %v2558 = vunpack.c.l.b16 %v2427
    %v2559 = vunpack.c.l.b16 %v2428
    %v2560 = vunpack.c.l.b16 %v2429
    %v2561 = vunpack.c.l.b16 %v2430
    %v2562 = vunpack.c.l.b16 %v2431
    %v2563 = vunpack.c.l.b16 %v2432
    %v2564 = vunpack.c.l.b16 %v2433
    %v2565 = vunpack.c.l.b16 %v2434
    %v2566 = vunpack.c.l.b16 %v2435
    %v2567 = vpack.c.b16 %v2552, %v2551
    %v2568 = vpack.c.b16 %v2554, %v2553
    %v2569 = vpack.c.b16 %v2556, %v2555
    %v2570 = vpack.c.b16 %v2558, %v2557
    %v2571 = vpack.c.b16 %v2560, %v2559
    %v2572 = vpack.c.b16 %v2562, %v2561
    %v2573 = vpack.c.b16 %v2564, %v2563
    %v2574 = vpack.c.b16 %v2566, %v2565
    %2583 = vmatprep.subr.bf16.mxu0 0
    %2584 = vmatpush1.bf16.msra.mxu0 %v2567
    %2585 = vmatprep.subr.bf16.mxu0 0
    %2586 = vmatpush1.bf16.msra.mxu0 %v2568
    %2587 = vmatprep.subr.bf16.mxu0 0
    %2588 = vmatpush1.bf16.msra.mxu0 %v2569
    %2589 = vmatprep.subr.bf16.mxu0 0
    %2590 = vmatpush1.bf16.msra.mxu0 %v2570
    %2591 = vmatprep.subr.bf16.mxu0 0
    %2592 = vmatpush1.bf16.msra.mxu0 %v2571
    %2593 = vmatprep.subr.bf16.mxu0 0
    %2594 = vmatpush1.bf16.msra.mxu0 %v2572
    %2595 = vmatprep.subr.bf16.mxu0 0
    %2596 = vmatpush1.bf16.msra.mxu0 %v2573
    %2597 = vmatprep.subr.bf16.mxu0 0
    %2598 = vmatpush1.bf16.msra.mxu0 %v2574
    %2599 = vmatprep.subr.bf16.mxu0 0
    %2600 = vmatpush1.bf16.msra.mxu0 0
    %2601 = vmatprep.subr.bf16.mxu0 0
    %2602 = vmatpush1.bf16.msra.mxu0 0
    %2603 = vmatprep.subr.bf16.mxu0 0
    %2604 = vmatpush1.bf16.msra.mxu0 0
    %2605 = vmatprep.subr.bf16.mxu0 0
    %2606 = vmatpush1.bf16.msra.mxu0 0
    %2607 = vmatprep.subr.bf16.mxu0 0
    %2608 = vmatpush1.bf16.msra.mxu0 0
    %2609 = vmatprep.subr.bf16.mxu0 0
    %2610 = vmatpush1.bf16.msra.mxu0 0
    %2611 = vmatprep.subr.bf16.mxu0 0
    %2612 = vmatpush1.bf16.msra.mxu0 0
    %2613 = vmatprep.subr.bf16.mxu0 0
    %2614 = vmatpush1.bf16.msra.mxu0 0
    %2615 = vmatprep.mubr.bf16.mxu0 0
    %2616 = vmatmul.mubr.bf16.gmra.mrb[0].mxu0 %v2385
    %v2617 = vpop.f32.mrb[0].mxu0
    %v2618 = vadd.f32 0.0, %v2617
    %v2619 = vpop.f32.mrb[0].mxu0
    %v2620 = vpop.f32.mrb[0].mxu0
    %v2621 = vadd.f32 0.0, %v2620
    %v2622 = vpop.f32.mrb[0].mxu0
    %2623 = vmatprep.mubr.bf16.mxu0 0
    %2624 = vmatmul.mubr.bf16.gmra.mrb[0].mxu0 %v2386
    %v2625 = vpop.f32.mrb[0].mxu0
    %v2626 = vadd.f32 0.0, %v2625
    %v2627 = vpop.f32.mrb[0].mxu0
    %v2628 = vpop.f32.mrb[0].mxu0
    %v2629 = vadd.f32 0.0, %v2628
    %v2630 = vpop.f32.mrb[0].mxu0
    %2631 = vdwg.mxu0
    %v2633 = vlaneseq
    %v2634 = vshrl.u32 %v2633, 7
    %v2635 = vsub.s32 0, %v2634
    %v2636 = vrot.slane %v2437, %v2635
    %v2654 = vunpack.c.l.b16 %v2404
    %v2655 = vunpack.c.l.b16 %v2405
    %v2656 = vunpack.c.l.b16 %v2406
    %v2657 = vunpack.c.l.b16 %v2407
    %v2658 = vunpack.c.l.b16 %v2408
    %v2659 = vunpack.c.l.b16 %v2409
    %v2660 = vunpack.c.l.b16 %v2410
    %v2661 = vunpack.c.l.b16 %v2411
    %v2662 = vunpack.c.l.b16 %v2412
    %v2663 = vunpack.c.l.b16 %v2413
    %v2664 = vunpack.c.l.b16 %v2414
    %v2665 = vunpack.c.l.b16 %v2415
    %v2666 = vunpack.c.l.b16 %v2416
    %v2667 = vunpack.c.l.b16 %v2417
    %v2668 = vunpack.c.l.b16 %v2418
    %v2669 = vunpack.c.l.b16 %v2419
    %v2670 = vpack.c.b16 %v2655, %v2654
    %v2671 = vpack.c.b16 %v2657, %v2656
    %v2672 = vpack.c.b16 %v2659, %v2658
    %v2673 = vpack.c.b16 %v2661, %v2660
    %v2674 = vpack.c.b16 %v2663, %v2662
    %v2675 = vpack.c.b16 %v2665, %v2664
    %v2676 = vpack.c.b16 %v2667, %v2666
    %v2677 = vpack.c.b16 %v2669, %v2668
    %2686 = vmatprep.subr.bf16.mxu0 0
    %2687 = vmatpush1.bf16.msra.mxu0 %v2670
    %2688 = vmatprep.subr.bf16.mxu0 0
    %2689 = vmatpush1.bf16.msra.mxu0 %v2671
    %2690 = vmatprep.subr.bf16.mxu0 0
    %2691 = vmatpush1.bf16.msra.mxu0 %v2672
    %2692 = vmatprep.subr.bf16.mxu0 0
    %2693 = vmatpush1.bf16.msra.mxu0 %v2673
    %2694 = vmatprep.subr.bf16.mxu0 0
    %2695 = vmatpush1.bf16.msra.mxu0 %v2674
    %2696 = vmatprep.subr.bf16.mxu0 0
    %2697 = vmatpush1.bf16.msra.mxu0 %v2675
    %2698 = vmatprep.subr.bf16.mxu0 0
    %2699 = vmatpush1.bf16.msra.mxu0 %v2676
    %2700 = vmatprep.subr.bf16.mxu0 0
    %2701 = vmatpush1.bf16.msra.mxu0 %v2677
    %2702 = vmatprep.subr.bf16.mxu0 0
    %2703 = vmatpush1.bf16.msra.mxu0 0
    %2704 = vmatprep.subr.bf16.mxu0 0
    %2705 = vmatpush1.bf16.msra.mxu0 0
    %2706 = vmatprep.subr.bf16.mxu0 0
    %2707 = vmatpush1.bf16.msra.mxu0 0
    %2708 = vmatprep.subr.bf16.mxu0 0
    %2709 = vmatpush1.bf16.msra.mxu0 0
    %2710 = vmatprep.subr.bf16.mxu0 0
    %2711 = vmatpush1.bf16.msra.mxu0 0
    %2712 = vmatprep.subr.bf16.mxu0 0
    %2713 = vmatpush1.bf16.msra.mxu0 0
    %2714 = vmatprep.subr.bf16.mxu0 0
    %2715 = vmatpush1.bf16.msra.mxu0 0
    %2716 = vmatprep.subr.bf16.mxu0 0
    %2717 = vmatpush1.bf16.msra.mxu0 0
    %2718 = vmatprep.mubr.bf16.mxu0 0
    %2719 = vmatmul.mubr.bf16.gmra.mrb[0].mxu0 %v2385
    %v2720 = vpop.f32.mrb[0].mxu0
    %v2721 = vadd.f32 %v2636, %v2720
    %v2722 = vpop.f32.mrb[0].mxu0
    %v2723 = vpop.f32.mrb[0].mxu0
    %v2724 = vadd.f32 %v2636, %v2723
    %v2725 = vpop.f32.mrb[0].mxu0
    %2726 = vmatprep.mubr.bf16.mxu0 0
    %2727 = vmatmul.mubr.bf16.gmra.mrb[0].mxu0 %v2386
    %v2728 = vpop.f32.mrb[0].mxu0
    %v2729 = vadd.f32 %v2636, %v2728
    %v2730 = vpop.f32.mrb[0].mxu0
    %v2731 = vpop.f32.mrb[0].mxu0
    %v2732 = vadd.f32 %v2636, %v2731
    %v2733 = vpop.f32.mrb[0].mxu0
    %2734 = vdwg.mxu0
    %v2735 = vrot.slane %v2521, 7
    %v2736 = vrot.slane %v2524, 7
    %v2737 = vrot.slane %v2529, 7
    %v2738 = vrot.slane %v2532, 7
    %v2739 = vsel %vm383, %v2737, %v2738
    %v2740 = vsel %vm383, %v2736, %v2737
    %v2741 = vsel %vm383, %v2735, %v2736
    %v2742 = vsel %vm383, %v2738, %v2735
    %v2743 = vsel %vm392, %v2742, 0.0
    %v2744 = vsel %vm393, %v2741, 0.0
    %v2745 = vsel %vm394, %v2740, 0.0
    %v2746 = vsel %vm395, %v2739, 0.0
    %v2747 = vadd.f32 %v2721, %v2743
    %v2748 = vadd.f32 %v2724, %v2744
    %v2749 = vadd.f32 %v2729, %v2745
    %v2750 = vadd.f32 %v2732, %v2746
    %v2751 = vrot.slane %v2618, 1
    %v2752 = vrot.slane %v2621, 1
    %v2753 = vrot.slane %v2626, 1
    %v2754 = vrot.slane %v2629, 1
    %v2755 = vsel %vm408, %v2753, %v2754
    %v2756 = vsel %vm408, %v2752, %v2753
    %v2757 = vsel %vm408, %v2751, %v2752
    %v2758 = vsel %vm408, %v2754, %v2751
    %v2759 = vsel %vm417, %v2757, 0.0
    %v2760 = vsel %vm418, %v2756, 0.0
    %v2761 = vsel %vm419, %v2755, 0.0
    %v2762 = vsel %vm420, %v2758, 0.0
    %v2763 = vadd.f32 %v2747, %v2759
    %v2764 = vadd.f32 %v2748, %v2760
    %v2765 = vadd.f32 %v2749, %v2761
    %v2766 = vadd.f32 %v2750, %v2762
    %v2767 = vmul.f32 %v2763, 0.01
    %v2768 = vmul.f32 %v2764, 0.01
    %v2769 = vmul.f32 %v2765, 0.01
    %v2770 = vmul.f32 %v2766, 0.01
    %v2771 = vmax.f32 %v2763, %v2767
    %v2772 = vmax.f32 %v2764, %v2768
    %v2773 = vmax.f32 %v2765, %v2769
    %v2774 = vmax.f32 %v2766, %v2770
    %v2775 = vpack.c.bf16 %v2772, %v2771
    %v2776 = vpack.c.bf16 %v2774, %v2773
    %s2777 = scalar_lea.vmem [#allocation2], 1152
    %v2778 = vld [vmem:[%s2777] sm:$0xf]
    %v2779 = vld [vmem:[%s2777 + $0x4] sm:$0xf]
    %v2780 = vld [vmem:[%s2777 + $0x8] sm:$0xf]
    %v2781 = vld [vmem:[%s2777 + $0xc] sm:$0xf]
    %v2782 = vld [vmem:[%s2777 + $0x10] sm:$0xf]
    %v2783 = vld [vmem:[%s2777 + $0x14] sm:$0xf]
    %v2784 = vld [vmem:[%s2777 + $0x18] sm:$0xf]
    %v2785 = vld [vmem:[%s2777 + $0x1c] sm:$0xf]
    %v2786 = vld [vmem:[%s2777 + $0x20] sm:$0xf]
    %v2787 = vld [vmem:[%s2777 + $0x24] sm:$0xf]
    %v2788 = vld [vmem:[%s2777 + $0x28] sm:$0xf]
    %v2789 = vld [vmem:[%s2777 + $0x2c] sm:$0xf]
    %v2790 = vld [vmem:[%s2777 + $0x30] sm:$0xf]
    %v2791 = vld [vmem:[%s2777 + $0x34] sm:$0xf]
    %v2792 = vld [vmem:[%s2777 + $0x38] sm:$0xf]
    %v2793 = vld [vmem:[%s2777 + $0x3c] sm:$0xf]
    %v2794 = vld [vmem:[%s2777 + $0x40] sm:$0xf]
    %v2795 = vld [vmem:[%s2777 + $0x44] sm:$0xf]
    %v2796 = vld [vmem:[%s2777 + $0x48] sm:$0xf]
    %v2797 = vld [vmem:[%s2777 + $0x4c] sm:$0xf]
    %v2798 = vld [vmem:[%s2777 + $0x50] sm:$0xf]
    %v2799 = vld [vmem:[%s2777 + $0x54] sm:$0xf]
    %v2800 = vld [vmem:[%s2777 + $0x58] sm:$0xf]
    %v2801 = vld [vmem:[%s2777 + $0x5c] sm:$0xf]
    %v2802 = vld [vmem:[%s2777 + $0x60] sm:$0xf]
    %v2803 = vld [vmem:[%s2777 + $0x64] sm:$0xf]
    %v2804 = vld [vmem:[%s2777 + $0x68] sm:$0xf]
    %v2805 = vld [vmem:[%s2777 + $0x6c] sm:$0xf]
    %v2806 = vld [vmem:[%s2777 + $0x70] sm:$0xf]
    %v2807 = vld [vmem:[%s2777 + $0x74] sm:$0xf]
    %v2808 = vld [vmem:[%s2777 + $0x78] sm:$0xf]
    %v2809 = vld [vmem:[%s2777 + $0x7c] sm:$0xf]
    %v2810 = vld [vmem:[%s2777 + $0x80] sm:$0xf]
    %v2811 = vld [vmem:[%s2777 + $0x84] sm:$0xf]
    %v2812 = vld [vmem:[%s2777 + $0x88] sm:$0xf]
    %v2813 = vld [vmem:[%s2777 + $0x8c] sm:$0xf]
    %v2814 = vld [vmem:[%s2777 + $0x90] sm:$0xf]
    %v2815 = vld [vmem:[%s2777 + $0x94] sm:$0xf]
    %v2816 = vld [vmem:[%s2777 + $0x98] sm:$0xf]
    %v2817 = vld [vmem:[%s2777 + $0x9c] sm:$0xf]
    %v2818 = vld [vmem:[%s2777 + $0xa0] sm:$0xf]
    %v2819 = vld [vmem:[%s2777 + $0xa4] sm:$0xf]
    %v2820 = vld [vmem:[%s2777 + $0xa8] sm:$0xf]
    %v2821 = vld [vmem:[%s2777 + $0xac] sm:$0xf]
    %v2822 = vld [vmem:[%s2777 + $0xb0] sm:$0xf]
    %v2823 = vld [vmem:[%s2777 + $0xb4] sm:$0xf]
    %v2824 = vld [vmem:[%s2777 + $0xb8] sm:$0xf]
    %v2825 = vld [vmem:[%s2777 + $0xbc] sm:$0xf]
    %s2826 = scalar_lea.vmem %s4, 6
    %v2827 = vld [vmem:[%s2826] sm:$0x1]
    %v2844 = vunpack.c.l.b16 %v2778
    %v2845 = vunpack.c.l.b16 %v2779
    %v2846 = vunpack.c.l.b16 %v2780
    %v2847 = vunpack.c.l.b16 %v2781
    %v2848 = vunpack.c.l.b16 %v2782
    %v2849 = vunpack.c.l.b16 %v2783
    %v2850 = vunpack.c.l.b16 %v2784
    %v2851 = vunpack.c.l.b16 %v2785
    %v2852 = vunpack.c.l.b16 %v2786
    %v2853 = vunpack.c.l.b16 %v2787
    %v2854 = vunpack.c.l.b16 %v2788
    %v2855 = vunpack.c.l.b16 %v2789
    %v2856 = vunpack.c.l.b16 %v2790
    %v2857 = vunpack.c.l.b16 %v2791
    %v2858 = vunpack.c.l.b16 %v2792
    %v2859 = vunpack.c.l.b16 %v2793
    %v2860 = vpack.c.b16 %v2845, %v2844
    %v2861 = vpack.c.b16 %v2847, %v2846
    %v2862 = vpack.c.b16 %v2849, %v2848
    %v2863 = vpack.c.b16 %v2851, %v2850
    %v2864 = vpack.c.b16 %v2853, %v2852
    %v2865 = vpack.c.b16 %v2855, %v2854
    %v2866 = vpack.c.b16 %v2857, %v2856
    %v2867 = vpack.c.b16 %v2859, %v2858
    %2876 = vmatprep.subr.bf16.mxu0 0
    %2877 = vmatpush1.bf16.msra.mxu0 %v2860
    %2878 = vmatprep.subr.bf16.mxu0 0
    %2879 = vmatpush1.bf16.msra.mxu0 %v2861
    %2880 = vmatprep.subr.bf16.mxu0 0
    %2881 = vmatpush1.bf16.msra.mxu0 %v2862
    %2882 = vmatprep.subr.bf16.mxu0 0
    %2883 = vmatpush1.bf16.msra.mxu0 %v2863
    %2884 = vmatprep.subr.bf16.mxu0 0
    %2885 = vmatpush1.bf16.msra.mxu0 %v2864
    %2886 = vmatprep.subr.bf16.mxu0 0
    %2887 = vmatpush1.bf16.msra.mxu0 %v2865
    %2888 = vmatprep.subr.bf16.mxu0 0
    %2889 = vmatpush1.bf16.msra.mxu0 %v2866
    %2890 = vmatprep.subr.bf16.mxu0 0
    %2891 = vmatpush1.bf16.msra.mxu0 %v2867
    %2892 = vmatprep.subr.bf16.mxu0 0
    %2893 = vmatpush1.bf16.msra.mxu0 0
    %2894 = vmatprep.subr.bf16.mxu0 0
    %2895 = vmatpush1.bf16.msra.mxu0 0
    %2896 = vmatprep.subr.bf16.mxu0 0
    %2897 = vmatpush1.bf16.msra.mxu0 0
    %2898 = vmatprep.subr.bf16.mxu0 0
    %2899 = vmatpush1.bf16.msra.mxu0 0
    %2900 = vmatprep.subr.bf16.mxu0 0
    %2901 = vmatpush1.bf16.msra.mxu0 0
    %2902 = vmatprep.subr.bf16.mxu0 0
    %2903 = vmatpush1.bf16.msra.mxu0 0
    %2904 = vmatprep.subr.bf16.mxu0 0
    %2905 = vmatpush1.bf16.msra.mxu0 0
    %2906 = vmatprep.subr.bf16.mxu0 0
    %2907 = vmatpush1.bf16.msra.mxu0 0
    %2908 = vmatprep.mubr.bf16.mxu0 0
    %2909 = vmatmul.mubr.bf16.gmra.mrb[0].mxu0 %v2775
    %v2910 = vpop.f32.mrb[0].mxu0
    %v2911 = vadd.f32 0.0, %v2910
    %v2912 = vpop.f32.mrb[0].mxu0
    %v2913 = vpop.f32.mrb[0].mxu0
    %v2914 = vadd.f32 0.0, %v2913
    %v2915 = vpop.f32.mrb[0].mxu0
    %2916 = vmatprep.mubr.bf16.mxu0 0
    %2917 = vmatmul.mubr.bf16.gmra.mrb[0].mxu0 %v2776
    %v2918 = vpop.f32.mrb[0].mxu0
    %v2919 = vadd.f32 0.0, %v2918
    %v2920 = vpop.f32.mrb[0].mxu0
    %v2921 = vpop.f32.mrb[0].mxu0
    %v2922 = vadd.f32 0.0, %v2921
    %v2923 = vpop.f32.mrb[0].mxu0
    %2924 = vdwg.mxu0
    %v2941 = vunpack.c.l.b16 %v2810
    %v2942 = vunpack.c.l.b16 %v2811
    %v2943 = vunpack.c.l.b16 %v2812
    %v2944 = vunpack.c.l.b16 %v2813
    %v2945 = vunpack.c.l.b16 %v2814
    %v2946 = vunpack.c.l.b16 %v2815
    %v2947 = vunpack.c.l.b16 %v2816
    %v2948 = vunpack.c.l.b16 %v2817
    %v2949 = vunpack.c.l.b16 %v2818
    %v2950 = vunpack.c.l.b16 %v2819
    %v2951 = vunpack.c.l.b16 %v2820
    %v2952 = vunpack.c.l.b16 %v2821
    %v2953 = vunpack.c.l.b16 %v2822
    %v2954 = vunpack.c.l.b16 %v2823
    %v2955 = vunpack.c.l.b16 %v2824
    %v2956 = vunpack.c.l.b16 %v2825
    %v2957 = vpack.c.b16 %v2942, %v2941
    %v2958 = vpack.c.b16 %v2944, %v2943
    %v2959 = vpack.c.b16 %v2946, %v2945
    %v2960 = vpack.c.b16 %v2948, %v2947
    %v2961 = vpack.c.b16 %v2950, %v2949
    %v2962 = vpack.c.b16 %v2952, %v2951
    %v2963 = vpack.c.b16 %v2954, %v2953
    %v2964 = vpack.c.b16 %v2956, %v2955
    %2973 = vmatprep.subr.bf16.mxu0 0
    %2974 = vmatpush1.bf16.msra.mxu0 %v2957
    %2975 = vmatprep.subr.bf16.mxu0 0
    %2976 = vmatpush1.bf16.msra.mxu0 %v2958
    %2977 = vmatprep.subr.bf16.mxu0 0
    %2978 = vmatpush1.bf16.msra.mxu0 %v2959
    %2979 = vmatprep.subr.bf16.mxu0 0
    %2980 = vmatpush1.bf16.msra.mxu0 %v2960
    %2981 = vmatprep.subr.bf16.mxu0 0
    %2982 = vmatpush1.bf16.msra.mxu0 %v2961
    %2983 = vmatprep.subr.bf16.mxu0 0
    %2984 = vmatpush1.bf16.msra.mxu0 %v2962
    %2985 = vmatprep.subr.bf16.mxu0 0
    %2986 = vmatpush1.bf16.msra.mxu0 %v2963
    %2987 = vmatprep.subr.bf16.mxu0 0
    %2988 = vmatpush1.bf16.msra.mxu0 %v2964
    %2989 = vmatprep.subr.bf16.mxu0 0
    %2990 = vmatpush1.bf16.msra.mxu0 0
    %2991 = vmatprep.subr.bf16.mxu0 0
    %2992 = vmatpush1.bf16.msra.mxu0 0
    %2993 = vmatprep.subr.bf16.mxu0 0
    %2994 = vmatpush1.bf16.msra.mxu0 0
    %2995 = vmatprep.subr.bf16.mxu0 0
    %2996 = vmatpush1.bf16.msra.mxu0 0
    %2997 = vmatprep.subr.bf16.mxu0 0
    %2998 = vmatpush1.bf16.msra.mxu0 0
    %2999 = vmatprep.subr.bf16.mxu0 0
    %3000 = vmatpush1.bf16.msra.mxu0 0
    %3001 = vmatprep.subr.bf16.mxu0 0
    %3002 = vmatpush1.bf16.msra.mxu0 0
    %3003 = vmatprep.subr.bf16.mxu0 0
    %3004 = vmatpush1.bf16.msra.mxu0 0
    %3005 = vmatprep.mubr.bf16.mxu0 0
    %3006 = vmatmul.mubr.bf16.gmra.mrb[0].mxu0 %v2775
    %v3007 = vpop.f32.mrb[0].mxu0
    %v3008 = vadd.f32 0.0, %v3007
    %v3009 = vpop.f32.mrb[0].mxu0
    %v3010 = vpop.f32.mrb[0].mxu0
    %v3011 = vadd.f32 0.0, %v3010
    %v3012 = vpop.f32.mrb[0].mxu0
    %3013 = vmatprep.mubr.bf16.mxu0 0
    %3014 = vmatmul.mubr.bf16.gmra.mrb[0].mxu0 %v2776
    %v3015 = vpop.f32.mrb[0].mxu0
    %v3016 = vadd.f32 0.0, %v3015
    %v3017 = vpop.f32.mrb[0].mxu0
    %v3018 = vpop.f32.mrb[0].mxu0
    %v3019 = vadd.f32 0.0, %v3018
    %v3020 = vpop.f32.mrb[0].mxu0
    %3021 = vdwg.mxu0
    %v3023 = vlaneseq
    %v3024 = vshrl.u32 %v3023, 7
    %v3025 = vsub.s32 0, %v3024
    %v3026 = vrot.slane %v2827, %v3025
    %v3044 = vunpack.c.l.b16 %v2794
    %v3045 = vunpack.c.l.b16 %v2795
    %v3046 = vunpack.c.l.b16 %v2796
    %v3047 = vunpack.c.l.b16 %v2797
    %v3048 = vunpack.c.l.b16 %v2798
    %v3049 = vunpack.c.l.b16 %v2799
    %v3050 = vunpack.c.l.b16 %v2800
    %v3051 = vunpack.c.l.b16 %v2801
    %v3052 = vunpack.c.l.b16 %v2802
    %v3053 = vunpack.c.l.b16 %v2803
    %v3054 = vunpack.c.l.b16 %v2804
    %v3055 = vunpack.c.l.b16 %v2805
    %v3056 = vunpack.c.l.b16 %v2806
    %v3057 = vunpack.c.l.b16 %v2807
    %v3058 = vunpack.c.l.b16 %v2808
    %v3059 = vunpack.c.l.b16 %v2809
    %v3060 = vpack.c.b16 %v3045, %v3044
    %v3061 = vpack.c.b16 %v3047, %v3046
    %v3062 = vpack.c.b16 %v3049, %v3048
    %v3063 = vpack.c.b16 %v3051, %v3050
    %v3064 = vpack.c.b16 %v3053, %v3052
    %v3065 = vpack.c.b16 %v3055, %v3054
    %v3066 = vpack.c.b16 %v3057, %v3056
    %v3067 = vpack.c.b16 %v3059, %v3058
    %3076 = vmatprep.subr.bf16.mxu0 0
    %3077 = vmatpush1.bf16.msra.mxu0 %v3060
    %3078 = vmatprep.subr.bf16.mxu0 0
    %3079 = vmatpush1.bf16.msra.mxu0 %v3061
    %3080 = vmatprep.subr.bf16.mxu0 0
    %3081 = vmatpush1.bf16.msra.mxu0 %v3062
    %3082 = vmatprep.subr.bf16.mxu0 0
    %3083 = vmatpush1.bf16.msra.mxu0 %v3063
    %3084 = vmatprep.subr.bf16.mxu0 0
    %3085 = vmatpush1.bf16.msra.mxu0 %v3064
    %3086 = vmatprep.subr.bf16.mxu0 0
    %3087 = vmatpush1.bf16.msra.mxu0 %v3065
    %3088 = vmatprep.subr.bf16.mxu0 0
    %3089 = vmatpush1.bf16.msra.mxu0 %v3066
    %3090 = vmatprep.subr.bf16.mxu0 0
    %3091 = vmatpush1.bf16.msra.mxu0 %v3067
    %3092 = vmatprep.subr.bf16.mxu0 0
    %3093 = vmatpush1.bf16.msra.mxu0 0
    %3094 = vmatprep.subr.bf16.mxu0 0
    %3095 = vmatpush1.bf16.msra.mxu0 0
    %3096 = vmatprep.subr.bf16.mxu0 0
    %3097 = vmatpush1.bf16.msra.mxu0 0
    %3098 = vmatprep.subr.bf16.mxu0 0
    %3099 = vmatpush1.bf16.msra.mxu0 0
    %3100 = vmatprep.subr.bf16.mxu0 0
    %3101 = vmatpush1.bf16.msra.mxu0 0
    %3102 = vmatprep.subr.bf16.mxu0 0
    %3103 = vmatpush1.bf16.msra.mxu0 0
    %3104 = vmatprep.subr.bf16.mxu0 0
    %3105 = vmatpush1.bf16.msra.mxu0 0
    %3106 = vmatprep.subr.bf16.mxu0 0
    %3107 = vmatpush1.bf16.msra.mxu0 0
    %3108 = vmatprep.mubr.bf16.mxu0 0
    %3109 = vmatmul.mubr.bf16.gmra.mrb[0].mxu0 %v2775
    %v3110 = vpop.f32.mrb[0].mxu0
    %v3111 = vadd.f32 %v3026, %v3110
    %v3112 = vpop.f32.mrb[0].mxu0
    %v3113 = vpop.f32.mrb[0].mxu0
    %v3114 = vadd.f32 %v3026, %v3113
    %v3115 = vpop.f32.mrb[0].mxu0
    %3116 = vmatprep.mubr.bf16.mxu0 0
    %3117 = vmatmul.mubr.bf16.gmra.mrb[0].mxu0 %v2776
    %v3118 = vpop.f32.mrb[0].mxu0
    %v3119 = vadd.f32 %v3026, %v3118
    %v3120 = vpop.f32.mrb[0].mxu0
    %v3121 = vpop.f32.mrb[0].mxu0
    %v3122 = vadd.f32 %v3026, %v3121
    %v3123 = vpop.f32.mrb[0].mxu0
    %3124 = vdwg.mxu0
    %v3125 = vrot.slane %v2911, 7
    %v3126 = vrot.slane %v2914, 7
    %v3127 = vrot.slane %v2919, 7
    %v3128 = vrot.slane %v2922, 7
    %v3129 = vsel %vm383, %v3127, %v3128
    %v3130 = vsel %vm383, %v3126, %v3127
    %v3131 = vsel %vm383, %v3125, %v3126
    %v3132 = vsel %vm383, %v3128, %v3125
    %v3133 = vsel %vm392, %v3132, 0.0
    %v3134 = vsel %vm393, %v3131, 0.0
    %v3135 = vsel %vm394, %v3130, 0.0
    %v3136 = vsel %vm395, %v3129, 0.0
    %v3137 = vadd.f32 %v3111, %v3133
    %v3138 = vadd.f32 %v3114, %v3134
    %v3139 = vadd.f32 %v3119, %v3135
    %v3140 = vadd.f32 %v3122, %v3136
    %v3141 = vrot.slane %v3008, 1
    %v3142 = vrot.slane %v3011, 1
    %v3143 = vrot.slane %v3016, 1
    %v3144 = vrot.slane %v3019, 1
    %v3145 = vsel %vm408, %v3143, %v3144
    %v3146 = vsel %vm408, %v3142, %v3143
    %v3147 = vsel %vm408, %v3141, %v3142
    %v3148 = vsel %vm408, %v3144, %v3141
    %v3149 = vsel %vm417, %v3147, 0.0
    %v3150 = vsel %vm418, %v3146, 0.0
    %v3151 = vsel %vm419, %v3145, 0.0
    %v3152 = vsel %vm420, %v3148, 0.0
    %v3153 = vadd.f32 %v3137, %v3149
    %v3154 = vadd.f32 %v3138, %v3150
    %v3155 = vadd.f32 %v3139, %v3151
    %v3156 = vadd.f32 %v3140, %v3152
    %v3157 = vmul.f32 %v3153, 0.01
    %v3158 = vmul.f32 %v3154, 0.01
    %v3159 = vmul.f32 %v3155, 0.01
    %v3160 = vmul.f32 %v3156, 0.01
    %v3161 = vmax.f32 %v3153, %v3157
    %v3162 = vmax.f32 %v3154, %v3158
    %v3163 = vmax.f32 %v3155, %v3159
    %v3164 = vmax.f32 %v3156, %v3160
    %v3165 = vpack.c.bf16 %v3162, %v3161
    %v3166 = vpack.c.bf16 %v3164, %v3163
    %s3167 = scalar_lea.vmem [#allocation2], 1344
    %v3168 = vld [vmem:[%s3167] sm:$0xf]
    %v3169 = vld [vmem:[%s3167 + $0x4] sm:$0xf]
    %v3170 = vld [vmem:[%s3167 + $0x8] sm:$0xf]
    %v3171 = vld [vmem:[%s3167 + $0xc] sm:$0xf]
    %v3172 = vld [vmem:[%s3167 + $0x10] sm:$0xf]
    %v3173 = vld [vmem:[%s3167 + $0x14] sm:$0xf]
    %v3174 = vld [vmem:[%s3167 + $0x18] sm:$0xf]
    %v3175 = vld [vmem:[%s3167 + $0x1c] sm:$0xf]
    %v3176 = vld [vmem:[%s3167 + $0x20] sm:$0xf]
    %v3177 = vld [vmem:[%s3167 + $0x24] sm:$0xf]
    %v3178 = vld [vmem:[%s3167 + $0x28] sm:$0xf]
    %v3179 = vld [vmem:[%s3167 + $0x2c] sm:$0xf]
    %v3180 = vld [vmem:[%s3167 + $0x30] sm:$0xf]
    %v3181 = vld [vmem:[%s3167 + $0x34] sm:$0xf]
    %v3182 = vld [vmem:[%s3167 + $0x38] sm:$0xf]
    %v3183 = vld [vmem:[%s3167 + $0x3c] sm:$0xf]
    %v3184 = vld [vmem:[%s3167 + $0x40] sm:$0xf]
    %v3185 = vld [vmem:[%s3167 + $0x44] sm:$0xf]
    %v3186 = vld [vmem:[%s3167 + $0x48] sm:$0xf]
    %v3187 = vld [vmem:[%s3167 + $0x4c] sm:$0xf]
    %v3188 = vld [vmem:[%s3167 + $0x50] sm:$0xf]
    %v3189 = vld [vmem:[%s3167 + $0x54] sm:$0xf]
    %v3190 = vld [vmem:[%s3167 + $0x58] sm:$0xf]
    %v3191 = vld [vmem:[%s3167 + $0x5c] sm:$0xf]
    %v3192 = vld [vmem:[%s3167 + $0x60] sm:$0xf]
    %v3193 = vld [vmem:[%s3167 + $0x64] sm:$0xf]
    %v3194 = vld [vmem:[%s3167 + $0x68] sm:$0xf]
    %v3195 = vld [vmem:[%s3167 + $0x6c] sm:$0xf]
    %v3196 = vld [vmem:[%s3167 + $0x70] sm:$0xf]
    %v3197 = vld [vmem:[%s3167 + $0x74] sm:$0xf]
    %v3198 = vld [vmem:[%s3167 + $0x78] sm:$0xf]
    %v3199 = vld [vmem:[%s3167 + $0x7c] sm:$0xf]
    %v3200 = vld [vmem:[%s3167 + $0x80] sm:$0xf]
    %v3201 = vld [vmem:[%s3167 + $0x84] sm:$0xf]
    %v3202 = vld [vmem:[%s3167 + $0x88] sm:$0xf]
    %v3203 = vld [vmem:[%s3167 + $0x8c] sm:$0xf]
    %v3204 = vld [vmem:[%s3167 + $0x90] sm:$0xf]
    %v3205 = vld [vmem:[%s3167 + $0x94] sm:$0xf]
    %v3206 = vld [vmem:[%s3167 + $0x98] sm:$0xf]
    %v3207 = vld [vmem:[%s3167 + $0x9c] sm:$0xf]
    %v3208 = vld [vmem:[%s3167 + $0xa0] sm:$0xf]
    %v3209 = vld [vmem:[%s3167 + $0xa4] sm:$0xf]
    %v3210 = vld [vmem:[%s3167 + $0xa8] sm:$0xf]
    %v3211 = vld [vmem:[%s3167 + $0xac] sm:$0xf]
    %v3212 = vld [vmem:[%s3167 + $0xb0] sm:$0xf]
    %v3213 = vld [vmem:[%s3167 + $0xb4] sm:$0xf]
    %v3214 = vld [vmem:[%s3167 + $0xb8] sm:$0xf]
    %v3215 = vld [vmem:[%s3167 + $0xbc] sm:$0xf]
    %s3216 = scalar_lea.vmem %s4, 7
    %v3217 = vld [vmem:[%s3216] sm:$0x1]
    %v3234 = vunpack.c.l.b16 %v3168
    %v3235 = vunpack.c.l.b16 %v3169
    %v3236 = vunpack.c.l.b16 %v3170
    %v3237 = vunpack.c.l.b16 %v3171
    %v3238 = vunpack.c.l.b16 %v3172
    %v3239 = vunpack.c.l.b16 %v3173
    %v3240 = vunpack.c.l.b16 %v3174
    %v3241 = vunpack.c.l.b16 %v3175
    %v3242 = vunpack.c.l.b16 %v3176
    %v3243 = vunpack.c.l.b16 %v3177
    %v3244 = vunpack.c.l.b16 %v3178
    %v3245 = vunpack.c.l.b16 %v3179
    %v3246 = vunpack.c.l.b16 %v3180
    %v3247 = vunpack.c.l.b16 %v3181
    %v3248 = vunpack.c.l.b16 %v3182
    %v3249 = vunpack.c.l.b16 %v3183
    %v3250 = vpack.c.b16 %v3235, %v3234
    %v3251 = vpack.c.b16 %v3237, %v3236
    %v3252 = vpack.c.b16 %v3239, %v3238
    %v3253 = vpack.c.b16 %v3241, %v3240
    %v3254 = vpack.c.b16 %v3243, %v3242
    %v3255 = vpack.c.b16 %v3245, %v3244
    %v3256 = vpack.c.b16 %v3247, %v3246
    %v3257 = vpack.c.b16 %v3249, %v3248
    %3266 = vmatprep.subr.bf16.mxu0 0
    %3267 = vmatpush1.bf16.msra.mxu0 %v3250
    %3268 = vmatprep.subr.bf16.mxu0 0
    %3269 = vmatpush1.bf16.msra.mxu0 %v3251
    %3270 = vmatprep.subr.bf16.mxu0 0
    %3271 = vmatpush1.bf16.msra.mxu0 %v3252
    %3272 = vmatprep.subr.bf16.mxu0 0
    %3273 = vmatpush1.bf16.msra.mxu0 %v3253
    %3274 = vmatprep.subr.bf16.mxu0 0
    %3275 = vmatpush1.bf16.msra.mxu0 %v3254
    %3276 = vmatprep.subr.bf16.mxu0 0
    %3277 = vmatpush1.bf16.msra.mxu0 %v3255
    %3278 = vmatprep.subr.bf16.mxu0 0
    %3279 = vmatpush1.bf16.msra.mxu0 %v3256
    %3280 = vmatprep.subr.bf16.mxu0 0
    %3281 = vmatpush1.bf16.msra.mxu0 %v3257
    %3282 = vmatprep.subr.bf16.mxu0 0
    %3283 = vmatpush1.bf16.msra.mxu0 0
    %3284 = vmatprep.subr.bf16.mxu0 0
    %3285 = vmatpush1.bf16.msra.mxu0 0
    %3286 = vmatprep.subr.bf16.mxu0 0
    %3287 = vmatpush1.bf16.msra.mxu0 0
    %3288 = vmatprep.subr.bf16.mxu0 0
    %3289 = vmatpush1.bf16.msra.mxu0 0
    %3290 = vmatprep.subr.bf16.mxu0 0
    %3291 = vmatpush1.bf16.msra.mxu0 0
    %3292 = vmatprep.subr.bf16.mxu0 0
    %3293 = vmatpush1.bf16.msra.mxu0 0
    %3294 = vmatprep.subr.bf16.mxu0 0
    %3295 = vmatpush1.bf16.msra.mxu0 0
    %3296 = vmatprep.subr.bf16.mxu0 0
    %3297 = vmatpush1.bf16.msra.mxu0 0
    %3298 = vmatprep.mubr.bf16.mxu0 0
    %3299 = vmatmul.mubr.bf16.gmra.mrb[0].mxu0 %v3165
    %v3300 = vpop.f32.mrb[0].mxu0
    %v3301 = vadd.f32 0.0, %v3300
    %v3302 = vpop.f32.mrb[0].mxu0
    %v3303 = vpop.f32.mrb[0].mxu0
    %v3304 = vadd.f32 0.0, %v3303
    %v3305 = vpop.f32.mrb[0].mxu0
    %3306 = vmatprep.mubr.bf16.mxu0 0
    %3307 = vmatmul.mubr.bf16.gmra.mrb[0].mxu0 %v3166
    %v3308 = vpop.f32.mrb[0].mxu0
    %v3309 = vadd.f32 0.0, %v3308
    %v3310 = vpop.f32.mrb[0].mxu0
    %v3311 = vpop.f32.mrb[0].mxu0
    %v3312 = vadd.f32 0.0, %v3311
    %v3313 = vpop.f32.mrb[0].mxu0
    %3314 = vdwg.mxu0
    %v3331 = vunpack.c.l.b16 %v3200
    %v3332 = vunpack.c.l.b16 %v3201
    %v3333 = vunpack.c.l.b16 %v3202
    %v3334 = vunpack.c.l.b16 %v3203
    %v3335 = vunpack.c.l.b16 %v3204
    %v3336 = vunpack.c.l.b16 %v3205
    %v3337 = vunpack.c.l.b16 %v3206
    %v3338 = vunpack.c.l.b16 %v3207
    %v3339 = vunpack.c.l.b16 %v3208
    %v3340 = vunpack.c.l.b16 %v3209
    %v3341 = vunpack.c.l.b16 %v3210
    %v3342 = vunpack.c.l.b16 %v3211
    %v3343 = vunpack.c.l.b16 %v3212
    %v3344 = vunpack.c.l.b16 %v3213
    %v3345 = vunpack.c.l.b16 %v3214
    %v3346 = vunpack.c.l.b16 %v3215
    %v3347 = vpack.c.b16 %v3332, %v3331
    %v3348 = vpack.c.b16 %v3334, %v3333
    %v3349 = vpack.c.b16 %v3336, %v3335
    %v3350 = vpack.c.b16 %v3338, %v3337
    %v3351 = vpack.c.b16 %v3340, %v3339
    %v3352 = vpack.c.b16 %v3342, %v3341
    %v3353 = vpack.c.b16 %v3344, %v3343
    %v3354 = vpack.c.b16 %v3346, %v3345
    %3363 = vmatprep.subr.bf16.mxu0 0
    %3364 = vmatpush1.bf16.msra.mxu0 %v3347
    %3365 = vmatprep.subr.bf16.mxu0 0
    %3366 = vmatpush1.bf16.msra.mxu0 %v3348
    %3367 = vmatprep.subr.bf16.mxu0 0
    %3368 = vmatpush1.bf16.msra.mxu0 %v3349
    %3369 = vmatprep.subr.bf16.mxu0 0
    %3370 = vmatpush1.bf16.msra.mxu0 %v3350
    %3371 = vmatprep.subr.bf16.mxu0 0
    %3372 = vmatpush1.bf16.msra.mxu0 %v3351
    %3373 = vmatprep.subr.bf16.mxu0 0
    %3374 = vmatpush1.bf16.msra.mxu0 %v3352
    %3375 = vmatprep.subr.bf16.mxu0 0
    %3376 = vmatpush1.bf16.msra.mxu0 %v3353
    %3377 = vmatprep.subr.bf16.mxu0 0
    %3378 = vmatpush1.bf16.msra.mxu0 %v3354
    %3379 = vmatprep.subr.bf16.mxu0 0
    %3380 = vmatpush1.bf16.msra.mxu0 0
    %3381 = vmatprep.subr.bf16.mxu0 0
    %3382 = vmatpush1.bf16.msra.mxu0 0
    %3383 = vmatprep.subr.bf16.mxu0 0
    %3384 = vmatpush1.bf16.msra.mxu0 0
    %3385 = vmatprep.subr.bf16.mxu0 0
    %3386 = vmatpush1.bf16.msra.mxu0 0
    %3387 = vmatprep.subr.bf16.mxu0 0
    %3388 = vmatpush1.bf16.msra.mxu0 0
    %3389 = vmatprep.subr.bf16.mxu0 0
    %3390 = vmatpush1.bf16.msra.mxu0 0
    %3391 = vmatprep.subr.bf16.mxu0 0
    %3392 = vmatpush1.bf16.msra.mxu0 0
    %3393 = vmatprep.subr.bf16.mxu0 0
    %3394 = vmatpush1.bf16.msra.mxu0 0
    %3395 = vmatprep.mubr.bf16.mxu0 0
    %3396 = vmatmul.mubr.bf16.gmra.mrb[0].mxu0 %v3165
    %v3397 = vpop.f32.mrb[0].mxu0
    %v3398 = vadd.f32 0.0, %v3397
    %v3399 = vpop.f32.mrb[0].mxu0
    %v3400 = vpop.f32.mrb[0].mxu0
    %v3401 = vadd.f32 0.0, %v3400
    %v3402 = vpop.f32.mrb[0].mxu0
    %3403 = vmatprep.mubr.bf16.mxu0 0
    %3404 = vmatmul.mubr.bf16.gmra.mrb[0].mxu0 %v3166
    %v3405 = vpop.f32.mrb[0].mxu0
    %v3406 = vadd.f32 0.0, %v3405
    %v3407 = vpop.f32.mrb[0].mxu0
    %v3408 = vpop.f32.mrb[0].mxu0
    %v3409 = vadd.f32 0.0, %v3408
    %v3410 = vpop.f32.mrb[0].mxu0
    %3411 = vdwg.mxu0
    %v3413 = vlaneseq
    %v3414 = vshrl.u32 %v3413, 7
    %v3415 = vsub.s32 0, %v3414
    %v3416 = vrot.slane %v3217, %v3415
    %v3434 = vunpack.c.l.b16 %v3184
    %v3435 = vunpack.c.l.b16 %v3185
    %v3436 = vunpack.c.l.b16 %v3186
    %v3437 = vunpack.c.l.b16 %v3187
    %v3438 = vunpack.c.l.b16 %v3188
    %v3439 = vunpack.c.l.b16 %v3189
    %v3440 = vunpack.c.l.b16 %v3190
    %v3441 = vunpack.c.l.b16 %v3191
    %v3442 = vunpack.c.l.b16 %v3192
    %v3443 = vunpack.c.l.b16 %v3193
    %v3444 = vunpack.c.l.b16 %v3194
    %v3445 = vunpack.c.l.b16 %v3195
    %v3446 = vunpack.c.l.b16 %v3196
    %v3447 = vunpack.c.l.b16 %v3197
    %v3448 = vunpack.c.l.b16 %v3198
    %v3449 = vunpack.c.l.b16 %v3199
    %v3450 = vpack.c.b16 %v3435, %v3434
    %v3451 = vpack.c.b16 %v3437, %v3436
    %v3452 = vpack.c.b16 %v3439, %v3438
    %v3453 = vpack.c.b16 %v3441, %v3440
    %v3454 = vpack.c.b16 %v3443, %v3442
    %v3455 = vpack.c.b16 %v3445, %v3444
    %v3456 = vpack.c.b16 %v3447, %v3446
    %v3457 = vpack.c.b16 %v3449, %v3448
    %3466 = vmatprep.subr.bf16.mxu0 0
    %3467 = vmatpush1.bf16.msra.mxu0 %v3450
    %3468 = vmatprep.subr.bf16.mxu0 0
    %3469 = vmatpush1.bf16.msra.mxu0 %v3451
    %3470 = vmatprep.subr.bf16.mxu0 0
    %3471 = vmatpush1.bf16.msra.mxu0 %v3452
    %3472 = vmatprep.subr.bf16.mxu0 0
    %3473 = vmatpush1.bf16.msra.mxu0 %v3453
    %3474 = vmatprep.subr.bf16.mxu0 0
    %3475 = vmatpush1.bf16.msra.mxu0 %v3454
    %3476 = vmatprep.subr.bf16.mxu0 0
    %3477 = vmatpush1.bf16.msra.mxu0 %v3455
    %3478 = vmatprep.subr.bf16.mxu0 0
    %3479 = vmatpush1.bf16.msra.mxu0 %v3456
    %3480 = vmatprep.subr.bf16.mxu0 0
    %3481 = vmatpush1.bf16.msra.mxu0 %v3457
    %3482 = vmatprep.subr.bf16.mxu0 0
    %3483 = vmatpush1.bf16.msra.mxu0 0
    %3484 = vmatprep.subr.bf16.mxu0 0
    %3485 = vmatpush1.bf16.msra.mxu0 0
    %3486 = vmatprep.subr.bf16.mxu0 0
    %3487 = vmatpush1.bf16.msra.mxu0 0
    %3488 = vmatprep.subr.bf16.mxu0 0
    %3489 = vmatpush1.bf16.msra.mxu0 0
    %3490 = vmatprep.subr.bf16.mxu0 0
    %3491 = vmatpush1.bf16.msra.mxu0 0
    %3492 = vmatprep.subr.bf16.mxu0 0
    %3493 = vmatpush1.bf16.msra.mxu0 0
    %3494 = vmatprep.subr.bf16.mxu0 0
    %3495 = vmatpush1.bf16.msra.mxu0 0
    %3496 = vmatprep.subr.bf16.mxu0 0
    %3497 = vmatpush1.bf16.msra.mxu0 0
    %3498 = vmatprep.mubr.bf16.mxu0 0
    %3499 = vmatmul.mubr.bf16.gmra.mrb[0].mxu0 %v3165
    %v3500 = vpop.f32.mrb[0].mxu0
    %v3501 = vadd.f32 %v3416, %v3500
    %v3502 = vpop.f32.mrb[0].mxu0
    %v3503 = vpop.f32.mrb[0].mxu0
    %v3504 = vadd.f32 %v3416, %v3503
    %v3505 = vpop.f32.mrb[0].mxu0
    %3506 = vmatprep.mubr.bf16.mxu0 0
    %3507 = vmatmul.mubr.bf16.gmra.mrb[0].mxu0 %v3166
    %v3508 = vpop.f32.mrb[0].mxu0
    %v3509 = vadd.f32 %v3416, %v3508
    %v3510 = vpop.f32.mrb[0].mxu0
    %v3511 = vpop.f32.mrb[0].mxu0
    %v3512 = vadd.f32 %v3416, %v3511
    %v3513 = vpop.f32.mrb[0].mxu0
    %3514 = vdwg.mxu0
    %v3515 = vrot.slane %v3301, 7
    %v3516 = vrot.slane %v3304, 7
    %v3517 = vrot.slane %v3309, 7
    %v3518 = vrot.slane %v3312, 7
    %v3519 = vsel %vm383, %v3517, %v3518
    %v3520 = vsel %vm383, %v3516, %v3517
    %v3521 = vsel %vm383, %v3515, %v3516
    %v3522 = vsel %vm383, %v3518, %v3515
    %v3523 = vsel %vm392, %v3522, 0.0
    %v3524 = vsel %vm393, %v3521, 0.0
    %v3525 = vsel %vm394, %v3520, 0.0
    %v3526 = vsel %vm395, %v3519, 0.0
    %v3527 = vadd.f32 %v3501, %v3523
    %v3528 = vadd.f32 %v3504, %v3524
    %v3529 = vadd.f32 %v3509, %v3525
    %v3530 = vadd.f32 %v3512, %v3526
    %v3531 = vrot.slane %v3398, 1
    %v3532 = vrot.slane %v3401, 1
    %v3533 = vrot.slane %v3406, 1
    %v3534 = vrot.slane %v3409, 1
    %v3535 = vsel %vm408, %v3533, %v3534
    %v3536 = vsel %vm408, %v3532, %v3533
    %v3537 = vsel %vm408, %v3531, %v3532
    %v3538 = vsel %vm408, %v3534, %v3531
    %v3539 = vsel %vm417, %v3537, 0.0
    %v3540 = vsel %vm418, %v3536, 0.0
    %v3541 = vsel %vm419, %v3535, 0.0
    %v3542 = vsel %vm420, %v3538, 0.0
    %v3543 = vadd.f32 %v3527, %v3539
    %v3544 = vadd.f32 %v3528, %v3540
    %v3545 = vadd.f32 %v3529, %v3541
    %v3546 = vadd.f32 %v3530, %v3542
    %v3547 = vmul.f32 %v3543, 0.01
    %v3548 = vmul.f32 %v3544, 0.01
    %v3549 = vmul.f32 %v3545, 0.01
    %v3550 = vmul.f32 %v3546, 0.01
    %v3551 = vmax.f32 %v3543, %v3547
    %v3552 = vmax.f32 %v3544, %v3548
    %v3553 = vmax.f32 %v3545, %v3549
    %v3554 = vmax.f32 %v3546, %v3550
    %v3555 = vpack.c.bf16 %v3552, %v3551
    %v3556 = vpack.c.bf16 %v3554, %v3553
    %v3557 = vld [vmem:[%s5] sm:$0xff]
    %v3558 = vld [vmem:[%s5 + $0x8] sm:$0xff]
    %v3559 = vld [vmem:[%s5 + $0x10] sm:$0xff]
    %v3560 = vld [vmem:[%s5 + $0x18] sm:$0xff]
    %v3561 = vld [vmem:[%s5 + $0x20] sm:$0xff]
    %v3562 = vld [vmem:[%s5 + $0x28] sm:$0xff]
    %v3563 = vld [vmem:[%s5 + $0x30] sm:$0xff]
    %v3564 = vld [vmem:[%s5 + $0x38] sm:$0xff]
    %v3565 = vld [vmem:[%s5 + $0x40] sm:$0xff]
    %v3566 = vld [vmem:[%s5 + $0x48] sm:$0xff]
    %v3567 = vld [vmem:[%s5 + $0x50] sm:$0xff]
    %v3568 = vld [vmem:[%s5 + $0x58] sm:$0xff]
    %v3569 = vld [vmem:[%s5 + $0x60] sm:$0xff]
    %v3570 = vld [vmem:[%s5 + $0x68] sm:$0xff]
    %v3571 = vld [vmem:[%s5 + $0x70] sm:$0xff]
    %v3572 = vld [vmem:[%s5 + $0x78] sm:$0xff]
    %v3573 = vld [vmem:[%s5 + $0x80] sm:$0xff]
    %v3574 = vld [vmem:[%s5 + $0x88] sm:$0xff]
    %v3575 = vld [vmem:[%s5 + $0x90] sm:$0xff]
    %v3576 = vld [vmem:[%s5 + $0x98] sm:$0xff]
    %v3577 = vld [vmem:[%s5 + $0xa0] sm:$0xff]
    %v3578 = vld [vmem:[%s5 + $0xa8] sm:$0xff]
    %v3579 = vld [vmem:[%s5 + $0xb0] sm:$0xff]
    %v3580 = vld [vmem:[%s5 + $0xb8] sm:$0xff]
    %v3581 = vld [vmem:[%s5 + $0xc0] sm:$0xff]
    %v3582 = vld [vmem:[%s5 + $0xc8] sm:$0xff]
    %v3583 = vld [vmem:[%s5 + $0xd0] sm:$0xff]
    %v3584 = vld [vmem:[%s5 + $0xd8] sm:$0xff]
    %v3585 = vld [vmem:[%s5 + $0xe0] sm:$0xff]
    %v3586 = vld [vmem:[%s5 + $0xe8] sm:$0xff]
    %v3587 = vld [vmem:[%s5 + $0xf0] sm:$0xff]
    %v3588 = vld [vmem:[%s5 + $0xf8] sm:$0xff]
    %v3589 = vld [vmem:[%s5 + $0x100] sm:$0xff]
    %v3590 = vld [vmem:[%s5 + $0x108] sm:$0xff]
    %v3591 = vld [vmem:[%s5 + $0x110] sm:$0xff]
    %v3592 = vld [vmem:[%s5 + $0x118] sm:$0xff]
    %v3593 = vld [vmem:[%s5 + $0x120] sm:$0xff]
    %v3594 = vld [vmem:[%s5 + $0x128] sm:$0xff]
    %v3595 = vld [vmem:[%s5 + $0x130] sm:$0xff]
    %v3596 = vld [vmem:[%s5 + $0x138] sm:$0xff]
    %v3597 = vld [vmem:[%s5 + $0x140] sm:$0xff]
    %v3598 = vld [vmem:[%s5 + $0x148] sm:$0xff]
    %v3599 = vld [vmem:[%s5 + $0x150] sm:$0xff]
    %v3600 = vld [vmem:[%s5 + $0x158] sm:$0xff]
    %v3601 = vld [vmem:[%s5 + $0x160] sm:$0xff]
    %v3602 = vld [vmem:[%s5 + $0x168] sm:$0xff]
    %v3603 = vld [vmem:[%s5 + $0x170] sm:$0xff]
    %v3604 = vld [vmem:[%s5 + $0x178] sm:$0xff]
    %v3605 = vld [vmem:[%s6] sm:$0x3]
    %v3622 = vunpack.c.l.b16 %v3557
    %v3623 = vunpack.c.h.b16 %v3557
    %v3624 = vunpack.c.l.b16 %v3558
    %v3625 = vunpack.c.h.b16 %v3558
    %v3626 = vunpack.c.l.b16 %v3559
    %v3627 = vunpack.c.h.b16 %v3559
    %v3628 = vunpack.c.l.b16 %v3560
    %v3629 = vunpack.c.h.b16 %v3560
    %v3630 = vunpack.c.l.b16 %v3561
    %v3631 = vunpack.c.h.b16 %v3561
    %v3632 = vunpack.c.l.b16 %v3562
    %v3633 = vunpack.c.h.b16 %v3562
    %v3634 = vunpack.c.l.b16 %v3563
    %v3635 = vunpack.c.h.b16 %v3563
    %v3636 = vunpack.c.l.b16 %v3564
    %v3637 = vunpack.c.h.b16 %v3564
    %v3638 = vunpack.c.l.b16 %v3565
    %v3639 = vunpack.c.h.b16 %v3565
    %v3640 = vunpack.c.l.b16 %v3566
    %v3641 = vunpack.c.h.b16 %v3566
    %v3642 = vunpack.c.l.b16 %v3567
    %v3643 = vunpack.c.h.b16 %v3567
    %v3644 = vunpack.c.l.b16 %v3568
    %v3645 = vunpack.c.h.b16 %v3568
    %v3646 = vunpack.c.l.b16 %v3569
    %v3647 = vunpack.c.h.b16 %v3569
    %v3648 = vunpack.c.l.b16 %v3570
    %v3649 = vunpack.c.h.b16 %v3570
    %v3650 = vunpack.c.l.b16 %v3571
    %v3651 = vunpack.c.h.b16 %v3571
    %v3652 = vunpack.c.l.b16 %v3572
    %v3653 = vunpack.c.h.b16 %v3572
    %v3654 = vpack.c.b16 %v3624, %v3622
    %v3655 = vpack.c.b16 %v3625, %v3623
    %v3656 = vpack.c.b16 %v3628, %v3626
    %v3657 = vpack.c.b16 %v3629, %v3627
    %v3658 = vpack.c.b16 %v3632, %v3630
    %v3659 = vpack.c.b16 %v3633, %v3631
    %v3660 = vpack.c.b16 %v3636, %v3634
    %v3661 = vpack.c.b16 %v3637, %v3635
    %v3662 = vpack.c.b16 %v3640, %v3638
    %v3663 = vpack.c.b16 %v3641, %v3639
    %v3664 = vpack.c.b16 %v3644, %v3642
    %v3665 = vpack.c.b16 %v3645, %v3643
    %v3666 = vpack.c.b16 %v3648, %v3646
    %v3667 = vpack.c.b16 %v3649, %v3647
    %v3668 = vpack.c.b16 %v3652, %v3650
    %v3669 = vpack.c.b16 %v3653, %v3651
    %3686 = vmatprep.subr.bf16.mxu0 %v3655
    %3687 = vmatpush1.bf16.msra.mxu0 %v3654
    %3688 = vmatprep.subr.bf16.mxu0 %v3657
    %3689 = vmatpush1.bf16.msra.mxu0 %v3656
    %3690 = vmatprep.subr.bf16.mxu0 %v3659
    %3691 = vmatpush1.bf16.msra.mxu0 %v3658
    %3692 = vmatprep.subr.bf16.mxu0 %v3661
    %3693 = vmatpush1.bf16.msra.mxu0 %v3660
    %3694 = vmatprep.subr.bf16.mxu0 %v3663
    %3695 = vmatpush1.bf16.msra.mxu0 %v3662
    %3696 = vmatprep.subr.bf16.mxu0 %v3665
    %3697 = vmatpush1.bf16.msra.mxu0 %v3664
    %3698 = vmatprep.subr.bf16.mxu0 %v3667
    %3699 = vmatpush1.bf16.msra.mxu0 %v3666
    %3700 = vmatprep.subr.bf16.mxu0 %v3669
    %3701 = vmatpush1.bf16.msra.mxu0 %v3668
    %3702 = vmatprep.subr.bf16.mxu0 0
    %3703 = vmatpush1.bf16.msra.mxu0 0
    %3704 = vmatprep.subr.bf16.mxu0 0
    %3705 = vmatpush1.bf16.msra.mxu0 0
    %3706 = vmatprep.subr.bf16.mxu0 0
    %3707 = vmatpush1.bf16.msra.mxu0 0
    %3708 = vmatprep.subr.bf16.mxu0 0
    %3709 = vmatpush1.bf16.msra.mxu0 0
    %3710 = vmatprep.subr.bf16.mxu0 0
    %3711 = vmatpush1.bf16.msra.mxu0 0
    %3712 = vmatprep.subr.bf16.mxu0 0
    %3713 = vmatpush1.bf16.msra.mxu0 0
    %3714 = vmatprep.subr.bf16.mxu0 0
    %3715 = vmatpush1.bf16.msra.mxu0 0
    %3716 = vmatprep.subr.bf16.mxu0 0
    %3717 = vmatpush1.bf16.msra.mxu0 0
    %3718 = vmatprep.mubr.bf16.mxu0 0
    %3719 = vmatmul.mubr.bf16.gmra.mrb[0].mxu0 %v3555
    %v3720 = vpop.f32.mrb[0].mxu0
    %v3721 = vadd.f32 0.0, %v3720
    %v3722 = vpop.f32.mrb[0].mxu0
    %v3723 = vadd.f32 0.0, %v3722
    %v3724 = vpop.f32.mrb[0].mxu0
    %v3725 = vadd.f32 0.0, %v3724
    %v3726 = vpop.f32.mrb[0].mxu0
    %v3727 = vadd.f32 0.0, %v3726
    %3728 = vmatprep.mubr.bf16.mxu0 0
    %3729 = vmatmul.mubr.bf16.gmra.mrb[0].mxu0 %v3556
    %v3730 = vpop.f32.mrb[0].mxu0
    %v3731 = vadd.f32 0.0, %v3730
    %v3732 = vpop.f32.mrb[0].mxu0
    %v3733 = vadd.f32 0.0, %v3732
    %v3734 = vpop.f32.mrb[0].mxu0
    %v3735 = vadd.f32 0.0, %v3734
    %v3736 = vpop.f32.mrb[0].mxu0
    %v3737 = vadd.f32 0.0, %v3736
    %3738 = vdwg.mxu0
    %v3755 = vunpack.c.l.b16 %v3589
    %v3756 = vunpack.c.h.b16 %v3589
    %v3757 = vunpack.c.l.b16 %v3590
    %v3758 = vunpack.c.h.b16 %v3590
    %v3759 = vunpack.c.l.b16 %v3591
    %v3760 = vunpack.c.h.b16 %v3591
    %v3761 = vunpack.c.l.b16 %v3592
    %v3762 = vunpack.c.h.b16 %v3592
    %v3763 = vunpack.c.l.b16 %v3593
    %v3764 = vunpack.c.h.b16 %v3593
    %v3765 = vunpack.c.l.b16 %v3594
    %v3766 = vunpack.c.h.b16 %v3594
    %v3767 = vunpack.c.l.b16 %v3595
    %v3768 = vunpack.c.h.b16 %v3595
    %v3769 = vunpack.c.l.b16 %v3596
    %v3770 = vunpack.c.h.b16 %v3596
    %v3771 = vunpack.c.l.b16 %v3597
    %v3772 = vunpack.c.h.b16 %v3597
    %v3773 = vunpack.c.l.b16 %v3598
    %v3774 = vunpack.c.h.b16 %v3598
    %v3775 = vunpack.c.l.b16 %v3599
    %v3776 = vunpack.c.h.b16 %v3599
    %v3777 = vunpack.c.l.b16 %v3600
    %v3778 = vunpack.c.h.b16 %v3600
    %v3779 = vunpack.c.l.b16 %v3601
    %v3780 = vunpack.c.h.b16 %v3601
    %v3781 = vunpack.c.l.b16 %v3602
    %v3782 = vunpack.c.h.b16 %v3602
    %v3783 = vunpack.c.l.b16 %v3603
    %v3784 = vunpack.c.h.b16 %v3603
    %v3785 = vunpack.c.l.b16 %v3604
    %v3786 = vunpack.c.h.b16 %v3604
    %v3787 = vpack.c.b16 %v3757, %v3755
    %v3788 = vpack.c.b16 %v3758, %v3756
    %v3789 = vpack.c.b16 %v3761, %v3759
    %v3790 = vpack.c.b16 %v3762, %v3760
    %v3791 = vpack.c.b16 %v3765, %v3763
    %v3792 = vpack.c.b16 %v3766, %v3764
    %v3793 = vpack.c.b16 %v3769, %v3767
    %v3794 = vpack.c.b16 %v3770, %v3768
    %v3795 = vpack.c.b16 %v3773, %v3771
    %v3796 = vpack.c.b16 %v3774, %v3772
    %v3797 = vpack.c.b16 %v3777, %v3775
    %v3798 = vpack.c.b16 %v3778, %v3776
    %v3799 = vpack.c.b16 %v3781, %v3779
    %v3800 = vpack.c.b16 %v3782, %v3780
    %v3801 = vpack.c.b16 %v3785, %v3783
    %v3802 = vpack.c.b16 %v3786, %v3784
    %3819 = vmatprep.subr.bf16.mxu0 %v3788
    %3820 = vmatpush1.bf16.msra.mxu0 %v3787
    %3821 = vmatprep.subr.bf16.mxu0 %v3790
    %3822 = vmatpush1.bf16.msra.mxu0 %v3789
    %3823 = vmatprep.subr.bf16.mxu0 %v3792
    %3824 = vmatpush1.bf16.msra.mxu0 %v3791
    %3825 = vmatprep.subr.bf16.mxu0 %v3794
    %3826 = vmatpush1.bf16.msra.mxu0 %v3793
    %3827 = vmatprep.subr.bf16.mxu0 %v3796
    %3828 = vmatpush1.bf16.msra.mxu0 %v3795
    %3829 = vmatprep.subr.bf16.mxu0 %v3798
    %3830 = vmatpush1.bf16.msra.mxu0 %v3797
    %3831 = vmatprep.subr.bf16.mxu0 %v3800
    %3832 = vmatpush1.bf16.msra.mxu0 %v3799
    %3833 = vmatprep.subr.bf16.mxu0 %v3802
    %3834 = vmatpush1.bf16.msra.mxu0 %v3801
    %3835 = vmatprep.subr.bf16.mxu0 0
    %3836 = vmatpush1.bf16.msra.mxu0 0
    %3837 = vmatprep.subr.bf16.mxu0 0
    %3838 = vmatpush1.bf16.msra.mxu0 0
    %3839 = vmatprep.subr.bf16.mxu0 0
    %3840 = vmatpush1.bf16.msra.mxu0 0
    %3841 = vmatprep.subr.bf16.mxu0 0
    %3842 = vmatpush1.bf16.msra.mxu0 0
    %3843 = vmatprep.subr.bf16.mxu0 0
    %3844 = vmatpush1.bf16.msra.mxu0 0
    %3845 = vmatprep.subr.bf16.mxu0 0
    %3846 = vmatpush1.bf16.msra.mxu0 0
    %3847 = vmatprep.subr.bf16.mxu0 0
    %3848 = vmatpush1.bf16.msra.mxu0 0
    %3849 = vmatprep.subr.bf16.mxu0 0
    %3850 = vmatpush1.bf16.msra.mxu0 0
    %3851 = vmatprep.mubr.bf16.mxu0 0
    %3852 = vmatmul.mubr.bf16.gmra.mrb[0].mxu0 %v3555
    %v3853 = vpop.f32.mrb[0].mxu0
    %v3854 = vadd.f32 0.0, %v3853
    %v3855 = vpop.f32.mrb[0].mxu0
    %v3856 = vadd.f32 0.0, %v3855
    %v3857 = vpop.f32.mrb[0].mxu0
    %v3858 = vadd.f32 0.0, %v3857
    %v3859 = vpop.f32.mrb[0].mxu0
    %v3860 = vadd.f32 0.0, %v3859
    %3861 = vmatprep.mubr.bf16.mxu0 0
    %3862 = vmatmul.mubr.bf16.gmra.mrb[0].mxu0 %v3556
    %v3863 = vpop.f32.mrb[0].mxu0
    %v3864 = vadd.f32 0.0, %v3863
    %v3865 = vpop.f32.mrb[0].mxu0
    %v3866 = vadd.f32 0.0, %v3865
    %v3867 = vpop.f32.mrb[0].mxu0
    %v3868 = vadd.f32 0.0, %v3867
    %v3869 = vpop.f32.mrb[0].mxu0
    %v3870 = vadd.f32 0.0, %v3869
    %3871 = vdwg.mxu0
    %v3873 = vlaneseq
    %v3874 = vshrl.u32 %v3873, 7
    %v3875 = vsub.s32 0, %v3874
    %v3876 = vrot.slane %v3605, %v3875
    %v3877 = vlaneseq
    %v3878 = vshrl.u32 %v3877, 7
    %v3879 = vsub.s32 1, %v3878
    %v3880 = vrot.slane %v3605, %v3879
    %v3899 = vunpack.c.l.b16 %v3573
    %v3900 = vunpack.c.h.b16 %v3573
    %v3901 = vunpack.c.l.b16 %v3574
    %v3902 = vunpack.c.h.b16 %v3574
    %v3903 = vunpack.c.l.b16 %v3575
    %v3904 = vunpack.c.h.b16 %v3575
    %v3905 = vunpack.c.l.b16 %v3576
    %v3906 = vunpack.c.h.b16 %v3576
    %v3907 = vunpack.c.l.b16 %v3577
    %v3908 = vunpack.c.h.b16 %v3577
    %v3909 = vunpack.c.l.b16 %v3578
    %v3910 = vunpack.c.h.b16 %v3578
    %v3911 = vunpack.c.l.b16 %v3579
    %v3912 = vunpack.c.h.b16 %v3579
    %v3913 = vunpack.c.l.b16 %v3580
    %v3914 = vunpack.c.h.b16 %v3580
    %v3915 = vunpack.c.l.b16 %v3581
    %v3916 = vunpack.c.h.b16 %v3581
    %v3917 = vunpack.c.l.b16 %v3582
    %v3918 = vunpack.c.h.b16 %v3582
    %v3919 = vunpack.c.l.b16 %v3583
    %v3920 = vunpack.c.h.b16 %v3583
    %v3921 = vunpack.c.l.b16 %v3584
    %v3922 = vunpack.c.h.b16 %v3584
    %v3923 = vunpack.c.l.b16 %v3585
    %v3924 = vunpack.c.h.b16 %v3585
    %v3925 = vunpack.c.l.b16 %v3586
    %v3926 = vunpack.c.h.b16 %v3586
    %v3927 = vunpack.c.l.b16 %v3587
    %v3928 = vunpack.c.h.b16 %v3587
    %v3929 = vunpack.c.l.b16 %v3588
    %v3930 = vunpack.c.h.b16 %v3588
    %v3931 = vpack.c.b16 %v3901, %v3899
    %v3932 = vpack.c.b16 %v3902, %v3900
    %v3933 = vpack.c.b16 %v3905, %v3903
    %v3934 = vpack.c.b16 %v3906, %v3904
    %v3935 = vpack.c.b16 %v3909, %v3907
    %v3936 = vpack.c.b16 %v3910, %v3908
    %v3937 = vpack.c.b16 %v3913, %v3911
    %v3938 = vpack.c.b16 %v3914, %v3912
    %v3939 = vpack.c.b16 %v3917, %v3915
    %v3940 = vpack.c.b16 %v3918, %v3916
    %v3941 = vpack.c.b16 %v3921, %v3919
    %v3942 = vpack.c.b16 %v3922, %v3920
    %v3943 = vpack.c.b16 %v3925, %v3923
    %v3944 = vpack.c.b16 %v3926, %v3924
    %v3945 = vpack.c.b16 %v3929, %v3927
    %v3946 = vpack.c.b16 %v3930, %v3928
    %3963 = vmatprep.subr.bf16.mxu0 %v3932
    %3964 = vmatpush1.bf16.msra.mxu0 %v3931
    %3965 = vmatprep.subr.bf16.mxu0 %v3934
    %3966 = vmatpush1.bf16.msra.mxu0 %v3933
    %3967 = vmatprep.subr.bf16.mxu0 %v3936
    %3968 = vmatpush1.bf16.msra.mxu0 %v3935
    %3969 = vmatprep.subr.bf16.mxu0 %v3938
    %3970 = vmatpush1.bf16.msra.mxu0 %v3937
    %3971 = vmatprep.subr.bf16.mxu0 %v3940
    %3972 = vmatpush1.bf16.msra.mxu0 %v3939
    %3973 = vmatprep.subr.bf16.mxu0 %v3942
    %3974 = vmatpush1.bf16.msra.mxu0 %v3941
    %3975 = vmatprep.subr.bf16.mxu0 %v3944
    %3976 = vmatpush1.bf16.msra.mxu0 %v3943
    %3977 = vmatprep.subr.bf16.mxu0 %v3946
    %3978 = vmatpush1.bf16.msra.mxu0 %v3945
    %3979 = vmatprep.subr.bf16.mxu0 0
    %3980 = vmatpush1.bf16.msra.mxu0 0
    %3981 = vmatprep.subr.bf16.mxu0 0
    %3982 = vmatpush1.bf16.msra.mxu0 0
    %3983 = vmatprep.subr.bf16.mxu0 0
    %3984 = vmatpush1.bf16.msra.mxu0 0
    %3985 = vmatprep.subr.bf16.mxu0 0
    %3986 = vmatpush1.bf16.msra.mxu0 0
    %3987 = vmatprep.subr.bf16.mxu0 0
    %3988 = vmatpush1.bf16.msra.mxu0 0
    %3989 = vmatprep.subr.bf16.mxu0 0
    %3990 = vmatpush1.bf16.msra.mxu0 0
    %3991 = vmatprep.subr.bf16.mxu0 0
    %3992 = vmatpush1.bf16.msra.mxu0 0
    %3993 = vmatprep.subr.bf16.mxu0 0
    %3994 = vmatpush1.bf16.msra.mxu0 0
    %3995 = vmatprep.mubr.bf16.mxu0 0
    %3996 = vmatmul.mubr.bf16.gmra.mrb[0].mxu0 %v3555
    %v3997 = vpop.f32.mrb[0].mxu0
    %v3998 = vadd.f32 %v3876, %v3997
    %v3999 = vpop.f32.mrb[0].mxu0
    %v4000 = vadd.f32 %v3880, %v3999
    %v4001 = vpop.f32.mrb[0].mxu0
    %v4002 = vadd.f32 %v3876, %v4001
    %v4003 = vpop.f32.mrb[0].mxu0
    %v4004 = vadd.f32 %v3880, %v4003
    %4005 = vmatprep.mubr.bf16.mxu0 0
    %4006 = vmatmul.mubr.bf16.gmra.mrb[0].mxu0 %v3556
    %v4007 = vpop.f32.mrb[0].mxu0
    %v4008 = vadd.f32 %v3876, %v4007
    %v4009 = vpop.f32.mrb[0].mxu0
    %v4010 = vadd.f32 %v3880, %v4009
    %v4011 = vpop.f32.mrb[0].mxu0
    %v4012 = vadd.f32 %v3876, %v4011
    %v4013 = vpop.f32.mrb[0].mxu0
    %v4014 = vadd.f32 %v3880, %v4013
    %4015 = vdwg.mxu0
    %v4016 = vrot.slane %v3721, 7
    %v4017 = vrot.slane %v3723, 7
    %v4018 = vrot.slane %v3725, 7
    %v4019 = vrot.slane %v3727, 7
    %v4020 = vrot.slane %v3731, 7
    %v4021 = vrot.slane %v3733, 7
    %v4022 = vrot.slane %v3735, 7
    %v4023 = vrot.slane %v3737, 7
    %v4024 = vsel %vm383, %v4020, %v4022
    %v4025 = vsel %vm383, %v4021, %v4023
    %v4026 = vsel %vm383, %v4018, %v4020
    %v4027 = vsel %vm383, %v4019, %v4021
    %v4028 = vsel %vm383, %v4016, %v4018
    %v4029 = vsel %vm383, %v4017, %v4019
    %v4030 = vsel %vm383, %v4022, %v4016
    %v4031 = vsel %vm383, %v4023, %v4017
    %v4032 = vsel %vm392, %v4030, 0.0
    %v4033 = vsel %vm392, %v4031, 0.0
    %v4034 = vsel %vm393, %v4028, 0.0
    %v4035 = vsel %vm393, %v4029, 0.0
    %v4036 = vsel %vm394, %v4026, 0.0
    %v4037 = vsel %vm394, %v4027, 0.0
    %v4038 = vsel %vm395, %v4024, 0.0
    %v4039 = vsel %vm395, %v4025, 0.0
    %v4040 = vadd.f32 %v3998, %v4032
    %v4041 = vadd.f32 %v4000, %v4033
    %v4042 = vadd.f32 %v4002, %v4034
    %v4043 = vadd.f32 %v4004, %v4035
    %v4044 = vadd.f32 %v4008, %v4036
    %v4045 = vadd.f32 %v4010, %v4037
    %v4046 = vadd.f32 %v4012, %v4038
    %v4047 = vadd.f32 %v4014, %v4039
    %v4048 = vrot.slane %v3854, 1
    %v4049 = vrot.slane %v3856, 1
    %v4050 = vrot.slane %v3858, 1
    %v4051 = vrot.slane %v3860, 1
    %v4052 = vrot.slane %v3864, 1
    %v4053 = vrot.slane %v3866, 1
    %v4054 = vrot.slane %v3868, 1
    %v4055 = vrot.slane %v3870, 1
    %v4056 = vsel %vm408, %v4052, %v4054
    %v4057 = vsel %vm408, %v4053, %v4055
    %v4058 = vsel %vm408, %v4050, %v4052
    %v4059 = vsel %vm408, %v4051, %v4053
    %v4060 = vsel %vm408, %v4048, %v4050
    %v4061 = vsel %vm408, %v4049, %v4051
    %v4062 = vsel %vm408, %v4054, %v4048
    %v4063 = vsel %vm408, %v4055, %v4049
    %v4064 = vsel %vm417, %v4060, 0.0
    %v4065 = vsel %vm417, %v4061, 0.0
    %v4066 = vsel %vm418, %v4058, 0.0
    %v4067 = vsel %vm418, %v4059, 0.0
    %v4068 = vsel %vm419, %v4056, 0.0
    %v4069 = vsel %vm419, %v4057, 0.0
    %v4070 = vsel %vm420, %v4062, 0.0
    %v4071 = vsel %vm420, %v4063, 0.0
    %v4072 = vadd.f32 %v4040, %v4064
    %v4073 = vadd.f32 %v4041, %v4065
    %v4074 = vadd.f32 %v4042, %v4066
    %v4075 = vadd.f32 %v4043, %v4067
    %v4076 = vadd.f32 %v4044, %v4068
    %v4077 = vadd.f32 %v4045, %v4069
    %v4078 = vadd.f32 %v4046, %v4070
    %v4079 = vadd.f32 %v4047, %v4071
    %v4080 = vmul.f32 %v4072, 0.01
    %v4081 = vmul.f32 %v4073, 0.01
    %v4082 = vmul.f32 %v4074, 0.01
    %v4083 = vmul.f32 %v4075, 0.01
    %v4084 = vmul.f32 %v4076, 0.01
    %v4085 = vmul.f32 %v4077, 0.01
    %v4086 = vmul.f32 %v4078, 0.01
    %v4087 = vmul.f32 %v4079, 0.01
    %v4088 = vmax.f32 %v4072, %v4080
    %v4089 = vmax.f32 %v4073, %v4081
    %v4090 = vmax.f32 %v4074, %v4082
    %v4091 = vmax.f32 %v4075, %v4083
    %v4092 = vmax.f32 %v4076, %v4084
    %v4093 = vmax.f32 %v4077, %v4085
    %v4094 = vmax.f32 %v4078, %v4086
    %v4095 = vmax.f32 %v4079, %v4087
    %v4096 = vpack.c.bf16 %v4090, %v4088
    %v4097 = vpack.c.bf16 %v4091, %v4089
    %v4098 = vpack.c.bf16 %v4094, %v4092
    %v4099 = vpack.c.bf16 %v4095, %v4093
    %v4100 = vld [vmem:[%s7] sm:$0x3]
    %v4101 = vld [vmem:[%s8] sm:$0x3]
    %4103 = vset.pattern.permute.xlu0 0
    %4104 = vperm.xlu0 %4103, %v4101
    %v4105 = vpop.permute.xlu0 %4104
    %v4109 = vunpack.c.l.s4 1966171168
    %v4110 = vunpack.c.0.s8 %v4109
    %v4111 = vlaneseq
    %v4112 = vshrl.u32 %v4111, 7
    %v4113 = vsub.s32 %v4110, %v4112
    %v4114 = vrot.slane %v4100, %v4113
    %v4115 = vcombine.high %v4114, %v4114
    %v4117 = vunpack.c.l.s4 1966171168
    %v4118 = vunpack.c.0.s8 %v4117
    %v4119 = vlaneseq
    %v4120 = vshrl.u32 %v4119, 7
    %v4121 = vsub.s32 %v4118, %v4120
    %v4122 = vrot.slane %v4114, %v4121
    %v4124 = vunpack.c.l.s4 1966171168
    %v4125 = vunpack.c.0.s8 %v4124
    %v4126 = vlaneseq
    %v4127 = vshrl.u32 %v4126, 7
    %v4128 = vsub.s32 %v4125, %v4127
    %v4129 = vrot.slane %v4115, %v4128
    %4132 = vmatprep.subr.bf16.mxu0 %v4097
    %4133 = vmatpush1.bf16.xpose.msra.mxu0 %v4096
    %4134 = vmatprep.subr.bf16.mxu0 %v4099
    %4135 = vmatpush1.bf16.xpose.msra.mxu0 %v4098
    %4136 = vmatprep.subr.bf16.mxu0 0
    %4137 = vmatpush1.bf16.xpose.msra.mxu0 0
    %4138 = vmatprep.subr.bf16.mxu0 0
    %4139 = vmatpush1.bf16.xpose.msra.mxu0 0
    %4140 = vmatprep.subr.bf16.mxu0 0
    %4141 = vmatpush1.bf16.xpose.msra.mxu0 0
    %4142 = vmatprep.subr.bf16.mxu0 0
    %4143 = vmatpush1.bf16.xpose.msra.mxu0 0
    %4144 = vmatprep.subr.bf16.mxu0 0
    %4145 = vmatpush1.bf16.xpose.msra.mxu0 0
    %4146 = vmatprep.subr.bf16.mxu0 0
    %4147 = vmatpush1.bf16.xpose.msra.mxu0 0
    %4148 = vmatprep.subr.bf16.mxu0 0
    %4149 = vmatpush1.bf16.xpose.msra.mxu0 0
    %4150 = vmatprep.subr.bf16.mxu0 0
    %4151 = vmatpush1.bf16.xpose.msra.mxu0 0
    %4152 = vmatprep.subr.bf16.mxu0 0
    %4153 = vmatpush1.bf16.xpose.msra.mxu0 0
    %4154 = vmatprep.subr.bf16.mxu0 0
    %4155 = vmatpush1.bf16.xpose.msra.mxu0 0
    %4156 = vmatprep.subr.bf16.mxu0 0
    %4157 = vmatpush1.bf16.xpose.msra.mxu0 0
    %4158 = vmatprep.subr.bf16.mxu0 0
    %4159 = vmatpush1.bf16.xpose.msra.mxu0 0
    %4160 = vmatprep.subr.bf16.mxu0 0
    %4161 = vmatpush1.bf16.xpose.msra.mxu0 0
    %4162 = vmatprep.subr.bf16.mxu0 0
    %4163 = vmatpush1.bf16.xpose.msra.mxu0 0
    %4164 = vmatprep.mubr.bf16.mxu0 %v4129
    %4165 = vmatmul.mubr.bf16.gmra.mrb[0].mxu0 %v4122
    %v4166 = vpop.f32.mrb[0].mxu0
    %v4167 = vadd.f32 %v4105, %v4166
    %v4168 = vpop.f32.mrb[0].mxu0
    %v4169 = vpop.f32.mrb[0].mxu0
    %v4170 = vpop.f32.mrb[0].mxu0
    %4171 = vdwg.mxu0
    %vm4172 = vcmask 254976
    %4173 = vst.msk [vmem:[%s9] sm:$0x3] %vm4172, %v4167
    // Predicated region
    $region42: #{pitch_predictor.1} parent=1 // pred_check
      _
    $region43: #{pitch_predictor.1} parent=1 // pred_check_branch
      %4175 = sbr.rel (0) target = $region45
    $region44: #{pitch_predictor.1} parent=1 // pred_region
      _
    $region45: #{pitch_predictor.1} parent=1 // pred_fallthru
      _
    // Predicated region
    $region46: #{pitch_predictor.1} parent=1 // pred_check
      _
    $region47: #{pitch_predictor.1} parent=1 // pred_check_branch
      %4177 = sbr.rel (0) target = $region49
    $region48: #{pitch_predictor.1} parent=1 // pred_region
      _
    $region49: #{pitch_predictor.1} parent=1 // pred_fallthru
      _
    %4178 = vsyncpa [#allocation3], 1

</llo_original>
